<compile_context>
chip_gen: v6e
topology: v6e:2x2x1
jax: 0.10.0
libtpu: 0.0.40
codegen_flags: <defaults>
</compile_context>

<pallas_src>
import math

import jax
import jax.numpy as jnp
from jax import lax
from jax.experimental import pallas as pl
from jax.experimental.pallas import tpu as pltpu

# ----------------------------- config (small) -----------------------------
VOCAB = 64
VOCAB_PAD = 128            # pad tied LM head to 128 lanes -> unmasked stores
N_EMBD = 32
N_HEAD = 4
N_LAYER = 2
N_POSITIONS = 32
PREFIX_LENGTH = 4
PREFIX_SIZE = 16
HEAD_DIM = N_EMBD // N_HEAD
MLP_HID = N_EMBD * PREFIX_LENGTH // 2     # 64
LN_EPS = 1e-5


# --------------------------- in-kernel helpers -----------------------------
def _ln(x, g, b, eps=LN_EPS):
    mu = jnp.mean(x, axis=-1, keepdims=True)
    xc = x - mu
    var = jnp.mean(xc * xc, axis=-1, keepdims=True)
    return xc * lax.rsqrt(var + eps) * g + b


def _gelu_new(x):
    c = math.sqrt(2.0 / math.pi)
    return 0.5 * x * (1.0 + jnp.tanh(c * (x + 0.044715 * x * x * x)))


# ----------------------------- fused kernel --------------------------------
def _gpt2_decoder_kernel(prefix_ref, emb_ref, neg_ref,
                         mlp1_ref, mlp2_ref, ln_ref, wd_ref, prj_ref, wte_ref,
                         logits_ref):
    D, Dh, H = N_EMBD, HEAD_DIM, N_HEAD
    scale = 1.0 / math.sqrt(Dh)
    f32 = jnp.float32

    # ---- prefix MLP (Linear -> Tanh -> Linear); bias rows packed under weights ----
    h1 = jnp.tanh(
        jnp.dot(prefix_ref[...], mlp1_ref[0:PREFIX_SIZE, :],
                preferred_element_type=f32)
        + mlp1_ref[PREFIX_SIZE:PREFIX_SIZE + 1, :])                       # (B, MLP_HID)

    # Per-prefix-position projection via static weight slices.  The bias row
    # already carries wpe[p] (folded in the wrapper), so rows land directly in
    # time-major (t, b) order with no reshape / per-batch slicing.
    blocks = []
    for p in range(PREFIX_LENGTH):                                        # static unroll
        w2p = mlp2_ref[0:MLP_HID, p * D:(p + 1) * D]                      # (MLP_HID, D)
        b2p = mlp2_ref[MLP_HID:MLP_HID + 1, p * D:(p + 1) * D]            # (1, D)
        blocks.append(jnp.dot(h1, w2p, preferred_element_type=f32) + b2p)  # (B, D)

    # Time-major hidden state: row = t*B + b; text rows already carry wpe.
    h = jnp.concatenate(blocks + [emb_ref[...]], axis=0)                  # (B*T, D)

    neg = neg_ref[...]          # additive (same-batch AND causal) mask, (B*T, B*T)

    for l in range(N_LAYER):                                              # static unroll
        # --- attention (LN1 fused into the QKV matmul, batch folded into rows) ---
        x = _ln(h, ln_ref[4 * l:4 * l + 1, :], ln_ref[4 * l + 1:4 * l + 2, :])
        qkv = jnp.dot(x, wd_ref[l, 0:D, 0:3 * D], preferred_element_type=f32) \
            + wd_ref[l, D:D + 1, 0:3 * D]                                 # (B*T, 3D)
        q_all = qkv[:, 0:D] * scale                                       # fold 1/sqrt(dh) once
        heads = []
        for hh in range(H):                                               # static unroll
            q = q_all[:, hh * Dh:(hh + 1) * Dh]
            k = qkv[:, D + hh * Dh:D + (hh + 1) * Dh]
            v = qkv[:, 2 * D + hh * Dh:2 * D + (hh + 1) * Dh]
            s = lax.dot_general(q, k, (((1,), (1,)), ((), ())),
                                preferred_element_type=f32) + neg         # (B*T, B*T)
            e = jnp.exp(s - jnp.max(s, axis=-1, keepdims=True))
            p_attn = e * pl.reciprocal(jnp.sum(e, axis=-1, keepdims=True),
                                       approx=True)
            heads.append(jnp.dot(p_attn, v, preferred_element_type=f32))  # (B*T, Dh)
        a = jnp.concatenate(heads, axis=-1)                               # (B*T, D)
        a = jnp.dot(a, wd_ref[l, 0:D, 3 * D:4 * D], preferred_element_type=f32) \
            + wd_ref[l, D:D + 1, 3 * D:4 * D]
        h = h + a
        # --- MLP (LN2 fused into the FC matmul, gelu_new fused) ---
        x = _ln(h, ln_ref[4 * l + 2:4 * l + 3, :], ln_ref[4 * l + 3:4 * l + 4, :])
        ff = _gelu_new(jnp.dot(x, wd_ref[l, 0:D, 4 * D:8 * D],
                               preferred_element_type=f32)
                       + wd_ref[l, D:D + 1, 4 * D:8 * D])
        ff = jnp.dot(ff, prj_ref[l, 0:4 * D, :], preferred_element_type=f32) \
            + prj_ref[l, 4 * D:4 * D + 1, :]
        h = h + ff

    # ---- final LN + tied LM head against the 128-lane-padded wte (one matmul) ----
    hf = _ln(h, ln_ref[4 * N_LAYER:4 * N_LAYER + 1, :],
             ln_ref[4 * N_LAYER + 1:4 * N_LAYER + 2, :])
    logits_ref[...] = lax.dot_general(hf, wte_ref[...],
                                      (((1,), (1,)), ((), ())),
                                      preferred_element_type=f32)         # (B*T, 128)


# --------------------------- parameter creation ----------------------------
def init_params(key):
    """Parameters pre-packed into few operands (cuts DMA descriptor count)."""
    def nrm(k, shape, scale=0.02):
        return (scale * jax.random.normal(k, shape)).astype(jnp.float32)

    keys = jax.random.split(key, 4 + N_LAYER)
    D = N_EMBD
    wte = nrm(keys[0], (VOCAB, D))
    wpe = nrm(keys[1], (N_POSITIONS, D))

    # clip_project MLP: prefix_size -> D*L//2 -> D*L, bias row appended.
    mlp1_pack = jnp.concatenate(
        [nrm(keys[2], (PREFIX_SIZE, MLP_HID)), jnp.zeros((1, MLP_HID), jnp.float32)],
        axis=0)                                                        # (17, 64)
    mlp2_pack = jnp.concatenate(
        [nrm(keys[3], (MLP_HID, D * PREFIX_LENGTH)),
         jnp.zeros((1, D * PREFIX_LENGTH), jnp.float32)], axis=0)      # (65, 128)

    wd_layers, prj_layers, ln_rows = [], [], []
    for l in range(N_LAYER):
        bk = jax.random.split(keys[4 + l], 4)
        c_attn_w = nrm(bk[0], (D, 3 * D))
        aproj_w = nrm(bk[1], (D, D))
        fc_w = nrm(bk[2], (D, 4 * D))
        proj_w = nrm(bk[3], (4 * D, D))
        w_block = jnp.concatenate([c_attn_w, aproj_w, fc_w], axis=1)   # (D, 8D)
        b_block = jnp.zeros((1, 8 * D), jnp.float32)                   # qkv|aproj|fc biases
        wd_layers.append(jnp.concatenate([w_block, b_block], axis=0))  # (D+1, 8D)
        prj_layers.append(jnp.concatenate(
            [proj_w, jnp.zeros((1, D), jnp.float32)], axis=0))         # (4D+1, D)
        ln_rows += [jnp.ones((D,), jnp.float32), jnp.zeros((D,), jnp.float32),
                    jnp.ones((D,), jnp.float32), jnp.zeros((D,), jnp.float32)]
    ln_rows += [jnp.ones((D,), jnp.float32), jnp.zeros((D,), jnp.float32)]  # final LN

    return {
        "wte": wte, "wpe": wpe,
        "mlp1_pack": mlp1_pack, "mlp2_pack": mlp2_pack,
        "wd_pack": jnp.stack(wd_layers),      # (L, D+1, 8D)
        "prj_pack": jnp.stack(prj_layers),    # (L, 4D+1, D)
        "ln_pack": jnp.stack(ln_rows),        # (4L+2, D)
    }


# ------------------------------ forward pass -------------------------------
@jax.jit
def gpt2_decoder_forward(params, tokens, prefix):
    """Equivalent of GPT2_Decoder.forward(tokens, prefix), labels=None, mask=None."""
    B, Lt = tokens.shape
    T = PREFIX_LENGTH + Lt
    D = N_EMBD
    wte, wpe = params["wte"], params["wpe"]

    # Token-embedding gather + positional add for text rows, laid out
    # time-major (row = t*B + b) so the kernel sees one (B*T, D) activation.
    emb_tb = (wte[tokens] + wpe[PREFIX_LENGTH:T][None, :, :]
              ).transpose(1, 0, 2).reshape(Lt * B, D)

    # Fold the prefix-position wpe rows into the packed prefix-MLP bias row.
    mlp2 = params["mlp2_pack"]
    mlp2_eff = jnp.concatenate(
        [mlp2[0:MLP_HID],
         mlp2[MLP_HID:MLP_HID + 1]
         + wpe[:PREFIX_LENGTH].reshape(1, PREFIX_LENGTH * D)], axis=0)

    # Additive (same-batch AND causal) mask over the batch-folded rows.
    t_id = jnp.repeat(jnp.arange(T, dtype=jnp.int32), B)
    b_id = jnp.tile(jnp.arange(B, dtype=jnp.int32), T)
    ok = (b_id[:, None] == b_id[None, :]) & (t_id[None, :] <= t_id[:, None])
    neg = jnp.where(ok, 0.0, -1e30).astype(jnp.float32)

    # Pad the tied LM-head table to 128 lanes so the logits store is unmasked.
    wte_pad = jnp.concatenate(
        [wte, jnp.zeros((VOCAB_PAD - VOCAB, D), wte.dtype)], axis=0)

    vmem = pl.BlockSpec(memory_space=pltpu.MemorySpace.VMEM)
    logits_tb = pl.pallas_call(
        _gpt2_decoder_kernel,
        out_shape=jax.ShapeDtypeStruct((B * T, VOCAB_PAD), jnp.float32),
        in_specs=[vmem] * 9,
        out_specs=vmem,
        # NOTE: on v7x a grid=(2,) batch split with dimension_semantics=
        # ("parallel",) could engage the 2nd TensorCore, but per-batch compute
        # here is below the ~0.35us per-grid-step overhead -> stay grid-less.
    )(prefix, emb_tb, neg, params["mlp1_pack"], mlp2_eff, params["ln_pack"],
      params["wd_pack"], params["prj_pack"], wte_pad)

    # Unpack: rows are (t, b); strip the vocab padding.
    return logits_tb[:, :VOCAB].reshape(T, B, VOCAB).transpose(1, 0, 2)
    # TODO(synk): dropout and the optional labels-loss / attention_mask paths
    #             are omitted (labels=None, mask=None, eval), matching the call here.


# ---------------------------------- main -----------------------------------
if __name__ == "__main__":
    key = jax.random.PRNGKey(0)
    kp, kt, kx = jax.random.split(key, 3)
    params = init_params(kp)

    B, TEXT_LEN = 2, 8
    tokens = jax.random.randint(kt, (B, TEXT_LEN), 0, VOCAB, dtype=jnp.int32)
    prefix = jax.random.normal(kx, (B, PREFIX_SIZE), dtype=jnp.float32)

    logits = gpt2_decoder_forward(params, tokens, prefix)
    logits = jax.block_until_ready(logits)
    assert logits.shape == (B, PREFIX_LENGTH + TEXT_LEN, VOCAB)
    assert bool(jnp.all(jnp.isfinite(logits)))
    print("KERNEL_OK")
</pallas_src>

<mosaic_0001>
module attributes {stable_mosaic.version = 11 : i64} {
  func.func @_gpt2_decoder_kernel(%arg0: memref<2x16xf32, #tpu.memory_space<vmem>>, %arg1: memref<16x32xf32, #tpu.memory_space<vmem>>, %arg2: memref<24x24xf32, #tpu.memory_space<vmem>>, %arg3: memref<17x64xf32, #tpu.memory_space<vmem>>, %arg4: memref<65x128xf32, #tpu.memory_space<vmem>>, %arg5: memref<10x32xf32, #tpu.memory_space<vmem>>, %arg6: memref<2x33x256xf32, #tpu.memory_space<vmem>>, %arg7: memref<2x129x32xf32, #tpu.memory_space<vmem>>, %arg8: memref<128x32xf32, #tpu.memory_space<vmem>>, %arg9: memref<24x128xf32, #tpu.memory_space<vmem>>) attributes {dimension_semantics = [], scalar_prefetch = 0 : i64, scratch_operands = 0 : i64, tpu.core_type = #tpu.core_type<tc>} {
    %c0 = arith.constant 0 : index
    %c0_0 = arith.constant 0 : index
    %0 = vector.load %arg0[%c0, %c0_0] : memref<2x16xf32, #tpu.memory_space<vmem>>, vector<2x16xf32>
    %c0_1 = arith.constant 0 : index
    %c0_2 = arith.constant 0 : index
    %1 = vector.load %arg3[%c0_1, %c0_2] : memref<17x64xf32, #tpu.memory_space<vmem>>, vector<16x64xf32>
    %cst = arith.constant dense<0.000000e+00> : vector<2x64xf32>
    %2 = tpu.matmul %0, %1, %cst {dimension_numbers = #tpu.dot_dimension_numbers<[1], [0], [0], [1], [0, 0, 1, 1], [], []>} : vector<2x16xf32>, vector<16x64xf32>, vector<2x64xf32> -> vector<2x64xf32>
    %c16 = arith.constant 16 : index
    %c0_3 = arith.constant 0 : index
    %3 = vector.load %arg3[%c16, %c0_3] : memref<17x64xf32, #tpu.memory_space<vmem>>, vector<1x64xf32>
    %4 = vector.broadcast %3 : vector<1x64xf32> to vector<2x64xf32>
    %5 = arith.addf %2, %4 : vector<2x64xf32>
    %6 = math.tanh %5 : vector<2x64xf32>
    %c0_4 = arith.constant 0 : index
    %c0_5 = arith.constant 0 : index
    %7 = vector.load %arg4[%c0_4, %c0_5] : memref<65x128xf32, #tpu.memory_space<vmem>>, vector<64x32xf32>
    %c64 = arith.constant 64 : index
    %c0_6 = arith.constant 0 : index
    %8 = vector.load %arg4[%c64, %c0_6] : memref<65x128xf32, #tpu.memory_space<vmem>>, vector<1x32xf32>
    %cst_7 = arith.constant dense<0.000000e+00> : vector<2x32xf32>
    %9 = tpu.matmul %6, %7, %cst_7 {dimension_numbers = #tpu.dot_dimension_numbers<[1], [0], [0], [1], [0, 0, 1, 1], [], []>} : vector<2x64xf32>, vector<64x32xf32>, vector<2x32xf32> -> vector<2x32xf32>
    %10 = vector.broadcast %8 : vector<1x32xf32> to vector<2x32xf32>
    %11 = arith.addf %9, %10 : vector<2x32xf32>
    %c0_8 = arith.constant 0 : index
    %c32 = arith.constant 32 : index
    %12 = vector.load %arg4[%c0_8, %c32] : memref<65x128xf32, #tpu.memory_space<vmem>>, vector<64x32xf32>
    %c64_9 = arith.constant 64 : index
    %c32_10 = arith.constant 32 : index
    %13 = vector.load %arg4[%c64_9, %c32_10] : memref<65x128xf32, #tpu.memory_space<vmem>>, vector<1x32xf32>
    %cst_11 = arith.constant dense<0.000000e+00> : vector<2x32xf32>
    %14 = tpu.matmul %6, %12, %cst_11 {dimension_numbers = #tpu.dot_dimension_numbers<[1], [0], [0], [1], [0, 0, 1, 1], [], []>} : vector<2x64xf32>, vector<64x32xf32>, vector<2x32xf32> -> vector<2x32xf32>
    %15 = vector.broadcast %13 : vector<1x32xf32> to vector<2x32xf32>
    %16 = arith.addf %14, %15 : vector<2x32xf32>
    %c0_12 = arith.constant 0 : index
    %c64_13 = arith.constant 64 : index
    %17 = vector.load %arg4[%c0_12, %c64_13] : memref<65x128xf32, #tpu.memory_space<vmem>>, vector<64x32xf32>
    %c64_14 = arith.constant 64 : index
    %c64_15 = arith.constant 64 : index
    %18 = vector.load %arg4[%c64_14, %c64_15] : memref<65x128xf32, #tpu.memory_space<vmem>>, vector<1x32xf32>
    %cst_16 = arith.constant dense<0.000000e+00> : vector<2x32xf32>
    %19 = tpu.matmul %6, %17, %cst_16 {dimension_numbers = #tpu.dot_dimension_numbers<[1], [0], [0], [1], [0, 0, 1, 1], [], []>} : vector<2x64xf32>, vector<64x32xf32>, vector<2x32xf32> -> vector<2x32xf32>
    %20 = vector.broadcast %18 : vector<1x32xf32> to vector<2x32xf32>
    %21 = arith.addf %19, %20 : vector<2x32xf32>
    %c0_17 = arith.constant 0 : index
    %c96 = arith.constant 96 : index
    %22 = vector.load %arg4[%c0_17, %c96] : memref<65x128xf32, #tpu.memory_space<vmem>>, vector<64x32xf32>
    %c64_18 = arith.constant 64 : index
    %c96_19 = arith.constant 96 : index
    %23 = vector.load %arg4[%c64_18, %c96_19] : memref<65x128xf32, #tpu.memory_space<vmem>>, vector<1x32xf32>
    %cst_20 = arith.constant dense<0.000000e+00> : vector<2x32xf32>
    %24 = tpu.matmul %6, %22, %cst_20 {dimension_numbers = #tpu.dot_dimension_numbers<[1], [0], [0], [1], [0, 0, 1, 1], [], []>} : vector<2x64xf32>, vector<64x32xf32>, vector<2x32xf32> -> vector<2x32xf32>
    %25 = vector.broadcast %23 : vector<1x32xf32> to vector<2x32xf32>
    %26 = arith.addf %24, %25 : vector<2x32xf32>
    %c0_21 = arith.constant 0 : index
    %c0_22 = arith.constant 0 : index
    %27 = vector.load %arg1[%c0_21, %c0_22] : memref<16x32xf32, #tpu.memory_space<vmem>>, vector<16x32xf32>
    %28 = tpu.concatenate %11, %16, %21, %26, %27 in 0 : vector<2x32xf32>, vector<2x32xf32>, vector<2x32xf32>, vector<2x32xf32>, vector<16x32xf32> -> vector<24x32xf32>
    %c0_23 = arith.constant 0 : index
    %c0_24 = arith.constant 0 : index
    %29 = vector.load %arg2[%c0_23, %c0_24] : memref<24x24xf32, #tpu.memory_space<vmem>>, vector<24x24xf32>
    %c0_25 = arith.constant 0 : index
    %c0_26 = arith.constant 0 : index
    %30 = vector.load %arg5[%c0_25, %c0_26] : memref<10x32xf32, #tpu.memory_space<vmem>>, vector<1x32xf32>
    %c1 = arith.constant 1 : index
    %c0_27 = arith.constant 0 : index
    %31 = vector.load %arg5[%c1, %c0_27] : memref<10x32xf32, #tpu.memory_space<vmem>>, vector<1x32xf32>
    %cst_28 = arith.constant dense<0.000000e+00> : vector<24xf32>
    %32 = vector.multi_reduction <add>, %28, %cst_28 [1] : vector<24x32xf32> to vector<24xf32>
    %33 = vector.shape_cast %32 : vector<24xf32> to vector<24x1xf32>
    %cst_29 = arith.constant 3.200000e+01 : f32
    %34 = vector.broadcast %cst_29 : f32 to vector<24x1xf32>
    %35 = arith.divf %33, %34 : vector<24x1xf32>
    %36 = vector.broadcast %35 : vector<24x1xf32> to vector<24x32xf32>
    %37 = arith.subf %28, %36 : vector<24x32xf32>
    %38 = arith.mulf %37, %37 : vector<24x32xf32>
    %cst_30 = arith.constant dense<0.000000e+00> : vector<24xf32>
    %39 = vector.multi_reduction <add>, %38, %cst_30 [1] : vector<24x32xf32> to vector<24xf32>
    %40 = vector.shape_cast %39 : vector<24xf32> to vector<24x1xf32>
    %cst_31 = arith.constant 3.200000e+01 : f32
    %41 = vector.broadcast %cst_31 : f32 to vector<24x1xf32>
    %42 = arith.divf %40, %41 : vector<24x1xf32>
    %cst_32 = arith.constant 9.99999974E-6 : f32
    %43 = vector.broadcast %cst_32 : f32 to vector<24x1xf32>
    %44 = arith.addf %42, %43 : vector<24x1xf32>
    %45 = math.rsqrt %44 : vector<24x1xf32>
    %46 = vector.broadcast %45 : vector<24x1xf32> to vector<24x32xf32>
    %47 = arith.mulf %37, %46 : vector<24x32xf32>
    %48 = vector.broadcast %30 : vector<1x32xf32> to vector<24x32xf32>
    %49 = arith.mulf %47, %48 : vector<24x32xf32>
    %50 = vector.broadcast %31 : vector<1x32xf32> to vector<24x32xf32>
    %51 = arith.addf %49, %50 : vector<24x32xf32>
    %c0_33 = arith.constant 0 : index
    %c0_34 = arith.constant 0 : index
    %c0_35 = arith.constant 0 : index
    %52 = vector.load %arg6[%c0_33, %c0_34, %c0_35] : memref<2x33x256xf32, #tpu.memory_space<vmem>>, vector<1x32x96xf32>
    %53 = vector.shape_cast %52 : vector<1x32x96xf32> to vector<32x96xf32>
    %cst_36 = arith.constant dense<0.000000e+00> : vector<24x96xf32>
    %54 = tpu.matmul %51, %53, %cst_36 {dimension_numbers = #tpu.dot_dimension_numbers<[1], [0], [0], [1], [0, 0, 1, 1], [], []>} : vector<24x32xf32>, vector<32x96xf32>, vector<24x96xf32> -> vector<24x96xf32>
    %c0_37 = arith.constant 0 : index
    %c32_38 = arith.constant 32 : index
    %c0_39 = arith.constant 0 : index
    %55 = vector.load %arg6[%c0_37, %c32_38, %c0_39] : memref<2x33x256xf32, #tpu.memory_space<vmem>>, vector<1x1x96xf32>
    %56 = vector.shape_cast %55 : vector<1x1x96xf32> to vector<1x96xf32>
    %57 = vector.broadcast %56 : vector<1x96xf32> to vector<24x96xf32>
    %58 = arith.addf %54, %57 : vector<24x96xf32>
    %59 = vector.extract_strided_slice %58 {offsets = [0, 0], sizes = [24, 32], strides = [1, 1]} : vector<24x96xf32> to vector<24x32xf32>
    %cst_40 = arith.constant 0.353553385 : f32
    %60 = vector.broadcast %cst_40 : f32 to vector<24x32xf32>
    %61 = arith.mulf %59, %60 : vector<24x32xf32>
    %62 = vector.extract_strided_slice %61 {offsets = [0, 0], sizes = [24, 8], strides = [1, 1]} : vector<24x32xf32> to vector<24x8xf32>
    %63 = vector.extract_strided_slice %58 {offsets = [0, 32], sizes = [24, 8], strides = [1, 1]} : vector<24x96xf32> to vector<24x8xf32>
    %64 = vector.extract_strided_slice %58 {offsets = [0, 64], sizes = [24, 8], strides = [1, 1]} : vector<24x96xf32> to vector<24x8xf32>
    %cst_41 = arith.constant dense<0.000000e+00> : vector<24x24xf32>
    %65 = tpu.matmul %62, %63, %cst_41 {dimension_numbers = #tpu.dot_dimension_numbers<[1], [1], [0], [0], [0, 0, 1, 0], [], []>} : vector<24x8xf32>, vector<24x8xf32>, vector<24x24xf32> -> vector<24x24xf32>
    %66 = arith.addf %65, %29 : vector<24x24xf32>
    %cst_42 = arith.constant dense<0xFF800000> : vector<24xf32>
    %67 = vector.multi_reduction <maximumf>, %66, %cst_42 [1] : vector<24x24xf32> to vector<24xf32>
    %68 = vector.shape_cast %67 : vector<24xf32> to vector<24x1xf32>
    %69 = vector.broadcast %68 : vector<24x1xf32> to vector<24x24xf32>
    %70 = arith.subf %66, %69 : vector<24x24xf32>
    %71 = math.exp %70 : vector<24x24xf32>
    %cst_43 = arith.constant dense<0.000000e+00> : vector<24xf32>
    %72 = vector.multi_reduction <add>, %71, %cst_43 [1] : vector<24x24xf32> to vector<24xf32>
    %73 = vector.shape_cast %72 : vector<24xf32> to vector<24x1xf32>
    %74 = tpu.reciprocal %73 {approx = true} : vector<24x1xf32> -> vector<24x1xf32>
    %75 = vector.broadcast %74 : vector<24x1xf32> to vector<24x24xf32>
    %76 = arith.mulf %71, %75 : vector<24x24xf32>
    %cst_44 = arith.constant dense<0.000000e+00> : vector<24x8xf32>
    %77 = tpu.matmul %76, %64, %cst_44 {dimension_numbers = #tpu.dot_dimension_numbers<[1], [0], [0], [1], [0, 0, 1, 1], [], []>} : vector<24x24xf32>, vector<24x8xf32>, vector<24x8xf32> -> vector<24x8xf32>
    %78 = vector.extract_strided_slice %61 {offsets = [0, 8], sizes = [24, 8], strides = [1, 1]} : vector<24x32xf32> to vector<24x8xf32>
    %79 = vector.extract_strided_slice %58 {offsets = [0, 40], sizes = [24, 8], strides = [1, 1]} : vector<24x96xf32> to vector<24x8xf32>
    %80 = vector.extract_strided_slice %58 {offsets = [0, 72], sizes = [24, 8], strides = [1, 1]} : vector<24x96xf32> to vector<24x8xf32>
    %cst_45 = arith.constant dense<0.000000e+00> : vector<24x24xf32>
    %81 = tpu.matmul %78, %79, %cst_45 {dimension_numbers = #tpu.dot_dimension_numbers<[1], [1], [0], [0], [0, 0, 1, 0], [], []>} : vector<24x8xf32>, vector<24x8xf32>, vector<24x24xf32> -> vector<24x24xf32>
    %82 = arith.addf %81, %29 : vector<24x24xf32>
    %cst_46 = arith.constant dense<0xFF800000> : vector<24xf32>
    %83 = vector.multi_reduction <maximumf>, %82, %cst_46 [1] : vector<24x24xf32> to vector<24xf32>
    %84 = vector.shape_cast %83 : vector<24xf32> to vector<24x1xf32>
    %85 = vector.broadcast %84 : vector<24x1xf32> to vector<24x24xf32>
    %86 = arith.subf %82, %85 : vector<24x24xf32>
    %87 = math.exp %86 : vector<24x24xf32>
    %cst_47 = arith.constant dense<0.000000e+00> : vector<24xf32>
    %88 = vector.multi_reduction <add>, %87, %cst_47 [1] : vector<24x24xf32> to vector<24xf32>
    %89 = vector.shape_cast %88 : vector<24xf32> to vector<24x1xf32>
    %90 = tpu.reciprocal %89 {approx = true} : vector<24x1xf32> -> vector<24x1xf32>
    %91 = vector.broadcast %90 : vector<24x1xf32> to vector<24x24xf32>
    %92 = arith.mulf %87, %91 : vector<24x24xf32>
    %cst_48 = arith.constant dense<0.000000e+00> : vector<24x8xf32>
    %93 = tpu.matmul %92, %80, %cst_48 {dimension_numbers = #tpu.dot_dimension_numbers<[1], [0], [0], [1], [0, 0, 1, 1], [], []>} : vector<24x24xf32>, vector<24x8xf32>, vector<24x8xf32> -> vector<24x8xf32>
    %94 = vector.extract_strided_slice %61 {offsets = [0, 16], sizes = [24, 8], strides = [1, 1]} : vector<24x32xf32> to vector<24x8xf32>
    %95 = vector.extract_strided_slice %58 {offsets = [0, 48], sizes = [24, 8], strides = [1, 1]} : vector<24x96xf32> to vector<24x8xf32>
    %96 = vector.extract_strided_slice %58 {offsets = [0, 80], sizes = [24, 8], strides = [1, 1]} : vector<24x96xf32> to vector<24x8xf32>
    %cst_49 = arith.constant dense<0.000000e+00> : vector<24x24xf32>
    %97 = tpu.matmul %94, %95, %cst_49 {dimension_numbers = #tpu.dot_dimension_numbers<[1], [1], [0], [0], [0, 0, 1, 0], [], []>} : vector<24x8xf32>, vector<24x8xf32>, vector<24x24xf32> -> vector<24x24xf32>
    %98 = arith.addf %97, %29 : vector<24x24xf32>
    %cst_50 = arith.constant dense<0xFF800000> : vector<24xf32>
    %99 = vector.multi_reduction <maximumf>, %98, %cst_50 [1] : vector<24x24xf32> to vector<24xf32>
    %100 = vector.shape_cast %99 : vector<24xf32> to vector<24x1xf32>
    %101 = vector.broadcast %100 : vector<24x1xf32> to vector<24x24xf32>
    %102 = arith.subf %98, %101 : vector<24x24xf32>
    %103 = math.exp %102 : vector<24x24xf32>
    %cst_51 = arith.constant dense<0.000000e+00> : vector<24xf32>
    %104 = vector.multi_reduction <add>, %103, %cst_51 [1] : vector<24x24xf32> to vector<24xf32>
    %105 = vector.shape_cast %104 : vector<24xf32> to vector<24x1xf32>
    %106 = tpu.reciprocal %105 {approx = true} : vector<24x1xf32> -> vector<24x1xf32>
    %107 = vector.broadcast %106 : vector<24x1xf32> to vector<24x24xf32>
    %108 = arith.mulf %103, %107 : vector<24x24xf32>
    %cst_52 = arith.constant dense<0.000000e+00> : vector<24x8xf32>
    %109 = tpu.matmul %108, %96, %cst_52 {dimension_numbers = #tpu.dot_dimension_numbers<[1], [0], [0], [1], [0, 0, 1, 1], [], []>} : vector<24x24xf32>, vector<24x8xf32>, vector<24x8xf32> -> vector<24x8xf32>
    %110 = vector.extract_strided_slice %61 {offsets = [0, 24], sizes = [24, 8], strides = [1, 1]} : vector<24x32xf32> to vector<24x8xf32>
    %111 = vector.extract_strided_slice %58 {offsets = [0, 56], sizes = [24, 8], strides = [1, 1]} : vector<24x96xf32> to vector<24x8xf32>
    %112 = vector.extract_strided_slice %58 {offsets = [0, 88], sizes = [24, 8], strides = [1, 1]} : vector<24x96xf32> to vector<24x8xf32>
    %cst_53 = arith.constant dense<0.000000e+00> : vector<24x24xf32>
    %113 = tpu.matmul %110, %111, %cst_53 {dimension_numbers = #tpu.dot_dimension_numbers<[1], [1], [0], [0], [0, 0, 1, 0], [], []>} : vector<24x8xf32>, vector<24x8xf32>, vector<24x24xf32> -> vector<24x24xf32>
    %114 = arith.addf %113, %29 : vector<24x24xf32>
    %cst_54 = arith.constant dense<0xFF800000> : vector<24xf32>
    %115 = vector.multi_reduction <maximumf>, %114, %cst_54 [1] : vector<24x24xf32> to vector<24xf32>
    %116 = vector.shape_cast %115 : vector<24xf32> to vector<24x1xf32>
    %117 = vector.broadcast %116 : vector<24x1xf32> to vector<24x24xf32>
    %118 = arith.subf %114, %117 : vector<24x24xf32>
    %119 = math.exp %118 : vector<24x24xf32>
    %cst_55 = arith.constant dense<0.000000e+00> : vector<24xf32>
    %120 = vector.multi_reduction <add>, %119, %cst_55 [1] : vector<24x24xf32> to vector<24xf32>
    %121 = vector.shape_cast %120 : vector<24xf32> to vector<24x1xf32>
    %122 = tpu.reciprocal %121 {approx = true} : vector<24x1xf32> -> vector<24x1xf32>
    %123 = vector.broadcast %122 : vector<24x1xf32> to vector<24x24xf32>
    %124 = arith.mulf %119, %123 : vector<24x24xf32>
    %cst_56 = arith.constant dense<0.000000e+00> : vector<24x8xf32>
    %125 = tpu.matmul %124, %112, %cst_56 {dimension_numbers = #tpu.dot_dimension_numbers<[1], [0], [0], [1], [0, 0, 1, 1], [], []>} : vector<24x24xf32>, vector<24x8xf32>, vector<24x8xf32> -> vector<24x8xf32>
    %126 = tpu.concatenate %77, %93, %109, %125 in 1 : vector<24x8xf32>, vector<24x8xf32>, vector<24x8xf32>, vector<24x8xf32> -> vector<24x32xf32>
    %c0_57 = arith.constant 0 : index
    %c0_58 = arith.constant 0 : index
    %c96_59 = arith.constant 96 : index
    %127 = vector.load %arg6[%c0_57, %c0_58, %c96_59] : memref<2x33x256xf32, #tpu.memory_space<vmem>>, vector<1x32x32xf32>
    %128 = vector.shape_cast %127 : vector<1x32x32xf32> to vector<32x32xf32>
    %cst_60 = arith.constant dense<0.000000e+00> : vector<24x32xf32>
    %129 = tpu.matmul %126, %128, %cst_60 {dimension_numbers = #tpu.dot_dimension_numbers<[1], [0], [0], [1], [0, 0, 1, 1], [], []>} : vector<24x32xf32>, vector<32x32xf32>, vector<24x32xf32> -> vector<24x32xf32>
    %c0_61 = arith.constant 0 : index
    %c32_62 = arith.constant 32 : index
    %c96_63 = arith.constant 96 : index
    %130 = vector.load %arg6[%c0_61, %c32_62, %c96_63] : memref<2x33x256xf32, #tpu.memory_space<vmem>>, vector<1x1x32xf32>
    %131 = vector.shape_cast %130 : vector<1x1x32xf32> to vector<1x32xf32>
    %132 = vector.broadcast %131 : vector<1x32xf32> to vector<24x32xf32>
    %133 = arith.addf %129, %132 : vector<24x32xf32>
    %134 = arith.addf %28, %133 : vector<24x32xf32>
    %c2 = arith.constant 2 : index
    %c0_64 = arith.constant 0 : index
    %135 = vector.load %arg5[%c2, %c0_64] : memref<10x32xf32, #tpu.memory_space<vmem>>, vector<1x32xf32>
    %c3 = arith.constant 3 : index
    %c0_65 = arith.constant 0 : index
    %136 = vector.load %arg5[%c3, %c0_65] : memref<10x32xf32, #tpu.memory_space<vmem>>, vector<1x32xf32>
    %cst_66 = arith.constant dense<0.000000e+00> : vector<24xf32>
    %137 = vector.multi_reduction <add>, %134, %cst_66 [1] : vector<24x32xf32> to vector<24xf32>
    %138 = vector.shape_cast %137 : vector<24xf32> to vector<24x1xf32>
    %cst_67 = arith.constant 3.200000e+01 : f32
    %139 = vector.broadcast %cst_67 : f32 to vector<24x1xf32>
    %140 = arith.divf %138, %139 : vector<24x1xf32>
    %141 = vector.broadcast %140 : vector<24x1xf32> to vector<24x32xf32>
    %142 = arith.subf %134, %141 : vector<24x32xf32>
    %143 = arith.mulf %142, %142 : vector<24x32xf32>
    %cst_68 = arith.constant dense<0.000000e+00> : vector<24xf32>
    %144 = vector.multi_reduction <add>, %143, %cst_68 [1] : vector<24x32xf32> to vector<24xf32>
    %145 = vector.shape_cast %144 : vector<24xf32> to vector<24x1xf32>
    %cst_69 = arith.constant 3.200000e+01 : f32
    %146 = vector.broadcast %cst_69 : f32 to vector<24x1xf32>
    %147 = arith.divf %145, %146 : vector<24x1xf32>
    %cst_70 = arith.constant 9.99999974E-6 : f32
    %148 = vector.broadcast %cst_70 : f32 to vector<24x1xf32>
    %149 = arith.addf %147, %148 : vector<24x1xf32>
    %150 = math.rsqrt %149 : vector<24x1xf32>
    %151 = vector.broadcast %150 : vector<24x1xf32> to vector<24x32xf32>
    %152 = arith.mulf %142, %151 : vector<24x32xf32>
    %153 = vector.broadcast %135 : vector<1x32xf32> to vector<24x32xf32>
    %154 = arith.mulf %152, %153 : vector<24x32xf32>
    %155 = vector.broadcast %136 : vector<1x32xf32> to vector<24x32xf32>
    %156 = arith.addf %154, %155 : vector<24x32xf32>
    %c0_71 = arith.constant 0 : index
    %c0_72 = arith.constant 0 : index
    %c128 = arith.constant 128 : index
    %157 = vector.load %arg6[%c0_71, %c0_72, %c128] : memref<2x33x256xf32, #tpu.memory_space<vmem>>, vector<1x32x128xf32>
    %158 = vector.shape_cast %157 : vector<1x32x128xf32> to vector<32x128xf32>
    %cst_73 = arith.constant dense<0.000000e+00> : vector<24x128xf32>
    %159 = tpu.matmul %156, %158, %cst_73 {dimension_numbers = #tpu.dot_dimension_numbers<[1], [0], [0], [1], [0, 0, 1, 1], [], []>} : vector<24x32xf32>, vector<32x128xf32>, vector<24x128xf32> -> vector<24x128xf32>
    %c0_74 = arith.constant 0 : index
    %c32_75 = arith.constant 32 : index
    %c128_76 = arith.constant 128 : index
    %160 = vector.load %arg6[%c0_74, %c32_75, %c128_76] : memref<2x33x256xf32, #tpu.memory_space<vmem>>, vector<1x1x128xf32>
    %161 = vector.shape_cast %160 : vector<1x1x128xf32> to vector<1x128xf32>
    %162 = vector.broadcast %161 : vector<1x128xf32> to vector<24x128xf32>
    %163 = arith.addf %159, %162 : vector<24x128xf32>
    %cst_77 = arith.constant 5.000000e-01 : f32
    %164 = vector.broadcast %cst_77 : f32 to vector<24x128xf32>
    %165 = arith.mulf %164, %163 : vector<24x128xf32>
    %cst_78 = arith.constant 4.471500e-02 : f32
    %166 = vector.broadcast %cst_78 : f32 to vector<24x128xf32>
    %167 = arith.mulf %166, %163 : vector<24x128xf32>
    %168 = arith.mulf %167, %163 : vector<24x128xf32>
    %169 = arith.mulf %168, %163 : vector<24x128xf32>
    %170 = arith.addf %163, %169 : vector<24x128xf32>
    %cst_79 = arith.constant 0.797884583 : f32
    %171 = vector.broadcast %cst_79 : f32 to vector<24x128xf32>
    %172 = arith.mulf %171, %170 : vector<24x128xf32>
    %173 = math.tanh %172 : vector<24x128xf32>
    %cst_80 = arith.constant 1.000000e+00 : f32
    %174 = vector.broadcast %cst_80 : f32 to vector<24x128xf32>
    %175 = arith.addf %174, %173 : vector<24x128xf32>
    %176 = arith.mulf %165, %175 : vector<24x128xf32>
    %c0_81 = arith.constant 0 : index
    %c0_82 = arith.constant 0 : index
    %c0_83 = arith.constant 0 : index
    %177 = vector.load %arg7[%c0_81, %c0_82, %c0_83] : memref<2x129x32xf32, #tpu.memory_space<vmem>>, vector<1x128x32xf32>
    %178 = vector.shape_cast %177 : vector<1x128x32xf32> to vector<128x32xf32>
    %cst_84 = arith.constant dense<0.000000e+00> : vector<24x32xf32>
    %179 = tpu.matmul %176, %178, %cst_84 {dimension_numbers = #tpu.dot_dimension_numbers<[1], [0], [0], [1], [0, 0, 1, 1], [], []>} : vector<24x128xf32>, vector<128x32xf32>, vector<24x32xf32> -> vector<24x32xf32>
    %c0_85 = arith.constant 0 : index
    %c128_86 = arith.constant 128 : index
    %c0_87 = arith.constant 0 : index
    %180 = vector.load %arg7[%c0_85, %c128_86, %c0_87] : memref<2x129x32xf32, #tpu.memory_space<vmem>>, vector<1x1x32xf32>
    %181 = vector.shape_cast %180 : vector<1x1x32xf32> to vector<1x32xf32>
    %182 = vector.broadcast %181 : vector<1x32xf32> to vector<24x32xf32>
    %183 = arith.addf %179, %182 : vector<24x32xf32>
    %184 = arith.addf %134, %183 : vector<24x32xf32>
    %c4 = arith.constant 4 : index
    %c0_88 = arith.constant 0 : index
    %185 = vector.load %arg5[%c4, %c0_88] : memref<10x32xf32, #tpu.memory_space<vmem>>, vector<1x32xf32>
    %c5 = arith.constant 5 : index
    %c0_89 = arith.constant 0 : index
    %186 = vector.load %arg5[%c5, %c0_89] : memref<10x32xf32, #tpu.memory_space<vmem>>, vector<1x32xf32>
    %cst_90 = arith.constant dense<0.000000e+00> : vector<24xf32>
    %187 = vector.multi_reduction <add>, %184, %cst_90 [1] : vector<24x32xf32> to vector<24xf32>
    %188 = vector.shape_cast %187 : vector<24xf32> to vector<24x1xf32>
    %cst_91 = arith.constant 3.200000e+01 : f32
    %189 = vector.broadcast %cst_91 : f32 to vector<24x1xf32>
    %190 = arith.divf %188, %189 : vector<24x1xf32>
    %191 = vector.broadcast %190 : vector<24x1xf32> to vector<24x32xf32>
    %192 = arith.subf %184, %191 : vector<24x32xf32>
    %193 = arith.mulf %192, %192 : vector<24x32xf32>
    %cst_92 = arith.constant dense<0.000000e+00> : vector<24xf32>
    %194 = vector.multi_reduction <add>, %193, %cst_92 [1] : vector<24x32xf32> to vector<24xf32>
    %195 = vector.shape_cast %194 : vector<24xf32> to vector<24x1xf32>
    %cst_93 = arith.constant 3.200000e+01 : f32
    %196 = vector.broadcast %cst_93 : f32 to vector<24x1xf32>
    %197 = arith.divf %195, %196 : vector<24x1xf32>
    %cst_94 = arith.constant 9.99999974E-6 : f32
    %198 = vector.broadcast %cst_94 : f32 to vector<24x1xf32>
    %199 = arith.addf %197, %198 : vector<24x1xf32>
    %200 = math.rsqrt %199 : vector<24x1xf32>
    %201 = vector.broadcast %200 : vector<24x1xf32> to vector<24x32xf32>
    %202 = arith.mulf %192, %201 : vector<24x32xf32>
    %203 = vector.broadcast %185 : vector<1x32xf32> to vector<24x32xf32>
    %204 = arith.mulf %202, %203 : vector<24x32xf32>
    %205 = vector.broadcast %186 : vector<1x32xf32> to vector<24x32xf32>
    %206 = arith.addf %204, %205 : vector<24x32xf32>
    %c1_95 = arith.constant 1 : index
    %c0_96 = arith.constant 0 : index
    %c0_97 = arith.constant 0 : index
    %207 = vector.load %arg6[%c1_95, %c0_96, %c0_97] : memref<2x33x256xf32, #tpu.memory_space<vmem>>, vector<1x32x96xf32>
    %208 = vector.shape_cast %207 : vector<1x32x96xf32> to vector<32x96xf32>
    %cst_98 = arith.constant dense<0.000000e+00> : vector<24x96xf32>
    %209 = tpu.matmul %206, %208, %cst_98 {dimension_numbers = #tpu.dot_dimension_numbers<[1], [0], [0], [1], [0, 0, 1, 1], [], []>} : vector<24x32xf32>, vector<32x96xf32>, vector<24x96xf32> -> vector<24x96xf32>
    %c1_99 = arith.constant 1 : index
    %c32_100 = arith.constant 32 : index
    %c0_101 = arith.constant 0 : index
    %210 = vector.load %arg6[%c1_99, %c32_100, %c0_101] : memref<2x33x256xf32, #tpu.memory_space<vmem>>, vector<1x1x96xf32>
    %211 = vector.shape_cast %210 : vector<1x1x96xf32> to vector<1x96xf32>
    %212 = vector.broadcast %211 : vector<1x96xf32> to vector<24x96xf32>
    %213 = arith.addf %209, %212 : vector<24x96xf32>
    %214 = vector.extract_strided_slice %213 {offsets = [0, 0], sizes = [24, 32], strides = [1, 1]} : vector<24x96xf32> to vector<24x32xf32>
    %cst_102 = arith.constant 0.353553385 : f32
    %215 = vector.broadcast %cst_102 : f32 to vector<24x32xf32>
    %216 = arith.mulf %214, %215 : vector<24x32xf32>
    %217 = vector.extract_strided_slice %216 {offsets = [0, 0], sizes = [24, 8], strides = [1, 1]} : vector<24x32xf32> to vector<24x8xf32>
    %218 = vector.extract_strided_slice %213 {offsets = [0, 32], sizes = [24, 8], strides = [1, 1]} : vector<24x96xf32> to vector<24x8xf32>
    %219 = vector.extract_strided_slice %213 {offsets = [0, 64], sizes = [24, 8], strides = [1, 1]} : vector<24x96xf32> to vector<24x8xf32>
    %cst_103 = arith.constant dense<0.000000e+00> : vector<24x24xf32>
    %220 = tpu.matmul %217, %218, %cst_103 {dimension_numbers = #tpu.dot_dimension_numbers<[1], [1], [0], [0], [0, 0, 1, 0], [], []>} : vector<24x8xf32>, vector<24x8xf32>, vector<24x24xf32> -> vector<24x24xf32>
    %221 = arith.addf %220, %29 : vector<24x24xf32>
    %cst_104 = arith.constant dense<0xFF800000> : vector<24xf32>
    %222 = vector.multi_reduction <maximumf>, %221, %cst_104 [1] : vector<24x24xf32> to vector<24xf32>
    %223 = vector.shape_cast %222 : vector<24xf32> to vector<24x1xf32>
    %224 = vector.broadcast %223 : vector<24x1xf32> to vector<24x24xf32>
    %225 = arith.subf %221, %224 : vector<24x24xf32>
    %226 = math.exp %225 : vector<24x24xf32>
    %cst_105 = arith.constant dense<0.000000e+00> : vector<24xf32>
    %227 = vector.multi_reduction <add>, %226, %cst_105 [1] : vector<24x24xf32> to vector<24xf32>
    %228 = vector.shape_cast %227 : vector<24xf32> to vector<24x1xf32>
    %229 = tpu.reciprocal %228 {approx = true} : vector<24x1xf32> -> vector<24x1xf32>
    %230 = vector.broadcast %229 : vector<24x1xf32> to vector<24x24xf32>
    %231 = arith.mulf %226, %230 : vector<24x24xf32>
    %cst_106 = arith.constant dense<0.000000e+00> : vector<24x8xf32>
    %232 = tpu.matmul %231, %219, %cst_106 {dimension_numbers = #tpu.dot_dimension_numbers<[1], [0], [0], [1], [0, 0, 1, 1], [], []>} : vector<24x24xf32>, vector<24x8xf32>, vector<24x8xf32> -> vector<24x8xf32>
    %233 = vector.extract_strided_slice %216 {offsets = [0, 8], sizes = [24, 8], strides = [1, 1]} : vector<24x32xf32> to vector<24x8xf32>
    %234 = vector.extract_strided_slice %213 {offsets = [0, 40], sizes = [24, 8], strides = [1, 1]} : vector<24x96xf32> to vector<24x8xf32>
    %235 = vector.extract_strided_slice %213 {offsets = [0, 72], sizes = [24, 8], strides = [1, 1]} : vector<24x96xf32> to vector<24x8xf32>
    %cst_107 = arith.constant dense<0.000000e+00> : vector<24x24xf32>
    %236 = tpu.matmul %233, %234, %cst_107 {dimension_numbers = #tpu.dot_dimension_numbers<[1], [1], [0], [0], [0, 0, 1, 0], [], []>} : vector<24x8xf32>, vector<24x8xf32>, vector<24x24xf32> -> vector<24x24xf32>
    %237 = arith.addf %236, %29 : vector<24x24xf32>
    %cst_108 = arith.constant dense<0xFF800000> : vector<24xf32>
    %238 = vector.multi_reduction <maximumf>, %237, %cst_108 [1] : vector<24x24xf32> to vector<24xf32>
    %239 = vector.shape_cast %238 : vector<24xf32> to vector<24x1xf32>
    %240 = vector.broadcast %239 : vector<24x1xf32> to vector<24x24xf32>
    %241 = arith.subf %237, %240 : vector<24x24xf32>
    %242 = math.exp %241 : vector<24x24xf32>
    %cst_109 = arith.constant dense<0.000000e+00> : vector<24xf32>
    %243 = vector.multi_reduction <add>, %242, %cst_109 [1] : vector<24x24xf32> to vector<24xf32>
    %244 = vector.shape_cast %243 : vector<24xf32> to vector<24x1xf32>
    %245 = tpu.reciprocal %244 {approx = true} : vector<24x1xf32> -> vector<24x1xf32>
    %246 = vector.broadcast %245 : vector<24x1xf32> to vector<24x24xf32>
    %247 = arith.mulf %242, %246 : vector<24x24xf32>
    %cst_110 = arith.constant dense<0.000000e+00> : vector<24x8xf32>
    %248 = tpu.matmul %247, %235, %cst_110 {dimension_numbers = #tpu.dot_dimension_numbers<[1], [0], [0], [1], [0, 0, 1, 1], [], []>} : vector<24x24xf32>, vector<24x8xf32>, vector<24x8xf32> -> vector<24x8xf32>
    %249 = vector.extract_strided_slice %216 {offsets = [0, 16], sizes = [24, 8], strides = [1, 1]} : vector<24x32xf32> to vector<24x8xf32>
    %250 = vector.extract_strided_slice %213 {offsets = [0, 48], sizes = [24, 8], strides = [1, 1]} : vector<24x96xf32> to vector<24x8xf32>
    %251 = vector.extract_strided_slice %213 {offsets = [0, 80], sizes = [24, 8], strides = [1, 1]} : vector<24x96xf32> to vector<24x8xf32>
    %cst_111 = arith.constant dense<0.000000e+00> : vector<24x24xf32>
    %252 = tpu.matmul %249, %250, %cst_111 {dimension_numbers = #tpu.dot_dimension_numbers<[1], [1], [0], [0], [0, 0, 1, 0], [], []>} : vector<24x8xf32>, vector<24x8xf32>, vector<24x24xf32> -> vector<24x24xf32>
    %253 = arith.addf %252, %29 : vector<24x24xf32>
    %cst_112 = arith.constant dense<0xFF800000> : vector<24xf32>
    %254 = vector.multi_reduction <maximumf>, %253, %cst_112 [1] : vector<24x24xf32> to vector<24xf32>
    %255 = vector.shape_cast %254 : vector<24xf32> to vector<24x1xf32>
    %256 = vector.broadcast %255 : vector<24x1xf32> to vector<24x24xf32>
    %257 = arith.subf %253, %256 : vector<24x24xf32>
    %258 = math.exp %257 : vector<24x24xf32>
    %cst_113 = arith.constant dense<0.000000e+00> : vector<24xf32>
    %259 = vector.multi_reduction <add>, %258, %cst_113 [1] : vector<24x24xf32> to vector<24xf32>
    %260 = vector.shape_cast %259 : vector<24xf32> to vector<24x1xf32>
    %261 = tpu.reciprocal %260 {approx = true} : vector<24x1xf32> -> vector<24x1xf32>
    %262 = vector.broadcast %261 : vector<24x1xf32> to vector<24x24xf32>
    %263 = arith.mulf %258, %262 : vector<24x24xf32>
    %cst_114 = arith.constant dense<0.000000e+00> : vector<24x8xf32>
    %264 = tpu.matmul %263, %251, %cst_114 {dimension_numbers = #tpu.dot_dimension_numbers<[1], [0], [0], [1], [0, 0, 1, 1], [], []>} : vector<24x24xf32>, vector<24x8xf32>, vector<24x8xf32> -> vector<24x8xf32>
    %265 = vector.extract_strided_slice %216 {offsets = [0, 24], sizes = [24, 8], strides = [1, 1]} : vector<24x32xf32> to vector<24x8xf32>
    %266 = vector.extract_strided_slice %213 {offsets = [0, 56], sizes = [24, 8], strides = [1, 1]} : vector<24x96xf32> to vector<24x8xf32>
    %267 = vector.extract_strided_slice %213 {offsets = [0, 88], sizes = [24, 8], strides = [1, 1]} : vector<24x96xf32> to vector<24x8xf32>
    %cst_115 = arith.constant dense<0.000000e+00> : vector<24x24xf32>
    %268 = tpu.matmul %265, %266, %cst_115 {dimension_numbers = #tpu.dot_dimension_numbers<[1], [1], [0], [0], [0, 0, 1, 0], [], []>} : vector<24x8xf32>, vector<24x8xf32>, vector<24x24xf32> -> vector<24x24xf32>
    %269 = arith.addf %268, %29 : vector<24x24xf32>
    %cst_116 = arith.constant dense<0xFF800000> : vector<24xf32>
    %270 = vector.multi_reduction <maximumf>, %269, %cst_116 [1] : vector<24x24xf32> to vector<24xf32>
    %271 = vector.shape_cast %270 : vector<24xf32> to vector<24x1xf32>
    %272 = vector.broadcast %271 : vector<24x1xf32> to vector<24x24xf32>
    %273 = arith.subf %269, %272 : vector<24x24xf32>
    %274 = math.exp %273 : vector<24x24xf32>
    %cst_117 = arith.constant dense<0.000000e+00> : vector<24xf32>
    %275 = vector.multi_reduction <add>, %274, %cst_117 [1] : vector<24x24xf32> to vector<24xf32>
    %276 = vector.shape_cast %275 : vector<24xf32> to vector<24x1xf32>
    %277 = tpu.reciprocal %276 {approx = true} : vector<24x1xf32> -> vector<24x1xf32>
    %278 = vector.broadcast %277 : vector<24x1xf32> to vector<24x24xf32>
    %279 = arith.mulf %274, %278 : vector<24x24xf32>
    %cst_118 = arith.constant dense<0.000000e+00> : vector<24x8xf32>
    %280 = tpu.matmul %279, %267, %cst_118 {dimension_numbers = #tpu.dot_dimension_numbers<[1], [0], [0], [1], [0, 0, 1, 1], [], []>} : vector<24x24xf32>, vector<24x8xf32>, vector<24x8xf32> -> vector<24x8xf32>
    %281 = tpu.concatenate %232, %248, %264, %280 in 1 : vector<24x8xf32>, vector<24x8xf32>, vector<24x8xf32>, vector<24x8xf32> -> vector<24x32xf32>
    %c1_119 = arith.constant 1 : index
    %c0_120 = arith.constant 0 : index
    %c96_121 = arith.constant 96 : index
    %282 = vector.load %arg6[%c1_119, %c0_120, %c96_121] : memref<2x33x256xf32, #tpu.memory_space<vmem>>, vector<1x32x32xf32>
    %283 = vector.shape_cast %282 : vector<1x32x32xf32> to vector<32x32xf32>
    %cst_122 = arith.constant dense<0.000000e+00> : vector<24x32xf32>
    %284 = tpu.matmul %281, %283, %cst_122 {dimension_numbers = #tpu.dot_dimension_numbers<[1], [0], [0], [1], [0, 0, 1, 1], [], []>} : vector<24x32xf32>, vector<32x32xf32>, vector<24x32xf32> -> vector<24x32xf32>
    %c1_123 = arith.constant 1 : index
    %c32_124 = arith.constant 32 : index
    %c96_125 = arith.constant 96 : index
    %285 = vector.load %arg6[%c1_123, %c32_124, %c96_125] : memref<2x33x256xf32, #tpu.memory_space<vmem>>, vector<1x1x32xf32>
    %286 = vector.shape_cast %285 : vector<1x1x32xf32> to vector<1x32xf32>
    %287 = vector.broadcast %286 : vector<1x32xf32> to vector<24x32xf32>
    %288 = arith.addf %284, %287 : vector<24x32xf32>
    %289 = arith.addf %184, %288 : vector<24x32xf32>
    %c6 = arith.constant 6 : index
    %c0_126 = arith.constant 0 : index
    %290 = vector.load %arg5[%c6, %c0_126] : memref<10x32xf32, #tpu.memory_space<vmem>>, vector<1x32xf32>
    %c7 = arith.constant 7 : index
    %c0_127 = arith.constant 0 : index
    %291 = vector.load %arg5[%c7, %c0_127] : memref<10x32xf32, #tpu.memory_space<vmem>>, vector<1x32xf32>
    %cst_128 = arith.constant dense<0.000000e+00> : vector<24xf32>
    %292 = vector.multi_reduction <add>, %289, %cst_128 [1] : vector<24x32xf32> to vector<24xf32>
    %293 = vector.shape_cast %292 : vector<24xf32> to vector<24x1xf32>
    %cst_129 = arith.constant 3.200000e+01 : f32
    %294 = vector.broadcast %cst_129 : f32 to vector<24x1xf32>
    %295 = arith.divf %293, %294 : vector<24x1xf32>
    %296 = vector.broadcast %295 : vector<24x1xf32> to vector<24x32xf32>
    %297 = arith.subf %289, %296 : vector<24x32xf32>
    %298 = arith.mulf %297, %297 : vector<24x32xf32>
    %cst_130 = arith.constant dense<0.000000e+00> : vector<24xf32>
    %299 = vector.multi_reduction <add>, %298, %cst_130 [1] : vector<24x32xf32> to vector<24xf32>
    %300 = vector.shape_cast %299 : vector<24xf32> to vector<24x1xf32>
    %cst_131 = arith.constant 3.200000e+01 : f32
    %301 = vector.broadcast %cst_131 : f32 to vector<24x1xf32>
    %302 = arith.divf %300, %301 : vector<24x1xf32>
    %cst_132 = arith.constant 9.99999974E-6 : f32
    %303 = vector.broadcast %cst_132 : f32 to vector<24x1xf32>
    %304 = arith.addf %302, %303 : vector<24x1xf32>
    %305 = math.rsqrt %304 : vector<24x1xf32>
    %306 = vector.broadcast %305 : vector<24x1xf32> to vector<24x32xf32>
    %307 = arith.mulf %297, %306 : vector<24x32xf32>
    %308 = vector.broadcast %290 : vector<1x32xf32> to vector<24x32xf32>
    %309 = arith.mulf %307, %308 : vector<24x32xf32>
    %310 = vector.broadcast %291 : vector<1x32xf32> to vector<24x32xf32>
    %311 = arith.addf %309, %310 : vector<24x32xf32>
    %c1_133 = arith.constant 1 : index
    %c0_134 = arith.constant 0 : index
    %c128_135 = arith.constant 128 : index
    %312 = vector.load %arg6[%c1_133, %c0_134, %c128_135] : memref<2x33x256xf32, #tpu.memory_space<vmem>>, vector<1x32x128xf32>
    %313 = vector.shape_cast %312 : vector<1x32x128xf32> to vector<32x128xf32>
    %cst_136 = arith.constant dense<0.000000e+00> : vector<24x128xf32>
    %314 = tpu.matmul %311, %313, %cst_136 {dimension_numbers = #tpu.dot_dimension_numbers<[1], [0], [0], [1], [0, 0, 1, 1], [], []>} : vector<24x32xf32>, vector<32x128xf32>, vector<24x128xf32> -> vector<24x128xf32>
    %c1_137 = arith.constant 1 : index
    %c32_138 = arith.constant 32 : index
    %c128_139 = arith.constant 128 : index
    %315 = vector.load %arg6[%c1_137, %c32_138, %c128_139] : memref<2x33x256xf32, #tpu.memory_space<vmem>>, vector<1x1x128xf32>
    %316 = vector.shape_cast %315 : vector<1x1x128xf32> to vector<1x128xf32>
    %317 = vector.broadcast %316 : vector<1x128xf32> to vector<24x128xf32>
    %318 = arith.addf %314, %317 : vector<24x128xf32>
    %cst_140 = arith.constant 5.000000e-01 : f32
    %319 = vector.broadcast %cst_140 : f32 to vector<24x128xf32>
    %320 = arith.mulf %319, %318 : vector<24x128xf32>
    %cst_141 = arith.constant 4.471500e-02 : f32
    %321 = vector.broadcast %cst_141 : f32 to vector<24x128xf32>
    %322 = arith.mulf %321, %318 : vector<24x128xf32>
    %323 = arith.mulf %322, %318 : vector<24x128xf32>
    %324 = arith.mulf %323, %318 : vector<24x128xf32>
    %325 = arith.addf %318, %324 : vector<24x128xf32>
    %cst_142 = arith.constant 0.797884583 : f32
    %326 = vector.broadcast %cst_142 : f32 to vector<24x128xf32>
    %327 = arith.mulf %326, %325 : vector<24x128xf32>
    %328 = math.tanh %327 : vector<24x128xf32>
    %cst_143 = arith.constant 1.000000e+00 : f32
    %329 = vector.broadcast %cst_143 : f32 to vector<24x128xf32>
    %330 = arith.addf %329, %328 : vector<24x128xf32>
    %331 = arith.mulf %320, %330 : vector<24x128xf32>
    %c1_144 = arith.constant 1 : index
    %c0_145 = arith.constant 0 : index
    %c0_146 = arith.constant 0 : index
    %332 = vector.load %arg7[%c1_144, %c0_145, %c0_146] : memref<2x129x32xf32, #tpu.memory_space<vmem>>, vector<1x128x32xf32>
    %333 = vector.shape_cast %332 : vector<1x128x32xf32> to vector<128x32xf32>
    %cst_147 = arith.constant dense<0.000000e+00> : vector<24x32xf32>
    %334 = tpu.matmul %331, %333, %cst_147 {dimension_numbers = #tpu.dot_dimension_numbers<[1], [0], [0], [1], [0, 0, 1, 1], [], []>} : vector<24x128xf32>, vector<128x32xf32>, vector<24x32xf32> -> vector<24x32xf32>
    %c1_148 = arith.constant 1 : index
    %c128_149 = arith.constant 128 : index
    %c0_150 = arith.constant 0 : index
    %335 = vector.load %arg7[%c1_148, %c128_149, %c0_150] : memref<2x129x32xf32, #tpu.memory_space<vmem>>, vector<1x1x32xf32>
    %336 = vector.shape_cast %335 : vector<1x1x32xf32> to vector<1x32xf32>
    %337 = vector.broadcast %336 : vector<1x32xf32> to vector<24x32xf32>
    %338 = arith.addf %334, %337 : vector<24x32xf32>
    %339 = arith.addf %289, %338 : vector<24x32xf32>
    %c8 = arith.constant 8 : index
    %c0_151 = arith.constant 0 : index
    %340 = vector.load %arg5[%c8, %c0_151] : memref<10x32xf32, #tpu.memory_space<vmem>>, vector<1x32xf32>
    %c9 = arith.constant 9 : index
    %c0_152 = arith.constant 0 : index
    %341 = vector.load %arg5[%c9, %c0_152] : memref<10x32xf32, #tpu.memory_space<vmem>>, vector<1x32xf32>
    %cst_153 = arith.constant dense<0.000000e+00> : vector<24xf32>
    %342 = vector.multi_reduction <add>, %339, %cst_153 [1] : vector<24x32xf32> to vector<24xf32>
    %343 = vector.shape_cast %342 : vector<24xf32> to vector<24x1xf32>
    %cst_154 = arith.constant 3.200000e+01 : f32
    %344 = vector.broadcast %cst_154 : f32 to vector<24x1xf32>
    %345 = arith.divf %343, %344 : vector<24x1xf32>
    %346 = vector.broadcast %345 : vector<24x1xf32> to vector<24x32xf32>
    %347 = arith.subf %339, %346 : vector<24x32xf32>
    %348 = arith.mulf %347, %347 : vector<24x32xf32>
    %cst_155 = arith.constant dense<0.000000e+00> : vector<24xf32>
    %349 = vector.multi_reduction <add>, %348, %cst_155 [1] : vector<24x32xf32> to vector<24xf32>
    %350 = vector.shape_cast %349 : vector<24xf32> to vector<24x1xf32>
    %cst_156 = arith.constant 3.200000e+01 : f32
    %351 = vector.broadcast %cst_156 : f32 to vector<24x1xf32>
    %352 = arith.divf %350, %351 : vector<24x1xf32>
    %cst_157 = arith.constant 9.99999974E-6 : f32
    %353 = vector.broadcast %cst_157 : f32 to vector<24x1xf32>
    %354 = arith.addf %352, %353 : vector<24x1xf32>
    %355 = math.rsqrt %354 : vector<24x1xf32>
    %356 = vector.broadcast %355 : vector<24x1xf32> to vector<24x32xf32>
    %357 = arith.mulf %347, %356 : vector<24x32xf32>
    %358 = vector.broadcast %340 : vector<1x32xf32> to vector<24x32xf32>
    %359 = arith.mulf %357, %358 : vector<24x32xf32>
    %360 = vector.broadcast %341 : vector<1x32xf32> to vector<24x32xf32>
    %361 = arith.addf %359, %360 : vector<24x32xf32>
    %c0_158 = arith.constant 0 : index
    %c0_159 = arith.constant 0 : index
    %362 = vector.load %arg8[%c0_158, %c0_159] : memref<128x32xf32, #tpu.memory_space<vmem>>, vector<128x32xf32>
    %cst_160 = arith.constant dense<0.000000e+00> : vector<24x128xf32>
    %363 = tpu.matmul %361, %362, %cst_160 {dimension_numbers = #tpu.dot_dimension_numbers<[1], [1], [0], [0], [0, 0, 1, 0], [], []>} : vector<24x32xf32>, vector<128x32xf32>, vector<24x128xf32> -> vector<24x128xf32>
    %c0_161 = arith.constant 0 : index
    %c0_162 = arith.constant 0 : index
    %364 = vector.load %arg9[%c0_161, %c0_162] : memref<24x128xf32, #tpu.memory_space<vmem>>, vector<24x128xf32>
    tpu.vector_store %arg9[%c0_161, %c0_162], %363 {strides = array<i32>} : memref<24x128xf32, #tpu.memory_space<vmem>>, vector<24x128xf32>,
    return
  }
}

</mosaic_0001>

<llo_original>
// kernel: eq.8
$region0: #{eq.8}
  %s0 = inlined_call_operand.vmem [shape: s32[12,2], index: 0, kind: input, shape index: {}]
  %s1 = inlined_call_operand.vmem [shape: s32[24], index: 1, kind: output, shape index: {}]
  $region1: #{eq.8} parent=0
    #allocation0 [shape = 'u8[4096]{0}', space=vmem, size = 0x1000, scoped, tag = 'scoped mem for output reshape']
    %v2 = vld [vmem:[%s0] sm:$0x1]
    %vm3 = vcmask 15360
    %4 = vst.msk [vmem:[#allocation0] sm:$0x1] %vm3, %v2
    %s5 = scalar_lea.vmem %s0, 11
    %v6 = vld [vmem:[%s5] sm:$0x1]
    %7 = vrot.lane.b32.xlu0 %v6, 22
    %v8 = vpop.permute.xlu0 %7
    %vm9 = vcmask 195760
    %10 = vst.msk [vmem:[#allocation0] sm:$0x1] %vm9, %v8
    %s11 = scalar_lea.vmem %s0, 10
    %v12 = vld [vmem:[%s11] sm:$0x1]
    %13 = vrot.lane.b32.xlu0 %v12, 20
    %v14 = vpop.permute.xlu0 %13
    %vm15 = vcmask 179360
    %16 = vst.msk [vmem:[#allocation0] sm:$0x1] %vm15, %v14
    %s17 = scalar_lea.vmem %s0, 9
    %v18 = vld [vmem:[%s17] sm:$0x1]
    %19 = vrot.lane.b32.xlu0 %v18, 18
    %v20 = vpop.permute.xlu0 %19
    %vm21 = vcmask 162960
    %22 = vst.msk [vmem:[#allocation0] sm:$0x1] %vm21, %v20
    %s23 = scalar_lea.vmem %s0, 8
    %v24 = vld [vmem:[%s23] sm:$0x1]
    %25 = vrot.lane.b32.xlu0 %v24, 16
    %v26 = vpop.permute.xlu0 %25
    %vm27 = vcmask 146560
    %28 = vst.msk [vmem:[#allocation0] sm:$0x1] %vm27, %v26
    %s29 = scalar_lea.vmem %s0, 7
    %v30 = vld [vmem:[%s29] sm:$0x1]
    %31 = vrot.lane.b32.xlu0 %v30, 14
    %v32 = vpop.permute.xlu0 %31
    %vm33 = vcmask 130160
    %34 = vst.msk [vmem:[#allocation0] sm:$0x1] %vm33, %v32
    %s35 = scalar_lea.vmem %s0, 6
    %v36 = vld [vmem:[%s35] sm:$0x1]
    %37 = vrot.lane.b32.xlu0 %v36, 12
    %v38 = vpop.permute.xlu0 %37
    %vm39 = vcmask 113760
    %40 = vst.msk [vmem:[#allocation0] sm:$0x1] %vm39, %v38
    %s41 = scalar_lea.vmem %s0, 5
    %v42 = vld [vmem:[%s41] sm:$0x1]
    %43 = vrot.lane.b32.xlu0 %v42, 10
    %v44 = vpop.permute.xlu0 %43
    %vm45 = vcmask 97360
    %46 = vst.msk [vmem:[#allocation0] sm:$0x1] %vm45, %v44
    %s47 = scalar_lea.vmem %s0, 4
    %v48 = vld [vmem:[%s47] sm:$0x1]
    %49 = vrot.lane.b32.xlu0 %v48, 8
    %v50 = vpop.permute.xlu0 %49
    %vm51 = vcmask 80960
    %52 = vst.msk [vmem:[#allocation0] sm:$0x1] %vm51, %v50
    %s53 = scalar_lea.vmem %s0, 3
    %v54 = vld [vmem:[%s53] sm:$0x1]
    %55 = vrot.lane.b32.xlu0 %v54, 6
    %v56 = vpop.permute.xlu0 %55
    %vm57 = vcmask 64560
    %58 = vst.msk [vmem:[#allocation0] sm:$0x1] %vm57, %v56
    %s59 = scalar_lea.vmem %s0, 2
    %v60 = vld [vmem:[%s59] sm:$0x1]
    %61 = vrot.lane.b32.xlu0 %v60, 4
    %v62 = vpop.permute.xlu0 %61
    %vm63 = vcmask 48160
    %64 = vst.msk [vmem:[#allocation0] sm:$0x1] %vm63, %v62
    %s65 = scalar_lea.vmem %s0, 1
    %v66 = vld [vmem:[%s65] sm:$0x1]
    %67 = vrot.lane.b32.xlu0 %v66, 2
    %v68 = vpop.permute.xlu0 %67
    %vm69 = vcmask 31760
    %70 = vst.msk [vmem:[#allocation0] sm:$0x1] %vm69, %v68
    %s72 = sshll.u32 1, 1
    %s73 = ssub.s32 %s72, 1
    %v75 = vld [vmem:[#allocation0] sm:%s73]
    %s76 = sshll.u32 1, 1
    %s77 = ssub.s32 %s76, 1
    %78 = vst [vmem:[%s1] sm:%s77] %v75

// kernel: gpt2_decoder_forward.1
$region0: #{gpt2_decoder_forward.1}
  #allocation0 [shape = 'u32[]', space=smem, size = 0x4, offset = 0x4, fixed_abs, tag = 'smem constant byte address 0x4 - core index']
  #allocation1 [shape = 'u32[144,128]{1,0:T(1,128)}', space=vmem, size = 0x12000, scoped, tag = 'internal scratch']
  %s0 = inlined_call_operand.vmem [shape: f32[2,16], index: 0, kind: input, shape index: {}]
  %s1 = inlined_call_operand.vmem [shape: f32[16,32], index: 1, kind: input, shape index: {}]
  %s2 = inlined_call_operand.vmem [shape: f32[24,24], index: 2, kind: input, shape index: {}]
  %s3 = inlined_call_operand.vmem [shape: f32[17,64], index: 3, kind: input, shape index: {}]
  %s4 = inlined_call_operand.vmem [shape: f32[65,128], index: 4, kind: input, shape index: {}]
  %s5 = inlined_call_operand.vmem [shape: f32[10,32], index: 5, kind: input, shape index: {}]
  %s6 = inlined_call_operand.vmem [shape: f32[2,33,256], index: 6, kind: input, shape index: {}]
  %s7 = inlined_call_operand.vmem [shape: f32[2,129,32], index: 7, kind: input, shape index: {}]
  %s8 = inlined_call_operand.vmem [shape: f32[128,32], index: 8, kind: input, shape index: {}]
  %s9 = inlined_call_operand.hbm [shape: f32[24,128], index: 9, kind: output, shape index: {}]
  %s10 = sld [smem:[#allocation0]]
  $region46: #{gpt2_decoder_forward.1} parent=0
    _
  %s12 = ssub.s32 1, %s10
  %s13 = scalar_select 0, %s12, %s10
  $region1: #{gpt2_decoder_forward.1} parent=0
    #allocation2 [shape = 'u8[12288]{0}', space=vmem, size = 0x3000, scoped, tag = 'output window, operand 0, single buffered']
    #allocation3 [shape = 's32[1]{0}', space=sflag, size = 0x4, scoped, tag = 'scoped memory for gpt2_decoder_forward.1']
    %14 = vsyncpa [#allocation3], 0
    // Predicated region
    $region2: #{gpt2_decoder_forward.1} parent=1 // pred_check
      _
    $region3: #{gpt2_decoder_forward.1} parent=1 // pred_check_branch
      %16 = sbr.rel (0) target = $region5
    $region4: #{gpt2_decoder_forward.1} parent=1 // pred_region
      _
    $region5: #{gpt2_decoder_forward.1} parent=1 // pred_fallthru
      _
    // Predicated region
    $region6: #{gpt2_decoder_forward.1} parent=1 // pred_check
      _
    $region7: #{gpt2_decoder_forward.1} parent=1 // pred_check_branch
      %18 = sbr.rel (0) target = $region9
    $region8: #{gpt2_decoder_forward.1} parent=1 // pred_region
      _
    $region9: #{gpt2_decoder_forward.1} parent=1 // pred_fallthru
      _
    // Predicated region
    $region10: #{gpt2_decoder_forward.1} parent=1 // pred_check
      _
    $region11: #{gpt2_decoder_forward.1} parent=1 // pred_check_branch
      %20 = sbr.rel (0) target = $region13
    $region12: #{gpt2_decoder_forward.1} parent=1 // pred_region
      _
    $region13: #{gpt2_decoder_forward.1} parent=1 // pred_fallthru
      _
    // Predicated region
    $region14: #{gpt2_decoder_forward.1} parent=1 // pred_check
      _
    $region15: #{gpt2_decoder_forward.1} parent=1 // pred_check_branch
      %22 = sbr.rel (0) target = $region17
    $region16: #{gpt2_decoder_forward.1} parent=1 // pred_region
      _
    $region17: #{gpt2_decoder_forward.1} parent=1 // pred_fallthru
      _
    // Predicated region
    $region18: #{gpt2_decoder_forward.1} parent=1 // pred_check
      _
    $region19: #{gpt2_decoder_forward.1} parent=1 // pred_check_branch
      %24 = sbr.rel (0) target = $region21
    $region20: #{gpt2_decoder_forward.1} parent=1 // pred_region
      _
    $region21: #{gpt2_decoder_forward.1} parent=1 // pred_fallthru
      _
    // Predicated region
    $region22: #{gpt2_decoder_forward.1} parent=1 // pred_check
      _
    $region23: #{gpt2_decoder_forward.1} parent=1 // pred_check_branch
      %26 = sbr.rel (0) target = $region25
    $region24: #{gpt2_decoder_forward.1} parent=1 // pred_region
      _
    $region25: #{gpt2_decoder_forward.1} parent=1 // pred_fallthru
      _
    // Predicated region
    $region26: #{gpt2_decoder_forward.1} parent=1 // pred_check
      _
    $region27: #{gpt2_decoder_forward.1} parent=1 // pred_check_branch
      %28 = sbr.rel (0) target = $region29
    $region28: #{gpt2_decoder_forward.1} parent=1 // pred_region
      _
    $region29: #{gpt2_decoder_forward.1} parent=1 // pred_fallthru
      _
    // Predicated region
    $region30: #{gpt2_decoder_forward.1} parent=1 // pred_check
      _
    $region31: #{gpt2_decoder_forward.1} parent=1 // pred_check_branch
      %30 = sbr.rel (0) target = $region33
    $region32: #{gpt2_decoder_forward.1} parent=1 // pred_region
      _
    $region33: #{gpt2_decoder_forward.1} parent=1 // pred_fallthru
      _
    // Predicated region
    $region34: #{gpt2_decoder_forward.1} parent=1 // pred_check
      _
    $region35: #{gpt2_decoder_forward.1} parent=1 // pred_check_branch
      %32 = sbr.rel (0) target = $region37
    $region36: #{gpt2_decoder_forward.1} parent=1 // pred_region
      _
    $region37: #{gpt2_decoder_forward.1} parent=1 // pred_fallthru
      _
    %v33 = vld [vmem:[%s0] sm:$0x3]
    %v34 = vld [vmem:[%s3] sm:$0xff]
    %v35 = vld [vmem:[%s3 + $0x8] sm:$0xff]
    %v36 = vld [vmem:[%s3 + $0x10] sm:$0x1]
    %v37 = vlaneseq
    %v38 = vshrl.u32 %v37, 7
    %v39 = vsub.s32 0, %v38
    %v40 = vrot.slane %v36, %v39
    %vm41 = vcmask 130048
    %v43 = vsel %vm41, %v33, 0
    %45 = vmatprep.subr.mxu0 0.0
    %46 = vmatpush1.msra.mxu0 0.0
    %47 = vmatprep.subr.mxu0 0.0
    %48 = vmatpush1.msra.mxu0 0.0
    %49 = vmatprep.subr.mxu0 0.0
    %50 = vmatpush1.msra.mxu0 0.0
    %51 = vmatprep.subr.mxu0 0.0
    %52 = vmatpush1.msra.mxu0 0.0
    %53 = vmatprep.subr.mxu0 0.0
    %54 = vmatpush1.msra.mxu0 0.0
    %55 = vmatprep.subr.mxu0 0.0
    %56 = vmatpush1.msra.mxu0 0.0
    %57 = vmatprep.subr.mxu0 0.0
    %58 = vmatpush1.msra.mxu0 0.0
    %59 = vmatprep.subr.mxu0 0.0
    %60 = vmatpush1.msra.mxu0 0.0
    %61 = vmatprep.subr.mxu0 0.0
    %62 = vmatpush1.msra.mxu0 0.0
    %63 = vmatprep.subr.mxu0 0.0
    %64 = vmatpush1.msra.mxu0 0.0
    %65 = vmatprep.subr.mxu0 0.0
    %66 = vmatpush1.msra.mxu0 0.0
    %67 = vmatprep.subr.mxu0 0.0
    %68 = vmatpush1.msra.mxu0 0.0
    %69 = vmatprep.subr.mxu0 0.0
    %70 = vmatpush1.msra.mxu0 0.0
    %71 = vmatprep.subr.mxu0 0.0
    %72 = vmatpush1.msra.mxu0 0.0
    %73 = vmatprep.subr.mxu0 0.0
    %74 = vmatpush1.msra.mxu0 %v35
    %75 = vmatprep.subr.mxu0 0.0
    %76 = vmatpush1.msra.mxu0 %v34
    %77 = vmatprep.subr.mxu0 0.0
    %78 = vmatpush2.msra.mxu0 0.0
    %79 = vmatprep.subr.mxu0 0.0
    %80 = vmatpush2.msra.mxu0 0.0
    %81 = vmatprep.subr.mxu0 0.0
    %82 = vmatpush2.msra.mxu0 0.0
    %83 = vmatprep.subr.mxu0 0.0
    %84 = vmatpush2.msra.mxu0 0.0
    %85 = vmatprep.subr.mxu0 0.0
    %86 = vmatpush2.msra.mxu0 0.0
    %87 = vmatprep.subr.mxu0 0.0
    %88 = vmatpush2.msra.mxu0 0.0
    %89 = vmatprep.subr.mxu0 0.0
    %90 = vmatpush2.msra.mxu0 0.0
    %91 = vmatprep.subr.mxu0 0.0
    %92 = vmatpush2.msra.mxu0 0.0
    %93 = vmatprep.subr.mxu0 0.0
    %94 = vmatpush2.msra.mxu0 0.0
    %95 = vmatprep.subr.mxu0 0.0
    %96 = vmatpush2.msra.mxu0 0.0
    %97 = vmatprep.subr.mxu0 0.0
    %98 = vmatpush2.msra.mxu0 0.0
    %99 = vmatprep.subr.mxu0 0.0
    %100 = vmatpush2.msra.mxu0 0.0
    %101 = vmatprep.subr.mxu0 0.0
    %102 = vmatpush2.msra.mxu0 0.0
    %103 = vmatprep.subr.mxu0 0.0
    %104 = vmatpush2.msra.mxu0 0.0
    %105 = vmatprep.subr.mxu0 0.0
    %106 = vmatpush2.msra.mxu0 0.0
    %107 = vmatprep.subr.mxu0 0.0
    %108 = vmatpush2.msra.mxu0 0.0
    %109 = vmatprep.mubr.f32.mxu0 0.0
    %110 = vmatmul.mubr.f32.gmra.mxu0 %v43
    %v111 = vpop.f32.mrf.mxu0
    %v112 = vadd.f32 %v40, %v111
    %v113 = vpop.f32.mrf.mxu0
    %114 = vdwg.mxu0
    %v115 = vtanh.pop %v112
    %v116 = vld [vmem:[%s4] sm:$0xff]
    %v117 = vld [vmem:[%s4 + $0x8] sm:$0xff]
    %v118 = vld [vmem:[%s4 + $0x10] sm:$0xff]
    %v119 = vld [vmem:[%s4 + $0x18] sm:$0xff]
    %v120 = vld [vmem:[%s4 + $0x20] sm:$0xff]
    %v121 = vld [vmem:[%s4 + $0x28] sm:$0xff]
    %v122 = vld [vmem:[%s4 + $0x30] sm:$0xff]
    %v123 = vld [vmem:[%s4 + $0x38] sm:$0xff]
    %v124 = vld [vmem:[%s4 + $0x40] sm:$0x1]
    %v125 = vlaneseq
    %v126 = vshrl.u32 %v125, 7
    %v127 = vsub.s32 0, %v126
    %v128 = vrot.slane %v124, %v127
    %vm129 = vcmask 523264
    %v131 = vsel %vm129, %v115, 0
    %133 = vmatprep.subr.mxu0 0.0
    %134 = vmatpush1.msra.mxu0 0.0
    %135 = vmatprep.subr.mxu0 0.0
    %136 = vmatpush1.msra.mxu0 0.0
    %137 = vmatprep.subr.mxu0 0.0
    %138 = vmatpush1.msra.mxu0 0.0
    %139 = vmatprep.subr.mxu0 0.0
    %140 = vmatpush1.msra.mxu0 0.0
    %141 = vmatprep.subr.mxu0 0.0
    %142 = vmatpush1.msra.mxu0 0.0
    %143 = vmatprep.subr.mxu0 0.0
    %144 = vmatpush1.msra.mxu0 0.0
    %145 = vmatprep.subr.mxu0 0.0
    %146 = vmatpush1.msra.mxu0 0.0
    %147 = vmatprep.subr.mxu0 0.0
    %148 = vmatpush1.msra.mxu0 0.0
    %149 = vmatprep.subr.mxu0 0.0
    %150 = vmatpush1.msra.mxu0 %v123
    %151 = vmatprep.subr.mxu0 0.0
    %152 = vmatpush1.msra.mxu0 %v122
    %153 = vmatprep.subr.mxu0 0.0
    %154 = vmatpush1.msra.mxu0 %v121
    %155 = vmatprep.subr.mxu0 0.0
    %156 = vmatpush1.msra.mxu0 %v120
    %157 = vmatprep.subr.mxu0 0.0
    %158 = vmatpush1.msra.mxu0 %v119
    %159 = vmatprep.subr.mxu0 0.0
    %160 = vmatpush1.msra.mxu0 %v118
    %161 = vmatprep.subr.mxu0 0.0
    %162 = vmatpush1.msra.mxu0 %v117
    %163 = vmatprep.subr.mxu0 0.0
    %164 = vmatpush1.msra.mxu0 %v116
    %165 = vmatprep.subr.mxu0 0.0
    %166 = vmatpush2.msra.mxu0 0.0
    %167 = vmatprep.subr.mxu0 0.0
    %168 = vmatpush2.msra.mxu0 0.0
    %169 = vmatprep.subr.mxu0 0.0
    %170 = vmatpush2.msra.mxu0 0.0
    %171 = vmatprep.subr.mxu0 0.0
    %172 = vmatpush2.msra.mxu0 0.0
    %173 = vmatprep.subr.mxu0 0.0
    %174 = vmatpush2.msra.mxu0 0.0
    %175 = vmatprep.subr.mxu0 0.0
    %176 = vmatpush2.msra.mxu0 0.0
    %177 = vmatprep.subr.mxu0 0.0
    %178 = vmatpush2.msra.mxu0 0.0
    %179 = vmatprep.subr.mxu0 0.0
    %180 = vmatpush2.msra.mxu0 0.0
    %181 = vmatprep.subr.mxu0 0.0
    %182 = vmatpush2.msra.mxu0 0.0
    %183 = vmatprep.subr.mxu0 0.0
    %184 = vmatpush2.msra.mxu0 0.0
    %185 = vmatprep.subr.mxu0 0.0
    %186 = vmatpush2.msra.mxu0 0.0
    %187 = vmatprep.subr.mxu0 0.0
    %188 = vmatpush2.msra.mxu0 0.0
    %189 = vmatprep.subr.mxu0 0.0
    %190 = vmatpush2.msra.mxu0 0.0
    %191 = vmatprep.subr.mxu0 0.0
    %192 = vmatpush2.msra.mxu0 0.0
    %193 = vmatprep.subr.mxu0 0.0
    %194 = vmatpush2.msra.mxu0 0.0
    %195 = vmatprep.subr.mxu0 0.0
    %196 = vmatpush2.msra.mxu0 0.0
    %197 = vmatprep.mubr.f32.mxu0 0.0
    %198 = vmatmul.mubr.f32.gmra.mxu0 %v131
    %v199 = vpop.f32.mrf.mxu0
    %v200 = vadd.f32 %v128, %v199
    %v201 = vpop.f32.mrf.mxu0
    %202 = vdwg.mxu0
    %211 = vrot.lane.b32.xlu0 %v116, 96
    %v212 = vpop.permute.xlu0 %211
    %213 = vrot.lane.b32.xlu0 %v117, 96
    %v214 = vpop.permute.xlu0 %213
    %215 = vrot.lane.b32.xlu0 %v118, 96
    %v216 = vpop.permute.xlu0 %215
    %217 = vrot.lane.b32.xlu0 %v119, 96
    %v218 = vpop.permute.xlu0 %217
    %219 = vrot.lane.b32.xlu0 %v120, 96
    %v220 = vpop.permute.xlu0 %219
    %221 = vrot.lane.b32.xlu0 %v121, 96
    %v222 = vpop.permute.xlu0 %221
    %223 = vrot.lane.b32.xlu0 %v122, 96
    %v224 = vpop.permute.xlu0 %223
    %225 = vrot.lane.b32.xlu0 %v123, 96
    %v226 = vpop.permute.xlu0 %225
    %236 = vrot.lane.b32.xlu0 %v128, 96
    %v237 = vpop.permute.xlu0 %236
    %239 = vmatprep.subr.mxu0 0.0
    %240 = vmatpush1.msra.mxu0 0.0
    %241 = vmatprep.subr.mxu0 0.0
    %242 = vmatpush1.msra.mxu0 0.0
    %243 = vmatprep.subr.mxu0 0.0
    %244 = vmatpush1.msra.mxu0 0.0
    %245 = vmatprep.subr.mxu0 0.0
    %246 = vmatpush1.msra.mxu0 0.0
    %247 = vmatprep.subr.mxu0 0.0
    %248 = vmatpush1.msra.mxu0 0.0
    %249 = vmatprep.subr.mxu0 0.0
    %250 = vmatpush1.msra.mxu0 0.0
    %251 = vmatprep.subr.mxu0 0.0
    %252 = vmatpush1.msra.mxu0 0.0
    %253 = vmatprep.subr.mxu0 0.0
    %254 = vmatpush1.msra.mxu0 0.0
    %255 = vmatprep.subr.mxu0 0.0
    %256 = vmatpush1.msra.mxu0 %v226
    %257 = vmatprep.subr.mxu0 0.0
    %258 = vmatpush1.msra.mxu0 %v224
    %259 = vmatprep.subr.mxu0 0.0
    %260 = vmatpush1.msra.mxu0 %v222
    %261 = vmatprep.subr.mxu0 0.0
    %262 = vmatpush1.msra.mxu0 %v220
    %263 = vmatprep.subr.mxu0 0.0
    %264 = vmatpush1.msra.mxu0 %v218
    %265 = vmatprep.subr.mxu0 0.0
    %266 = vmatpush1.msra.mxu0 %v216
    %267 = vmatprep.subr.mxu0 0.0
    %268 = vmatpush1.msra.mxu0 %v214
    %269 = vmatprep.subr.mxu0 0.0
    %270 = vmatpush1.msra.mxu0 %v212
    %271 = vmatprep.subr.mxu0 0.0
    %272 = vmatpush2.msra.mxu0 0.0
    %273 = vmatprep.subr.mxu0 0.0
    %274 = vmatpush2.msra.mxu0 0.0
    %275 = vmatprep.subr.mxu0 0.0
    %276 = vmatpush2.msra.mxu0 0.0
    %277 = vmatprep.subr.mxu0 0.0
    %278 = vmatpush2.msra.mxu0 0.0
    %279 = vmatprep.subr.mxu0 0.0
    %280 = vmatpush2.msra.mxu0 0.0
    %281 = vmatprep.subr.mxu0 0.0
    %282 = vmatpush2.msra.mxu0 0.0
    %283 = vmatprep.subr.mxu0 0.0
    %284 = vmatpush2.msra.mxu0 0.0
    %285 = vmatprep.subr.mxu0 0.0
    %286 = vmatpush2.msra.mxu0 0.0
    %287 = vmatprep.subr.mxu0 0.0
    %288 = vmatpush2.msra.mxu0 0.0
    %289 = vmatprep.subr.mxu0 0.0
    %290 = vmatpush2.msra.mxu0 0.0
    %291 = vmatprep.subr.mxu0 0.0
    %292 = vmatpush2.msra.mxu0 0.0
    %293 = vmatprep.subr.mxu0 0.0
    %294 = vmatpush2.msra.mxu0 0.0
    %295 = vmatprep.subr.mxu0 0.0
    %296 = vmatpush2.msra.mxu0 0.0
    %297 = vmatprep.subr.mxu0 0.0
    %298 = vmatpush2.msra.mxu0 0.0
    %299 = vmatprep.subr.mxu0 0.0
    %300 = vmatpush2.msra.mxu0 0.0
    %301 = vmatprep.subr.mxu0 0.0
    %302 = vmatpush2.msra.mxu0 0.0
    %303 = vmatprep.mubr.f32.mxu0 0.0
    %304 = vmatmul.mubr.f32.gmra.mxu0 %v131
    %v305 = vpop.f32.mrf.mxu0
    %v306 = vadd.f32 %v237, %v305
    %v307 = vpop.f32.mrf.mxu0
    %308 = vdwg.mxu0
    %309 = vrot.lane.b32.xlu0 %v116, 64
    %v310 = vpop.permute.xlu0 %309
    %311 = vrot.lane.b32.xlu0 %v117, 64
    %v312 = vpop.permute.xlu0 %311
    %313 = vrot.lane.b32.xlu0 %v118, 64
    %v314 = vpop.permute.xlu0 %313
    %315 = vrot.lane.b32.xlu0 %v119, 64
    %v316 = vpop.permute.xlu0 %315
    %317 = vrot.lane.b32.xlu0 %v120, 64
    %v318 = vpop.permute.xlu0 %317
    %319 = vrot.lane.b32.xlu0 %v121, 64
    %v320 = vpop.permute.xlu0 %319
    %321 = vrot.lane.b32.xlu0 %v122, 64
    %v322 = vpop.permute.xlu0 %321
    %323 = vrot.lane.b32.xlu0 %v123, 64
    %v324 = vpop.permute.xlu0 %323
    %333 = vrot.lane.b32.xlu0 %v128, 64
    %v334 = vpop.permute.xlu0 %333
    %336 = vmatprep.subr.mxu0 0.0
    %337 = vmatpush1.msra.mxu0 0.0
    %338 = vmatprep.subr.mxu0 0.0
    %339 = vmatpush1.msra.mxu0 0.0
    %340 = vmatprep.subr.mxu0 0.0
    %341 = vmatpush1.msra.mxu0 0.0
    %342 = vmatprep.subr.mxu0 0.0
    %343 = vmatpush1.msra.mxu0 0.0
    %344 = vmatprep.subr.mxu0 0.0
    %345 = vmatpush1.msra.mxu0 0.0
    %346 = vmatprep.subr.mxu0 0.0
    %347 = vmatpush1.msra.mxu0 0.0
    %348 = vmatprep.subr.mxu0 0.0
    %349 = vmatpush1.msra.mxu0 0.0
    %350 = vmatprep.subr.mxu0 0.0
    %351 = vmatpush1.msra.mxu0 0.0
    %352 = vmatprep.subr.mxu0 0.0
    %353 = vmatpush1.msra.mxu0 %v324
    %354 = vmatprep.subr.mxu0 0.0
    %355 = vmatpush1.msra.mxu0 %v322
    %356 = vmatprep.subr.mxu0 0.0
    %357 = vmatpush1.msra.mxu0 %v320
    %358 = vmatprep.subr.mxu0 0.0
    %359 = vmatpush1.msra.mxu0 %v318
    %360 = vmatprep.subr.mxu0 0.0
    %361 = vmatpush1.msra.mxu0 %v316
    %362 = vmatprep.subr.mxu0 0.0
    %363 = vmatpush1.msra.mxu0 %v314
    %364 = vmatprep.subr.mxu0 0.0
    %365 = vmatpush1.msra.mxu0 %v312
    %366 = vmatprep.subr.mxu0 0.0
    %367 = vmatpush1.msra.mxu0 %v310
    %368 = vmatprep.subr.mxu0 0.0
    %369 = vmatpush2.msra.mxu0 0.0
    %370 = vmatprep.subr.mxu0 0.0
    %371 = vmatpush2.msra.mxu0 0.0
    %372 = vmatprep.subr.mxu0 0.0
    %373 = vmatpush2.msra.mxu0 0.0
    %374 = vmatprep.subr.mxu0 0.0
    %375 = vmatpush2.msra.mxu0 0.0
    %376 = vmatprep.subr.mxu0 0.0
    %377 = vmatpush2.msra.mxu0 0.0
    %378 = vmatprep.subr.mxu0 0.0
    %379 = vmatpush2.msra.mxu0 0.0
    %380 = vmatprep.subr.mxu0 0.0
    %381 = vmatpush2.msra.mxu0 0.0
    %382 = vmatprep.subr.mxu0 0.0
    %383 = vmatpush2.msra.mxu0 0.0
    %384 = vmatprep.subr.mxu0 0.0
    %385 = vmatpush2.msra.mxu0 0.0
    %386 = vmatprep.subr.mxu0 0.0
    %387 = vmatpush2.msra.mxu0 0.0
    %388 = vmatprep.subr.mxu0 0.0
    %389 = vmatpush2.msra.mxu0 0.0
    %390 = vmatprep.subr.mxu0 0.0
    %391 = vmatpush2.msra.mxu0 0.0
    %392 = vmatprep.subr.mxu0 0.0
    %393 = vmatpush2.msra.mxu0 0.0
    %394 = vmatprep.subr.mxu0 0.0
    %395 = vmatpush2.msra.mxu0 0.0
    %396 = vmatprep.subr.mxu0 0.0
    %397 = vmatpush2.msra.mxu0 0.0
    %398 = vmatprep.subr.mxu0 0.0
    %399 = vmatpush2.msra.mxu0 0.0
    %400 = vmatprep.mubr.f32.mxu0 0.0
    %401 = vmatmul.mubr.f32.gmra.mxu0 %v131
    %v402 = vpop.f32.mrf.mxu0
    %v403 = vadd.f32 %v334, %v402
    %v404 = vpop.f32.mrf.mxu0
    %405 = vdwg.mxu0
    %406 = vrot.lane.b32.xlu0 %v116, 32
    %v407 = vpop.permute.xlu0 %406
    %408 = vrot.lane.b32.xlu0 %v117, 32
    %v409 = vpop.permute.xlu0 %408
    %410 = vrot.lane.b32.xlu0 %v118, 32
    %v411 = vpop.permute.xlu0 %410
    %412 = vrot.lane.b32.xlu0 %v119, 32
    %v413 = vpop.permute.xlu0 %412
    %414 = vrot.lane.b32.xlu0 %v120, 32
    %v415 = vpop.permute.xlu0 %414
    %416 = vrot.lane.b32.xlu0 %v121, 32
    %v417 = vpop.permute.xlu0 %416
    %418 = vrot.lane.b32.xlu0 %v122, 32
    %v419 = vpop.permute.xlu0 %418
    %420 = vrot.lane.b32.xlu0 %v123, 32
    %v421 = vpop.permute.xlu0 %420
    %430 = vrot.lane.b32.xlu0 %v128, 32
    %v431 = vpop.permute.xlu0 %430
    %433 = vmatprep.subr.mxu0 0.0
    %434 = vmatpush1.msra.mxu0 0.0
    %435 = vmatprep.subr.mxu0 0.0
    %436 = vmatpush1.msra.mxu0 0.0
    %437 = vmatprep.subr.mxu0 0.0
    %438 = vmatpush1.msra.mxu0 0.0
    %439 = vmatprep.subr.mxu0 0.0
    %440 = vmatpush1.msra.mxu0 0.0
    %441 = vmatprep.subr.mxu0 0.0
    %442 = vmatpush1.msra.mxu0 0.0
    %443 = vmatprep.subr.mxu0 0.0
    %444 = vmatpush1.msra.mxu0 0.0
    %445 = vmatprep.subr.mxu0 0.0
    %446 = vmatpush1.msra.mxu0 0.0
    %447 = vmatprep.subr.mxu0 0.0
    %448 = vmatpush1.msra.mxu0 0.0
    %449 = vmatprep.subr.mxu0 0.0
    %450 = vmatpush1.msra.mxu0 %v421
    %451 = vmatprep.subr.mxu0 0.0
    %452 = vmatpush1.msra.mxu0 %v419
    %453 = vmatprep.subr.mxu0 0.0
    %454 = vmatpush1.msra.mxu0 %v417
    %455 = vmatprep.subr.mxu0 0.0
    %456 = vmatpush1.msra.mxu0 %v415
    %457 = vmatprep.subr.mxu0 0.0
    %458 = vmatpush1.msra.mxu0 %v413
    %459 = vmatprep.subr.mxu0 0.0
    %460 = vmatpush1.msra.mxu0 %v411
    %461 = vmatprep.subr.mxu0 0.0
    %462 = vmatpush1.msra.mxu0 %v409
    %463 = vmatprep.subr.mxu0 0.0
    %464 = vmatpush1.msra.mxu0 %v407
    %465 = vmatprep.subr.mxu0 0.0
    %466 = vmatpush2.msra.mxu0 0.0
    %467 = vmatprep.subr.mxu0 0.0
    %468 = vmatpush2.msra.mxu0 0.0
    %469 = vmatprep.subr.mxu0 0.0
    %470 = vmatpush2.msra.mxu0 0.0
    %471 = vmatprep.subr.mxu0 0.0
    %472 = vmatpush2.msra.mxu0 0.0
    %473 = vmatprep.subr.mxu0 0.0
    %474 = vmatpush2.msra.mxu0 0.0
    %475 = vmatprep.subr.mxu0 0.0
    %476 = vmatpush2.msra.mxu0 0.0
    %477 = vmatprep.subr.mxu0 0.0
    %478 = vmatpush2.msra.mxu0 0.0
    %479 = vmatprep.subr.mxu0 0.0
    %480 = vmatpush2.msra.mxu0 0.0
    %481 = vmatprep.subr.mxu0 0.0
    %482 = vmatpush2.msra.mxu0 0.0
    %483 = vmatprep.subr.mxu0 0.0
    %484 = vmatpush2.msra.mxu0 0.0
    %485 = vmatprep.subr.mxu0 0.0
    %486 = vmatpush2.msra.mxu0 0.0
    %487 = vmatprep.subr.mxu0 0.0
    %488 = vmatpush2.msra.mxu0 0.0
    %489 = vmatprep.subr.mxu0 0.0
    %490 = vmatpush2.msra.mxu0 0.0
    %491 = vmatprep.subr.mxu0 0.0
    %492 = vmatpush2.msra.mxu0 0.0
    %493 = vmatprep.subr.mxu0 0.0
    %494 = vmatpush2.msra.mxu0 0.0
    %495 = vmatprep.subr.mxu0 0.0
    %496 = vmatpush2.msra.mxu0 0.0
    %497 = vmatprep.mubr.f32.mxu0 0.0
    %498 = vmatmul.mubr.f32.gmra.mxu0 %v131
    %v499 = vpop.f32.mrf.mxu0
    %v500 = vadd.f32 %v431, %v499
    %v501 = vpop.f32.mrf.mxu0
    %502 = vdwg.mxu0
    %v503 = vld [vmem:[%s1] sm:$0xff]
    %v504 = vld [vmem:[%s1 + $0x8] sm:$0xff]
    %v506 = vrot.slane %v306, 6
    %v509 = vrot.slane %v403, 4
    %v512 = vrot.slane %v500, 2
    %vm514 = vcmask 1041408
    %v515 = vsel %vm514, %v200, %v506
    %vm516 = vcmask 1043456
    %v517 = vsel %vm516, %v515, %v509
    %vm518 = vcmask 1045504
    %v519 = vsel %vm518, %v517, %v512
    %v520 = vld [vmem:[%s2] sm:$0xff]
    %v521 = vld [vmem:[%s2 + $0x8] sm:$0xff]
    %v522 = vld [vmem:[%s2 + $0x10] sm:$0xff]
    %v523 = vld [vmem:[%s5] sm:$0x1]
    %v524 = vld [vmem:[%s5 + $0x1] sm:$0x1]
    %vm525 = vcmask 261120
    %v526 = vsel %vm525, %v519, 0.0
    %527 = vadd.xlane.f32.xlu0 %v526
    %v528 = vpop.xlane.xlu0 %527
    %v529 = vsel %vm525, %v503, 0.0
    %530 = vadd.xlane.f32.xlu0 %v529
    %v531 = vpop.xlane.xlu0 %530
    %v532 = vsel %vm525, %v504, 0.0
    %533 = vadd.xlane.f32.xlu0 %v532
    %v534 = vpop.xlane.xlu0 %533
    %v535 = vrcp.pop 32.0
    %v536 = vmul.f32 %v528, %v535
    %v537 = vmul.f32 %v531, %v535
    %v538 = vmul.f32 %v534, %v535
    %v539 = vsub.f32 %v519, %v536
    %v540 = vsub.f32 %v503, %v537
    %v541 = vsub.f32 %v504, %v538
    %v542 = vmul.f32 %v539, %v539
    %v543 = vmul.f32 %v540, %v540
    %v544 = vmul.f32 %v541, %v541
    %v545 = vsel %vm525, %v542, 0.0
    %546 = vadd.xlane.f32.xlu0 %v545
    %v547 = vpop.xlane.xlu0 %546
    %v548 = vsel %vm525, %v543, 0.0
    %549 = vadd.xlane.f32.xlu0 %v548
    %v550 = vpop.xlane.xlu0 %549
    %v551 = vsel %vm525, %v544, 0.0
    %552 = vadd.xlane.f32.xlu0 %v551
    %v553 = vpop.xlane.xlu0 %552
    %v554 = vmul.f32 %v547, %v535
    %v555 = vmul.f32 %v550, %v535
    %v556 = vmul.f32 %v553, %v535
    %v557 = vadd.f32 %v554, 1e-05
    %v558 = vadd.f32 %v555, 1e-05
    %v559 = vadd.f32 %v556, 1e-05
    %v560 = vrsqrt.pop %v557
    %v561 = vrsqrt.pop %v558
    %v562 = vrsqrt.pop %v559
    %v563 = vmul.f32 %v539, %v560
    %v564 = vmul.f32 %v540, %v561
    %v565 = vmul.f32 %v541, %v562
    %v566 = vlaneseq
    %v567 = vshrl.u32 %v566, 7
    %v568 = vsub.s32 0, %v567
    %v569 = vrot.slane %v523, %v568
    %v570 = vmul.f32 %v563, %v569
    %v571 = vmul.f32 %v564, %v569
    %v572 = vmul.f32 %v565, %v569
    %v573 = vlaneseq
    %v574 = vshrl.u32 %v573, 7
    %v575 = vsub.s32 0, %v574
    %v576 = vrot.slane %v524, %v575
    %v577 = vadd.f32 %v570, %v576
    %v578 = vadd.f32 %v571, %v576
    %v579 = vadd.f32 %v572, %v576
    %v580 = vld [vmem:[%s6] sm:$0xff]
    %v581 = vld [vmem:[%s6 + $0x10] sm:$0xff]
    %v582 = vld [vmem:[%s6 + $0x20] sm:$0xff]
    %v583 = vld [vmem:[%s6 + $0x30] sm:$0xff]
    %v584 = vld [vmem:[%s6 + $0x40] ss:$0 sm:$0xff]
    %v586 = vsel %vm525, %v577, 0
    %v589 = vsel %vm525, %v578, 0
    %v592 = vsel %vm525, %v579, 0
    %594 = vmatprep.subr.mxu0 0.0
    %595 = vmatpush1.msra.mxu0 0.0
    %596 = vmatprep.subr.mxu0 0.0
    %597 = vmatpush1.msra.mxu0 0.0
    %598 = vmatprep.subr.mxu0 0.0
    %599 = vmatpush1.msra.mxu0 0.0
    %600 = vmatprep.subr.mxu0 0.0
    %601 = vmatpush1.msra.mxu0 0.0
    %602 = vmatprep.subr.mxu0 0.0
    %603 = vmatpush1.msra.mxu0 0.0
    %604 = vmatprep.subr.mxu0 0.0
    %605 = vmatpush1.msra.mxu0 0.0
    %606 = vmatprep.subr.mxu0 0.0
    %607 = vmatpush1.msra.mxu0 0.0
    %608 = vmatprep.subr.mxu0 0.0
    %609 = vmatpush1.msra.mxu0 0.0
    %610 = vmatprep.subr.mxu0 0.0
    %611 = vmatpush1.msra.mxu0 0.0
    %612 = vmatprep.subr.mxu0 0.0
    %613 = vmatpush1.msra.mxu0 0.0
    %614 = vmatprep.subr.mxu0 0.0
    %615 = vmatpush1.msra.mxu0 0.0
    %616 = vmatprep.subr.mxu0 0.0
    %617 = vmatpush1.msra.mxu0 0.0
    %618 = vmatprep.subr.mxu0 0.0
    %619 = vmatpush1.msra.mxu0 %v583
    %620 = vmatprep.subr.mxu0 0.0
    %621 = vmatpush1.msra.mxu0 %v582
    %622 = vmatprep.subr.mxu0 0.0
    %623 = vmatpush1.msra.mxu0 %v581
    %624 = vmatprep.subr.mxu0 0.0
    %625 = vmatpush1.msra.mxu0 %v580
    %626 = vmatprep.subr.mxu0 0.0
    %627 = vmatpush2.msra.mxu0 0.0
    %628 = vmatprep.subr.mxu0 0.0
    %629 = vmatpush2.msra.mxu0 0.0
    %630 = vmatprep.subr.mxu0 0.0
    %631 = vmatpush2.msra.mxu0 0.0
    %632 = vmatprep.subr.mxu0 0.0
    %633 = vmatpush2.msra.mxu0 0.0
    %634 = vmatprep.subr.mxu0 0.0
    %635 = vmatpush2.msra.mxu0 0.0
    %636 = vmatprep.subr.mxu0 0.0
    %637 = vmatpush2.msra.mxu0 0.0
    %638 = vmatprep.subr.mxu0 0.0
    %639 = vmatpush2.msra.mxu0 0.0
    %640 = vmatprep.subr.mxu0 0.0
    %641 = vmatpush2.msra.mxu0 0.0
    %642 = vmatprep.subr.mxu0 0.0
    %643 = vmatpush2.msra.mxu0 0.0
    %644 = vmatprep.subr.mxu0 0.0
    %645 = vmatpush2.msra.mxu0 0.0
    %646 = vmatprep.subr.mxu0 0.0
    %647 = vmatpush2.msra.mxu0 0.0
    %648 = vmatprep.subr.mxu0 0.0
    %649 = vmatpush2.msra.mxu0 0.0
    %650 = vmatprep.subr.mxu0 0.0
    %651 = vmatpush2.msra.mxu0 0.0
    %652 = vmatprep.subr.mxu0 0.0
    %653 = vmatpush2.msra.mxu0 0.0
    %654 = vmatprep.subr.mxu0 0.0
    %655 = vmatpush2.msra.mxu0 0.0
    %656 = vmatprep.subr.mxu0 0.0
    %657 = vmatpush2.msra.mxu0 0.0
    %658 = vmatprep.mubr.f32.mxu0 0.0
    %659 = vmatmul.mubr.f32.gmra.mxu0 %v586
    %v660 = vpop.f32.mrf.mxu0
    %v661 = vadd.f32 %v584, %v660
    %v662 = vpop.f32.mrf.mxu0
    %663 = vmatprep.mubr.f32.mxu0 0.0
    %664 = vmatmul.mubr.f32.gmra.mxu0 %v589
    %v665 = vpop.f32.mrf.mxu0
    %v666 = vadd.f32 %v584, %v665
    %v667 = vpop.f32.mrf.mxu0
    %668 = vmatprep.mubr.f32.mxu0 0.0
    %669 = vmatmul.mubr.f32.gmra.mxu0 %v592
    %v670 = vpop.f32.mrf.mxu0
    %v671 = vadd.f32 %v584, %v670
    %v672 = vpop.f32.mrf.mxu0
    %673 = vdwg.mxu0
    %v674 = vmul.f32 %v661, 0.35355338
    %v675 = vmul.f32 %v666, 0.35355338
    %v676 = vmul.f32 %v671, 0.35355338
    %680 = vrot.lane.b32.xlu0 %v661, 96
    %v681 = vpop.permute.xlu0 %680
    %682 = vrot.lane.b32.xlu0 %v666, 96
    %v683 = vpop.permute.xlu0 %682
    %684 = vrot.lane.b32.xlu0 %v671, 96
    %v685 = vpop.permute.xlu0 %684
    %vm686 = vcmask 64512
    %v688 = vsel %vm686, %v674, 0
    %v691 = vsel %vm686, %v675, 0
    %v694 = vsel %vm686, %v676, 0
    %v696 = vsel %vm686, %v681, 0
    %v698 = vsel %vm686, %v683, 0
    %v700 = vsel %vm686, %v685, 0
    %702 = vmatprep.subr.mxu0 0.0
    %703 = vmatpush1.xpose.msra.mxu0 0.0
    %704 = vmatprep.subr.mxu0 0.0
    %705 = vmatpush1.xpose.msra.mxu0 0.0
    %706 = vmatprep.subr.mxu0 0.0
    %707 = vmatpush1.xpose.msra.mxu0 0.0
    %708 = vmatprep.subr.mxu0 0.0
    %709 = vmatpush1.xpose.msra.mxu0 0.0
    %710 = vmatprep.subr.mxu0 0.0
    %711 = vmatpush1.xpose.msra.mxu0 0.0
    %712 = vmatprep.subr.mxu0 0.0
    %713 = vmatpush1.xpose.msra.mxu0 0.0
    %714 = vmatprep.subr.mxu0 0.0
    %715 = vmatpush1.xpose.msra.mxu0 0.0
    %716 = vmatprep.subr.mxu0 0.0
    %717 = vmatpush1.xpose.msra.mxu0 0.0
    %718 = vmatprep.subr.mxu0 0.0
    %719 = vmatpush1.xpose.msra.mxu0 0.0
    %720 = vmatprep.subr.mxu0 0.0
    %721 = vmatpush1.xpose.msra.mxu0 0.0
    %722 = vmatprep.subr.mxu0 0.0
    %723 = vmatpush1.xpose.msra.mxu0 0.0
    %724 = vmatprep.subr.mxu0 0.0
    %725 = vmatpush1.xpose.msra.mxu0 0.0
    %726 = vmatprep.subr.mxu0 0.0
    %727 = vmatpush1.xpose.msra.mxu0 0.0
    %728 = vmatprep.subr.mxu0 0.0
    %729 = vmatpush1.xpose.msra.mxu0 %v700
    %730 = vmatprep.subr.mxu0 0.0
    %731 = vmatpush1.xpose.msra.mxu0 %v698
    %732 = vmatprep.subr.mxu0 0.0
    %733 = vmatpush1.xpose.msra.mxu0 %v696
    %734 = vmatprep.subr.mxu0 0.0
    %735 = vmatpush2.xpose.msra.mxu0 0.0
    %736 = vmatprep.subr.mxu0 0.0
    %737 = vmatpush2.xpose.msra.mxu0 0.0
    %738 = vmatprep.subr.mxu0 0.0
    %739 = vmatpush2.xpose.msra.mxu0 0.0
    %740 = vmatprep.subr.mxu0 0.0
    %741 = vmatpush2.xpose.msra.mxu0 0.0
    %742 = vmatprep.subr.mxu0 0.0
    %743 = vmatpush2.xpose.msra.mxu0 0.0
    %744 = vmatprep.subr.mxu0 0.0
    %745 = vmatpush2.xpose.msra.mxu0 0.0
    %746 = vmatprep.subr.mxu0 0.0
    %747 = vmatpush2.xpose.msra.mxu0 0.0
    %748 = vmatprep.subr.mxu0 0.0
    %749 = vmatpush2.xpose.msra.mxu0 0.0
    %750 = vmatprep.subr.mxu0 0.0
    %751 = vmatpush2.xpose.msra.mxu0 0.0
    %752 = vmatprep.subr.mxu0 0.0
    %753 = vmatpush2.xpose.msra.mxu0 0.0
    %754 = vmatprep.subr.mxu0 0.0
    %755 = vmatpush2.xpose.msra.mxu0 0.0
    %756 = vmatprep.subr.mxu0 0.0
    %757 = vmatpush2.xpose.msra.mxu0 0.0
    %758 = vmatprep.subr.mxu0 0.0
    %759 = vmatpush2.xpose.msra.mxu0 0.0
    %760 = vmatprep.subr.mxu0 0.0
    %761 = vmatpush2.xpose.msra.mxu0 0.0
    %762 = vmatprep.subr.mxu0 0.0
    %763 = vmatpush2.xpose.msra.mxu0 0.0
    %764 = vmatprep.subr.mxu0 0.0
    %765 = vmatpush2.xpose.msra.mxu0 0.0
    %766 = vmatprep.mubr.f32.mxu0 0.0
    %767 = vmatmul.mubr.f32.gmra.mxu0 %v688
    %v768 = vpop.f32.mrf.mxu0
    %v769 = vadd.f32 %v520, %v768
    %v770 = vpop.f32.mrf.mxu0
    %771 = vmatprep.mubr.f32.mxu0 0.0
    %772 = vmatmul.mubr.f32.gmra.mxu0 %v691
    %v773 = vpop.f32.mrf.mxu0
    %v774 = vadd.f32 %v521, %v773
    %v775 = vpop.f32.mrf.mxu0
    %776 = vmatprep.mubr.f32.mxu0 0.0
    %777 = vmatmul.mubr.f32.gmra.mxu0 %v694
    %v778 = vpop.f32.mrf.mxu0
    %v779 = vadd.f32 %v522, %v778
    %v780 = vpop.f32.mrf.mxu0
    %781 = vdwg.mxu0
    %vm782 = vcmask 195584
    %v783 = vsel %vm782, %v769, -inf
    %784 = vmax.xlane.f32.xlu0 %v783
    %v785 = vpop.xlane.xlu0 %784
    %v786 = vsel %vm782, %v774, -inf
    %787 = vmax.xlane.f32.xlu0 %v786
    %v788 = vpop.xlane.xlu0 %787
    %v789 = vsel %vm782, %v779, -inf
    %790 = vmax.xlane.f32.xlu0 %v789
    %v791 = vpop.xlane.xlu0 %790
    %v792 = vsub.f32 %v769, %v785
    %v793 = vsub.f32 %v774, %v788
    %v794 = vsub.f32 %v779, %v791
    %v795 = vmul.f32 %v792, 1.442695
    %v796 = vpow.pop %v795
    %v797 = vmul.f32 %v793, 1.442695
    %v798 = vpow.pop %v797
    %v799 = vmul.f32 %v794, 1.442695
    %v800 = vpow.pop %v799
    %v801 = vsel %vm782, %v796, 0.0
    %802 = vadd.xlane.f32.xlu0 %v801
    %v803 = vpop.xlane.xlu0 %802
    %v804 = vsel %vm782, %v798, 0.0
    %805 = vadd.xlane.f32.xlu0 %v804
    %v806 = vpop.xlane.xlu0 %805
    %v807 = vsel %vm782, %v800, 0.0
    %808 = vadd.xlane.f32.xlu0 %v807
    %v809 = vpop.xlane.xlu0 %808
    %v810 = vrcp.pop %v803
    %v811 = vrcp.pop %v806
    %v812 = vrcp.pop %v809
    %v813 = vmul.f32 %v796, %v810
    %v814 = vmul.f32 %v798, %v811
    %v815 = vmul.f32 %v800, %v812
    %816 = vrot.lane.b32.xlu0 %v661, 64
    %v817 = vpop.permute.xlu0 %816
    %818 = vrot.lane.b32.xlu0 %v666, 64
    %v819 = vpop.permute.xlu0 %818
    %820 = vrot.lane.b32.xlu0 %v671, 64
    %v821 = vpop.permute.xlu0 %820
    %v826 = vsel %vm782, %v813, 0
    %v829 = vsel %vm782, %v814, 0
    %v832 = vsel %vm782, %v815, 0
    %834 = vmatprep.subr.mxu0 0.0
    %835 = vmatpush1.msra.mxu0 0.0
    %836 = vmatprep.subr.mxu0 0.0
    %837 = vmatpush1.msra.mxu0 0.0
    %838 = vmatprep.subr.mxu0 0.0
    %839 = vmatpush1.msra.mxu0 0.0
    %840 = vmatprep.subr.mxu0 0.0
    %841 = vmatpush1.msra.mxu0 0.0
    %842 = vmatprep.subr.mxu0 0.0
    %843 = vmatpush1.msra.mxu0 0.0
    %844 = vmatprep.subr.mxu0 0.0
    %845 = vmatpush1.msra.mxu0 0.0
    %846 = vmatprep.subr.mxu0 0.0
    %847 = vmatpush1.msra.mxu0 0.0
    %848 = vmatprep.subr.mxu0 0.0
    %849 = vmatpush1.msra.mxu0 0.0
    %850 = vmatprep.subr.mxu0 0.0
    %851 = vmatpush1.msra.mxu0 0.0
    %852 = vmatprep.subr.mxu0 0.0
    %853 = vmatpush1.msra.mxu0 0.0
    %854 = vmatprep.subr.mxu0 0.0
    %855 = vmatpush1.msra.mxu0 0.0
    %856 = vmatprep.subr.mxu0 0.0
    %857 = vmatpush1.msra.mxu0 0.0
    %858 = vmatprep.subr.mxu0 0.0
    %859 = vmatpush1.msra.mxu0 0.0
    %860 = vmatprep.subr.mxu0 0.0
    %861 = vmatpush1.msra.mxu0 %v821
    %862 = vmatprep.subr.mxu0 0.0
    %863 = vmatpush1.msra.mxu0 %v819
    %864 = vmatprep.subr.mxu0 0.0
    %865 = vmatpush1.msra.mxu0 %v817
    %866 = vmatprep.subr.mxu0 0.0
    %867 = vmatpush2.msra.mxu0 0.0
    %868 = vmatprep.subr.mxu0 0.0
    %869 = vmatpush2.msra.mxu0 0.0
    %870 = vmatprep.subr.mxu0 0.0
    %871 = vmatpush2.msra.mxu0 0.0
    %872 = vmatprep.subr.mxu0 0.0
    %873 = vmatpush2.msra.mxu0 0.0
    %874 = vmatprep.subr.mxu0 0.0
    %875 = vmatpush2.msra.mxu0 0.0
    %876 = vmatprep.subr.mxu0 0.0
    %877 = vmatpush2.msra.mxu0 0.0
    %878 = vmatprep.subr.mxu0 0.0
    %879 = vmatpush2.msra.mxu0 0.0
    %880 = vmatprep.subr.mxu0 0.0
    %881 = vmatpush2.msra.mxu0 0.0
    %882 = vmatprep.subr.mxu0 0.0
    %883 = vmatpush2.msra.mxu0 0.0
    %884 = vmatprep.subr.mxu0 0.0
    %885 = vmatpush2.msra.mxu0 0.0
    %886 = vmatprep.subr.mxu0 0.0
    %887 = vmatpush2.msra.mxu0 0.0
    %888 = vmatprep.subr.mxu0 0.0
    %889 = vmatpush2.msra.mxu0 0.0
    %890 = vmatprep.subr.mxu0 0.0
    %891 = vmatpush2.msra.mxu0 0.0
    %892 = vmatprep.subr.mxu0 0.0
    %893 = vmatpush2.msra.mxu0 0.0
    %894 = vmatprep.subr.mxu0 0.0
    %895 = vmatpush2.msra.mxu0 0.0
    %896 = vmatprep.subr.mxu0 0.0
    %897 = vmatpush2.msra.mxu0 0.0
    %898 = vmatprep.mubr.f32.mxu0 0.0
    %899 = vmatmul.mubr.f32.gmra.mxu0 %v826
    %v900 = vpop.f32.mrf.mxu0
    %v901 = vadd.f32 0.0, %v900
    %v902 = vpop.f32.mrf.mxu0
    %903 = vmatprep.mubr.f32.mxu0 0.0
    %904 = vmatmul.mubr.f32.gmra.mxu0 %v829
    %v905 = vpop.f32.mrf.mxu0
    %v906 = vadd.f32 0.0, %v905
    %v907 = vpop.f32.mrf.mxu0
    %908 = vmatprep.mubr.f32.mxu0 0.0
    %909 = vmatmul.mubr.f32.gmra.mxu0 %v832
    %v910 = vpop.f32.mrf.mxu0
    %v911 = vadd.f32 0.0, %v910
    %v912 = vpop.f32.mrf.mxu0
    %913 = vdwg.mxu0
    %914 = vrot.lane.b32.xlu0 %v674, 120
    %v915 = vpop.permute.xlu0 %914
    %916 = vrot.lane.b32.xlu0 %v675, 120
    %v917 = vpop.permute.xlu0 %916
    %918 = vrot.lane.b32.xlu0 %v676, 120
    %v919 = vpop.permute.xlu0 %918
    %920 = vrot.lane.b32.xlu0 %v661, 88
    %v921 = vpop.permute.xlu0 %920
    %922 = vrot.lane.b32.xlu0 %v666, 88
    %v923 = vpop.permute.xlu0 %922
    %924 = vrot.lane.b32.xlu0 %v671, 88
    %v925 = vpop.permute.xlu0 %924
    %v926 = vsel %vm686, %v915, 0
    %v928 = vsel %vm686, %v917, 0
    %v930 = vsel %vm686, %v919, 0
    %v932 = vsel %vm686, %v921, 0
    %v934 = vsel %vm686, %v923, 0
    %v936 = vsel %vm686, %v925, 0
    %938 = vmatprep.subr.mxu0 0.0
    %939 = vmatpush1.xpose.msra.mxu0 0.0
    %940 = vmatprep.subr.mxu0 0.0
    %941 = vmatpush1.xpose.msra.mxu0 0.0
    %942 = vmatprep.subr.mxu0 0.0
    %943 = vmatpush1.xpose.msra.mxu0 0.0
    %944 = vmatprep.subr.mxu0 0.0
    %945 = vmatpush1.xpose.msra.mxu0 0.0
    %946 = vmatprep.subr.mxu0 0.0
    %947 = vmatpush1.xpose.msra.mxu0 0.0
    %948 = vmatprep.subr.mxu0 0.0
    %949 = vmatpush1.xpose.msra.mxu0 0.0
    %950 = vmatprep.subr.mxu0 0.0
    %951 = vmatpush1.xpose.msra.mxu0 0.0
    %952 = vmatprep.subr.mxu0 0.0
    %953 = vmatpush1.xpose.msra.mxu0 0.0
    %954 = vmatprep.subr.mxu0 0.0
    %955 = vmatpush1.xpose.msra.mxu0 0.0
    %956 = vmatprep.subr.mxu0 0.0
    %957 = vmatpush1.xpose.msra.mxu0 0.0
    %958 = vmatprep.subr.mxu0 0.0
    %959 = vmatpush1.xpose.msra.mxu0 0.0
    %960 = vmatprep.subr.mxu0 0.0
    %961 = vmatpush1.xpose.msra.mxu0 0.0
    %962 = vmatprep.subr.mxu0 0.0
    %963 = vmatpush1.xpose.msra.mxu0 0.0
    %964 = vmatprep.subr.mxu0 0.0
    %965 = vmatpush1.xpose.msra.mxu0 %v936
    %966 = vmatprep.subr.mxu0 0.0
    %967 = vmatpush1.xpose.msra.mxu0 %v934
    %968 = vmatprep.subr.mxu0 0.0
    %969 = vmatpush1.xpose.msra.mxu0 %v932
    %970 = vmatprep.subr.mxu0 0.0
    %971 = vmatpush2.xpose.msra.mxu0 0.0
    %972 = vmatprep.subr.mxu0 0.0
    %973 = vmatpush2.xpose.msra.mxu0 0.0
    %974 = vmatprep.subr.mxu0 0.0
    %975 = vmatpush2.xpose.msra.mxu0 0.0
    %976 = vmatprep.subr.mxu0 0.0
    %977 = vmatpush2.xpose.msra.mxu0 0.0
    %978 = vmatprep.subr.mxu0 0.0
    %979 = vmatpush2.xpose.msra.mxu0 0.0
    %980 = vmatprep.subr.mxu0 0.0
    %981 = vmatpush2.xpose.msra.mxu0 0.0
    %982 = vmatprep.subr.mxu0 0.0
    %983 = vmatpush2.xpose.msra.mxu0 0.0
    %984 = vmatprep.subr.mxu0 0.0
    %985 = vmatpush2.xpose.msra.mxu0 0.0
    %986 = vmatprep.subr.mxu0 0.0
    %987 = vmatpush2.xpose.msra.mxu0 0.0
    %988 = vmatprep.subr.mxu0 0.0
    %989 = vmatpush2.xpose.msra.mxu0 0.0
    %990 = vmatprep.subr.mxu0 0.0
    %991 = vmatpush2.xpose.msra.mxu0 0.0
    %992 = vmatprep.subr.mxu0 0.0
    %993 = vmatpush2.xpose.msra.mxu0 0.0
    %994 = vmatprep.subr.mxu0 0.0
    %995 = vmatpush2.xpose.msra.mxu0 0.0
    %996 = vmatprep.subr.mxu0 0.0
    %997 = vmatpush2.xpose.msra.mxu0 0.0
    %998 = vmatprep.subr.mxu0 0.0
    %999 = vmatpush2.xpose.msra.mxu0 0.0
    %1000 = vmatprep.subr.mxu0 0.0
    %1001 = vmatpush2.xpose.msra.mxu0 0.0
    %1002 = vmatprep.mubr.f32.mxu0 0.0
    %1003 = vmatmul.mubr.f32.gmra.mxu0 %v926
    %v1004 = vpop.f32.mrf.mxu0
    %v1005 = vadd.f32 %v520, %v1004
    %v1006 = vpop.f32.mrf.mxu0
    %1007 = vmatprep.mubr.f32.mxu0 0.0
    %1008 = vmatmul.mubr.f32.gmra.mxu0 %v928
    %v1009 = vpop.f32.mrf.mxu0
    %v1010 = vadd.f32 %v521, %v1009
    %v1011 = vpop.f32.mrf.mxu0
    %1012 = vmatprep.mubr.f32.mxu0 0.0
    %1013 = vmatmul.mubr.f32.gmra.mxu0 %v930
    %v1014 = vpop.f32.mrf.mxu0
    %v1015 = vadd.f32 %v522, %v1014
    %v1016 = vpop.f32.mrf.mxu0
    %1017 = vdwg.mxu0
    %v1018 = vsel %vm782, %v1005, -inf
    %1019 = vmax.xlane.f32.xlu0 %v1018
    %v1020 = vpop.xlane.xlu0 %1019
    %v1021 = vsel %vm782, %v1010, -inf
    %1022 = vmax.xlane.f32.xlu0 %v1021
    %v1023 = vpop.xlane.xlu0 %1022
    %v1024 = vsel %vm782, %v1015, -inf
    %1025 = vmax.xlane.f32.xlu0 %v1024
    %v1026 = vpop.xlane.xlu0 %1025
    %v1027 = vsub.f32 %v1005, %v1020
    %v1028 = vsub.f32 %v1010, %v1023
    %v1029 = vsub.f32 %v1015, %v1026
    %v1030 = vmul.f32 %v1027, 1.442695
    %v1031 = vpow.pop %v1030
    %v1032 = vmul.f32 %v1028, 1.442695
    %v1033 = vpow.pop %v1032
    %v1034 = vmul.f32 %v1029, 1.442695
    %v1035 = vpow.pop %v1034
    %v1036 = vsel %vm782, %v1031, 0.0
    %1037 = vadd.xlane.f32.xlu0 %v1036
    %v1038 = vpop.xlane.xlu0 %1037
    %v1039 = vsel %vm782, %v1033, 0.0
    %1040 = vadd.xlane.f32.xlu0 %v1039
    %v1041 = vpop.xlane.xlu0 %1040
    %v1042 = vsel %vm782, %v1035, 0.0
    %1043 = vadd.xlane.f32.xlu0 %v1042
    %v1044 = vpop.xlane.xlu0 %1043
    %v1045 = vrcp.pop %v1038
    %v1046 = vrcp.pop %v1041
    %v1047 = vrcp.pop %v1044
    %v1048 = vmul.f32 %v1031, %v1045
    %v1049 = vmul.f32 %v1033, %v1046
    %v1050 = vmul.f32 %v1035, %v1047
    %1051 = vrot.lane.b32.xlu0 %v661, 56
    %v1052 = vpop.permute.xlu0 %1051
    %1053 = vrot.lane.b32.xlu0 %v666, 56
    %v1054 = vpop.permute.xlu0 %1053
    %1055 = vrot.lane.b32.xlu0 %v671, 56
    %v1056 = vpop.permute.xlu0 %1055
    %v1061 = vsel %vm782, %v1048, 0
    %v1064 = vsel %vm782, %v1049, 0
    %v1067 = vsel %vm782, %v1050, 0
    %1069 = vmatprep.subr.mxu0 0.0
    %1070 = vmatpush1.msra.mxu0 0.0
    %1071 = vmatprep.subr.mxu0 0.0
    %1072 = vmatpush1.msra.mxu0 0.0
    %1073 = vmatprep.subr.mxu0 0.0
    %1074 = vmatpush1.msra.mxu0 0.0
    %1075 = vmatprep.subr.mxu0 0.0
    %1076 = vmatpush1.msra.mxu0 0.0
    %1077 = vmatprep.subr.mxu0 0.0
    %1078 = vmatpush1.msra.mxu0 0.0
    %1079 = vmatprep.subr.mxu0 0.0
    %1080 = vmatpush1.msra.mxu0 0.0
    %1081 = vmatprep.subr.mxu0 0.0
    %1082 = vmatpush1.msra.mxu0 0.0
    %1083 = vmatprep.subr.mxu0 0.0
    %1084 = vmatpush1.msra.mxu0 0.0
    %1085 = vmatprep.subr.mxu0 0.0
    %1086 = vmatpush1.msra.mxu0 0.0
    %1087 = vmatprep.subr.mxu0 0.0
    %1088 = vmatpush1.msra.mxu0 0.0
    %1089 = vmatprep.subr.mxu0 0.0
    %1090 = vmatpush1.msra.mxu0 0.0
    %1091 = vmatprep.subr.mxu0 0.0
    %1092 = vmatpush1.msra.mxu0 0.0
    %1093 = vmatprep.subr.mxu0 0.0
    %1094 = vmatpush1.msra.mxu0 0.0
    %1095 = vmatprep.subr.mxu0 0.0
    %1096 = vmatpush1.msra.mxu0 %v1056
    %1097 = vmatprep.subr.mxu0 0.0
    %1098 = vmatpush1.msra.mxu0 %v1054
    %1099 = vmatprep.subr.mxu0 0.0
    %1100 = vmatpush1.msra.mxu0 %v1052
    %1101 = vmatprep.subr.mxu0 0.0
    %1102 = vmatpush2.msra.mxu0 0.0
    %1103 = vmatprep.subr.mxu0 0.0
    %1104 = vmatpush2.msra.mxu0 0.0
    %1105 = vmatprep.subr.mxu0 0.0
    %1106 = vmatpush2.msra.mxu0 0.0
    %1107 = vmatprep.subr.mxu0 0.0
    %1108 = vmatpush2.msra.mxu0 0.0
    %1109 = vmatprep.subr.mxu0 0.0
    %1110 = vmatpush2.msra.mxu0 0.0
    %1111 = vmatprep.subr.mxu0 0.0
    %1112 = vmatpush2.msra.mxu0 0.0
    %1113 = vmatprep.subr.mxu0 0.0
    %1114 = vmatpush2.msra.mxu0 0.0
    %1115 = vmatprep.subr.mxu0 0.0
    %1116 = vmatpush2.msra.mxu0 0.0
    %1117 = vmatprep.subr.mxu0 0.0
    %1118 = vmatpush2.msra.mxu0 0.0
    %1119 = vmatprep.subr.mxu0 0.0
    %1120 = vmatpush2.msra.mxu0 0.0
    %1121 = vmatprep.subr.mxu0 0.0
    %1122 = vmatpush2.msra.mxu0 0.0
    %1123 = vmatprep.subr.mxu0 0.0
    %1124 = vmatpush2.msra.mxu0 0.0
    %1125 = vmatprep.subr.mxu0 0.0
    %1126 = vmatpush2.msra.mxu0 0.0
    %1127 = vmatprep.subr.mxu0 0.0
    %1128 = vmatpush2.msra.mxu0 0.0
    %1129 = vmatprep.subr.mxu0 0.0
    %1130 = vmatpush2.msra.mxu0 0.0
    %1131 = vmatprep.subr.mxu0 0.0
    %1132 = vmatpush2.msra.mxu0 0.0
    %1133 = vmatprep.mubr.f32.mxu0 0.0
    %1134 = vmatmul.mubr.f32.gmra.mxu0 %v1061
    %v1135 = vpop.f32.mrf.mxu0
    %v1136 = vadd.f32 0.0, %v1135
    %v1137 = vpop.f32.mrf.mxu0
    %1138 = vmatprep.mubr.f32.mxu0 0.0
    %1139 = vmatmul.mubr.f32.gmra.mxu0 %v1064
    %v1140 = vpop.f32.mrf.mxu0
    %v1141 = vadd.f32 0.0, %v1140
    %v1142 = vpop.f32.mrf.mxu0
    %1143 = vmatprep.mubr.f32.mxu0 0.0
    %1144 = vmatmul.mubr.f32.gmra.mxu0 %v1067
    %v1145 = vpop.f32.mrf.mxu0
    %v1146 = vadd.f32 0.0, %v1145
    %v1147 = vpop.f32.mrf.mxu0
    %1148 = vdwg.mxu0
    %1149 = vrot.lane.b32.xlu0 %v674, 112
    %v1150 = vpop.permute.xlu0 %1149
    %1151 = vrot.lane.b32.xlu0 %v675, 112
    %v1152 = vpop.permute.xlu0 %1151
    %1153 = vrot.lane.b32.xlu0 %v676, 112
    %v1154 = vpop.permute.xlu0 %1153
    %1155 = vrot.lane.b32.xlu0 %v661, 80
    %v1156 = vpop.permute.xlu0 %1155
    %1157 = vrot.lane.b32.xlu0 %v666, 80
    %v1158 = vpop.permute.xlu0 %1157
    %1159 = vrot.lane.b32.xlu0 %v671, 80
    %v1160 = vpop.permute.xlu0 %1159
    %v1161 = vsel %vm686, %v1150, 0
    %v1163 = vsel %vm686, %v1152, 0
    %v1165 = vsel %vm686, %v1154, 0
    %v1167 = vsel %vm686, %v1156, 0
    %v1169 = vsel %vm686, %v1158, 0
    %v1171 = vsel %vm686, %v1160, 0
    %1173 = vmatprep.subr.mxu0 0.0
    %1174 = vmatpush1.xpose.msra.mxu0 0.0
    %1175 = vmatprep.subr.mxu0 0.0
    %1176 = vmatpush1.xpose.msra.mxu0 0.0
    %1177 = vmatprep.subr.mxu0 0.0
    %1178 = vmatpush1.xpose.msra.mxu0 0.0
    %1179 = vmatprep.subr.mxu0 0.0
    %1180 = vmatpush1.xpose.msra.mxu0 0.0
    %1181 = vmatprep.subr.mxu0 0.0
    %1182 = vmatpush1.xpose.msra.mxu0 0.0
    %1183 = vmatprep.subr.mxu0 0.0
    %1184 = vmatpush1.xpose.msra.mxu0 0.0
    %1185 = vmatprep.subr.mxu0 0.0
    %1186 = vmatpush1.xpose.msra.mxu0 0.0
    %1187 = vmatprep.subr.mxu0 0.0
    %1188 = vmatpush1.xpose.msra.mxu0 0.0
    %1189 = vmatprep.subr.mxu0 0.0
    %1190 = vmatpush1.xpose.msra.mxu0 0.0
    %1191 = vmatprep.subr.mxu0 0.0
    %1192 = vmatpush1.xpose.msra.mxu0 0.0
    %1193 = vmatprep.subr.mxu0 0.0
    %1194 = vmatpush1.xpose.msra.mxu0 0.0
    %1195 = vmatprep.subr.mxu0 0.0
    %1196 = vmatpush1.xpose.msra.mxu0 0.0
    %1197 = vmatprep.subr.mxu0 0.0
    %1198 = vmatpush1.xpose.msra.mxu0 0.0
    %1199 = vmatprep.subr.mxu0 0.0
    %1200 = vmatpush1.xpose.msra.mxu0 %v1171
    %1201 = vmatprep.subr.mxu0 0.0
    %1202 = vmatpush1.xpose.msra.mxu0 %v1169
    %1203 = vmatprep.subr.mxu0 0.0
    %1204 = vmatpush1.xpose.msra.mxu0 %v1167
    %1205 = vmatprep.subr.mxu0 0.0
    %1206 = vmatpush2.xpose.msra.mxu0 0.0
    %1207 = vmatprep.subr.mxu0 0.0
    %1208 = vmatpush2.xpose.msra.mxu0 0.0
    %1209 = vmatprep.subr.mxu0 0.0
    %1210 = vmatpush2.xpose.msra.mxu0 0.0
    %1211 = vmatprep.subr.mxu0 0.0
    %1212 = vmatpush2.xpose.msra.mxu0 0.0
    %1213 = vmatprep.subr.mxu0 0.0
    %1214 = vmatpush2.xpose.msra.mxu0 0.0
    %1215 = vmatprep.subr.mxu0 0.0
    %1216 = vmatpush2.xpose.msra.mxu0 0.0
    %1217 = vmatprep.subr.mxu0 0.0
    %1218 = vmatpush2.xpose.msra.mxu0 0.0
    %1219 = vmatprep.subr.mxu0 0.0
    %1220 = vmatpush2.xpose.msra.mxu0 0.0
    %1221 = vmatprep.subr.mxu0 0.0
    %1222 = vmatpush2.xpose.msra.mxu0 0.0
    %1223 = vmatprep.subr.mxu0 0.0
    %1224 = vmatpush2.xpose.msra.mxu0 0.0
    %1225 = vmatprep.subr.mxu0 0.0
    %1226 = vmatpush2.xpose.msra.mxu0 0.0
    %1227 = vmatprep.subr.mxu0 0.0
    %1228 = vmatpush2.xpose.msra.mxu0 0.0
    %1229 = vmatprep.subr.mxu0 0.0
    %1230 = vmatpush2.xpose.msra.mxu0 0.0
    %1231 = vmatprep.subr.mxu0 0.0
    %1232 = vmatpush2.xpose.msra.mxu0 0.0
    %1233 = vmatprep.subr.mxu0 0.0
    %1234 = vmatpush2.xpose.msra.mxu0 0.0
    %1235 = vmatprep.subr.mxu0 0.0
    %1236 = vmatpush2.xpose.msra.mxu0 0.0
    %1237 = vmatprep.mubr.f32.mxu0 0.0
    %1238 = vmatmul.mubr.f32.gmra.mxu0 %v1161
    %v1239 = vpop.f32.mrf.mxu0
    %v1240 = vadd.f32 %v520, %v1239
    %v1241 = vpop.f32.mrf.mxu0
    %1242 = vmatprep.mubr.f32.mxu0 0.0
    %1243 = vmatmul.mubr.f32.gmra.mxu0 %v1163
    %v1244 = vpop.f32.mrf.mxu0
    %v1245 = vadd.f32 %v521, %v1244
    %v1246 = vpop.f32.mrf.mxu0
    %1247 = vmatprep.mubr.f32.mxu0 0.0
    %1248 = vmatmul.mubr.f32.gmra.mxu0 %v1165
    %v1249 = vpop.f32.mrf.mxu0
    %v1250 = vadd.f32 %v522, %v1249
    %v1251 = vpop.f32.mrf.mxu0
    %1252 = vdwg.mxu0
    %v1253 = vsel %vm782, %v1240, -inf
    %1254 = vmax.xlane.f32.xlu0 %v1253
    %v1255 = vpop.xlane.xlu0 %1254
    %v1256 = vsel %vm782, %v1245, -inf
    %1257 = vmax.xlane.f32.xlu0 %v1256
    %v1258 = vpop.xlane.xlu0 %1257
    %v1259 = vsel %vm782, %v1250, -inf
    %1260 = vmax.xlane.f32.xlu0 %v1259
    %v1261 = vpop.xlane.xlu0 %1260
    %v1262 = vsub.f32 %v1240, %v1255
    %v1263 = vsub.f32 %v1245, %v1258
    %v1264 = vsub.f32 %v1250, %v1261
    %v1265 = vmul.f32 %v1262, 1.442695
    %v1266 = vpow.pop %v1265
    %v1267 = vmul.f32 %v1263, 1.442695
    %v1268 = vpow.pop %v1267
    %v1269 = vmul.f32 %v1264, 1.442695
    %v1270 = vpow.pop %v1269
    %v1271 = vsel %vm782, %v1266, 0.0
    %1272 = vadd.xlane.f32.xlu0 %v1271
    %v1273 = vpop.xlane.xlu0 %1272
    %v1274 = vsel %vm782, %v1268, 0.0
    %1275 = vadd.xlane.f32.xlu0 %v1274
    %v1276 = vpop.xlane.xlu0 %1275
    %v1277 = vsel %vm782, %v1270, 0.0
    %1278 = vadd.xlane.f32.xlu0 %v1277
    %v1279 = vpop.xlane.xlu0 %1278
    %v1280 = vrcp.pop %v1273
    %v1281 = vrcp.pop %v1276
    %v1282 = vrcp.pop %v1279
    %v1283 = vmul.f32 %v1266, %v1280
    %v1284 = vmul.f32 %v1268, %v1281
    %v1285 = vmul.f32 %v1270, %v1282
    %1286 = vrot.lane.b32.xlu0 %v661, 48
    %v1287 = vpop.permute.xlu0 %1286
    %1288 = vrot.lane.b32.xlu0 %v666, 48
    %v1289 = vpop.permute.xlu0 %1288
    %1290 = vrot.lane.b32.xlu0 %v671, 48
    %v1291 = vpop.permute.xlu0 %1290
    %v1296 = vsel %vm782, %v1283, 0
    %v1299 = vsel %vm782, %v1284, 0
    %v1302 = vsel %vm782, %v1285, 0
    %1304 = vmatprep.subr.mxu0 0.0
    %1305 = vmatpush1.msra.mxu0 0.0
    %1306 = vmatprep.subr.mxu0 0.0
    %1307 = vmatpush1.msra.mxu0 0.0
    %1308 = vmatprep.subr.mxu0 0.0
    %1309 = vmatpush1.msra.mxu0 0.0
    %1310 = vmatprep.subr.mxu0 0.0
    %1311 = vmatpush1.msra.mxu0 0.0
    %1312 = vmatprep.subr.mxu0 0.0
    %1313 = vmatpush1.msra.mxu0 0.0
    %1314 = vmatprep.subr.mxu0 0.0
    %1315 = vmatpush1.msra.mxu0 0.0
    %1316 = vmatprep.subr.mxu0 0.0
    %1317 = vmatpush1.msra.mxu0 0.0
    %1318 = vmatprep.subr.mxu0 0.0
    %1319 = vmatpush1.msra.mxu0 0.0
    %1320 = vmatprep.subr.mxu0 0.0
    %1321 = vmatpush1.msra.mxu0 0.0
    %1322 = vmatprep.subr.mxu0 0.0
    %1323 = vmatpush1.msra.mxu0 0.0
    %1324 = vmatprep.subr.mxu0 0.0
    %1325 = vmatpush1.msra.mxu0 0.0
    %1326 = vmatprep.subr.mxu0 0.0
    %1327 = vmatpush1.msra.mxu0 0.0
    %1328 = vmatprep.subr.mxu0 0.0
    %1329 = vmatpush1.msra.mxu0 0.0
    %1330 = vmatprep.subr.mxu0 0.0
    %1331 = vmatpush1.msra.mxu0 %v1291
    %1332 = vmatprep.subr.mxu0 0.0
    %1333 = vmatpush1.msra.mxu0 %v1289
    %1334 = vmatprep.subr.mxu0 0.0
    %1335 = vmatpush1.msra.mxu0 %v1287
    %1336 = vmatprep.subr.mxu0 0.0
    %1337 = vmatpush2.msra.mxu0 0.0
    %1338 = vmatprep.subr.mxu0 0.0
    %1339 = vmatpush2.msra.mxu0 0.0
    %1340 = vmatprep.subr.mxu0 0.0
    %1341 = vmatpush2.msra.mxu0 0.0
    %1342 = vmatprep.subr.mxu0 0.0
    %1343 = vmatpush2.msra.mxu0 0.0
    %1344 = vmatprep.subr.mxu0 0.0
    %1345 = vmatpush2.msra.mxu0 0.0
    %1346 = vmatprep.subr.mxu0 0.0
    %1347 = vmatpush2.msra.mxu0 0.0
    %1348 = vmatprep.subr.mxu0 0.0
    %1349 = vmatpush2.msra.mxu0 0.0
    %1350 = vmatprep.subr.mxu0 0.0
    %1351 = vmatpush2.msra.mxu0 0.0
    %1352 = vmatprep.subr.mxu0 0.0
    %1353 = vmatpush2.msra.mxu0 0.0
    %1354 = vmatprep.subr.mxu0 0.0
    %1355 = vmatpush2.msra.mxu0 0.0
    %1356 = vmatprep.subr.mxu0 0.0
    %1357 = vmatpush2.msra.mxu0 0.0
    %1358 = vmatprep.subr.mxu0 0.0
    %1359 = vmatpush2.msra.mxu0 0.0
    %1360 = vmatprep.subr.mxu0 0.0
    %1361 = vmatpush2.msra.mxu0 0.0
    %1362 = vmatprep.subr.mxu0 0.0
    %1363 = vmatpush2.msra.mxu0 0.0
    %1364 = vmatprep.subr.mxu0 0.0
    %1365 = vmatpush2.msra.mxu0 0.0
    %1366 = vmatprep.subr.mxu0 0.0
    %1367 = vmatpush2.msra.mxu0 0.0
    %1368 = vmatprep.mubr.f32.mxu0 0.0
    %1369 = vmatmul.mubr.f32.gmra.mxu0 %v1296
    %v1370 = vpop.f32.mrf.mxu0
    %v1371 = vadd.f32 0.0, %v1370
    %v1372 = vpop.f32.mrf.mxu0
    %1373 = vmatprep.mubr.f32.mxu0 0.0
    %1374 = vmatmul.mubr.f32.gmra.mxu0 %v1299
    %v1375 = vpop.f32.mrf.mxu0
    %v1376 = vadd.f32 0.0, %v1375
    %v1377 = vpop.f32.mrf.mxu0
    %1378 = vmatprep.mubr.f32.mxu0 0.0
    %1379 = vmatmul.mubr.f32.gmra.mxu0 %v1302
    %v1380 = vpop.f32.mrf.mxu0
    %v1381 = vadd.f32 0.0, %v1380
    %v1382 = vpop.f32.mrf.mxu0
    %1383 = vdwg.mxu0
    %1384 = vrot.lane.b32.xlu0 %v674, 104
    %v1385 = vpop.permute.xlu0 %1384
    %1386 = vrot.lane.b32.xlu0 %v675, 104
    %v1387 = vpop.permute.xlu0 %1386
    %1388 = vrot.lane.b32.xlu0 %v676, 104
    %v1389 = vpop.permute.xlu0 %1388
    %1390 = vrot.lane.b32.xlu0 %v661, 72
    %v1391 = vpop.permute.xlu0 %1390
    %1392 = vrot.lane.b32.xlu0 %v666, 72
    %v1393 = vpop.permute.xlu0 %1392
    %1394 = vrot.lane.b32.xlu0 %v671, 72
    %v1395 = vpop.permute.xlu0 %1394
    %v1396 = vsel %vm686, %v1385, 0
    %v1398 = vsel %vm686, %v1387, 0
    %v1400 = vsel %vm686, %v1389, 0
    %v1402 = vsel %vm686, %v1391, 0
    %v1404 = vsel %vm686, %v1393, 0
    %v1406 = vsel %vm686, %v1395, 0
    %1408 = vmatprep.subr.mxu0 0.0
    %1409 = vmatpush1.xpose.msra.mxu0 0.0
    %1410 = vmatprep.subr.mxu0 0.0
    %1411 = vmatpush1.xpose.msra.mxu0 0.0
    %1412 = vmatprep.subr.mxu0 0.0
    %1413 = vmatpush1.xpose.msra.mxu0 0.0
    %1414 = vmatprep.subr.mxu0 0.0
    %1415 = vmatpush1.xpose.msra.mxu0 0.0
    %1416 = vmatprep.subr.mxu0 0.0
    %1417 = vmatpush1.xpose.msra.mxu0 0.0
    %1418 = vmatprep.subr.mxu0 0.0
    %1419 = vmatpush1.xpose.msra.mxu0 0.0
    %1420 = vmatprep.subr.mxu0 0.0
    %1421 = vmatpush1.xpose.msra.mxu0 0.0
    %1422 = vmatprep.subr.mxu0 0.0
    %1423 = vmatpush1.xpose.msra.mxu0 0.0
    %1424 = vmatprep.subr.mxu0 0.0
    %1425 = vmatpush1.xpose.msra.mxu0 0.0
    %1426 = vmatprep.subr.mxu0 0.0
    %1427 = vmatpush1.xpose.msra.mxu0 0.0
    %1428 = vmatprep.subr.mxu0 0.0
    %1429 = vmatpush1.xpose.msra.mxu0 0.0
    %1430 = vmatprep.subr.mxu0 0.0
    %1431 = vmatpush1.xpose.msra.mxu0 0.0
    %1432 = vmatprep.subr.mxu0 0.0
    %1433 = vmatpush1.xpose.msra.mxu0 0.0
    %1434 = vmatprep.subr.mxu0 0.0
    %1435 = vmatpush1.xpose.msra.mxu0 %v1406
    %1436 = vmatprep.subr.mxu0 0.0
    %1437 = vmatpush1.xpose.msra.mxu0 %v1404
    %1438 = vmatprep.subr.mxu0 0.0
    %1439 = vmatpush1.xpose.msra.mxu0 %v1402
    %1440 = vmatprep.subr.mxu0 0.0
    %1441 = vmatpush2.xpose.msra.mxu0 0.0
    %1442 = vmatprep.subr.mxu0 0.0
    %1443 = vmatpush2.xpose.msra.mxu0 0.0
    %1444 = vmatprep.subr.mxu0 0.0
    %1445 = vmatpush2.xpose.msra.mxu0 0.0
    %1446 = vmatprep.subr.mxu0 0.0
    %1447 = vmatpush2.xpose.msra.mxu0 0.0
    %1448 = vmatprep.subr.mxu0 0.0
    %1449 = vmatpush2.xpose.msra.mxu0 0.0
    %1450 = vmatprep.subr.mxu0 0.0
    %1451 = vmatpush2.xpose.msra.mxu0 0.0
    %1452 = vmatprep.subr.mxu0 0.0
    %1453 = vmatpush2.xpose.msra.mxu0 0.0
    %1454 = vmatprep.subr.mxu0 0.0
    %1455 = vmatpush2.xpose.msra.mxu0 0.0
    %1456 = vmatprep.subr.mxu0 0.0
    %1457 = vmatpush2.xpose.msra.mxu0 0.0
    %1458 = vmatprep.subr.mxu0 0.0
    %1459 = vmatpush2.xpose.msra.mxu0 0.0
    %1460 = vmatprep.subr.mxu0 0.0
    %1461 = vmatpush2.xpose.msra.mxu0 0.0
    %1462 = vmatprep.subr.mxu0 0.0
    %1463 = vmatpush2.xpose.msra.mxu0 0.0
    %1464 = vmatprep.subr.mxu0 0.0
    %1465 = vmatpush2.xpose.msra.mxu0 0.0
    %1466 = vmatprep.subr.mxu0 0.0
    %1467 = vmatpush2.xpose.msra.mxu0 0.0
    %1468 = vmatprep.subr.mxu0 0.0
    %1469 = vmatpush2.xpose.msra.mxu0 0.0
    %1470 = vmatprep.subr.mxu0 0.0
    %1471 = vmatpush2.xpose.msra.mxu0 0.0
    %1472 = vmatprep.mubr.f32.mxu0 0.0
    %1473 = vmatmul.mubr.f32.gmra.mxu0 %v1396
    %v1474 = vpop.f32.mrf.mxu0
    %v1475 = vadd.f32 %v520, %v1474
    %v1476 = vpop.f32.mrf.mxu0
    %1477 = vmatprep.mubr.f32.mxu0 0.0
    %1478 = vmatmul.mubr.f32.gmra.mxu0 %v1398
    %v1479 = vpop.f32.mrf.mxu0
    %v1480 = vadd.f32 %v521, %v1479
    %v1481 = vpop.f32.mrf.mxu0
    %1482 = vmatprep.mubr.f32.mxu0 0.0
    %1483 = vmatmul.mubr.f32.gmra.mxu0 %v1400
    %v1484 = vpop.f32.mrf.mxu0
    %v1485 = vadd.f32 %v522, %v1484
    %v1486 = vpop.f32.mrf.mxu0
    %1487 = vdwg.mxu0
    %v1488 = vsel %vm782, %v1475, -inf
    %1489 = vmax.xlane.f32.xlu0 %v1488
    %v1490 = vpop.xlane.xlu0 %1489
    %v1491 = vsel %vm782, %v1480, -inf
    %1492 = vmax.xlane.f32.xlu0 %v1491
    %v1493 = vpop.xlane.xlu0 %1492
    %v1494 = vsel %vm782, %v1485, -inf
    %1495 = vmax.xlane.f32.xlu0 %v1494
    %v1496 = vpop.xlane.xlu0 %1495
    %v1497 = vsub.f32 %v1475, %v1490
    %v1498 = vsub.f32 %v1480, %v1493
    %v1499 = vsub.f32 %v1485, %v1496
    %v1500 = vmul.f32 %v1497, 1.442695
    %v1501 = vpow.pop %v1500
    %v1502 = vmul.f32 %v1498, 1.442695
    %v1503 = vpow.pop %v1502
    %v1504 = vmul.f32 %v1499, 1.442695
    %v1505 = vpow.pop %v1504
    %v1506 = vsel %vm782, %v1501, 0.0
    %1507 = vadd.xlane.f32.xlu0 %v1506
    %v1508 = vpop.xlane.xlu0 %1507
    %v1509 = vsel %vm782, %v1503, 0.0
    %1510 = vadd.xlane.f32.xlu0 %v1509
    %v1511 = vpop.xlane.xlu0 %1510
    %v1512 = vsel %vm782, %v1505, 0.0
    %1513 = vadd.xlane.f32.xlu0 %v1512
    %v1514 = vpop.xlane.xlu0 %1513
    %v1515 = vrcp.pop %v1508
    %v1516 = vrcp.pop %v1511
    %v1517 = vrcp.pop %v1514
    %v1518 = vmul.f32 %v1501, %v1515
    %v1519 = vmul.f32 %v1503, %v1516
    %v1520 = vmul.f32 %v1505, %v1517
    %1521 = vrot.lane.b32.xlu0 %v661, 40
    %v1522 = vpop.permute.xlu0 %1521
    %1523 = vrot.lane.b32.xlu0 %v666, 40
    %v1524 = vpop.permute.xlu0 %1523
    %1525 = vrot.lane.b32.xlu0 %v671, 40
    %v1526 = vpop.permute.xlu0 %1525
    %v1531 = vsel %vm782, %v1518, 0
    %v1534 = vsel %vm782, %v1519, 0
    %v1537 = vsel %vm782, %v1520, 0
    %1539 = vmatprep.subr.mxu0 0.0
    %1540 = vmatpush1.msra.mxu0 0.0
    %1541 = vmatprep.subr.mxu0 0.0
    %1542 = vmatpush1.msra.mxu0 0.0
    %1543 = vmatprep.subr.mxu0 0.0
    %1544 = vmatpush1.msra.mxu0 0.0
    %1545 = vmatprep.subr.mxu0 0.0
    %1546 = vmatpush1.msra.mxu0 0.0
    %1547 = vmatprep.subr.mxu0 0.0
    %1548 = vmatpush1.msra.mxu0 0.0
    %1549 = vmatprep.subr.mxu0 0.0
    %1550 = vmatpush1.msra.mxu0 0.0
    %1551 = vmatprep.subr.mxu0 0.0
    %1552 = vmatpush1.msra.mxu0 0.0
    %1553 = vmatprep.subr.mxu0 0.0
    %1554 = vmatpush1.msra.mxu0 0.0
    %1555 = vmatprep.subr.mxu0 0.0
    %1556 = vmatpush1.msra.mxu0 0.0
    %1557 = vmatprep.subr.mxu0 0.0
    %1558 = vmatpush1.msra.mxu0 0.0
    %1559 = vmatprep.subr.mxu0 0.0
    %1560 = vmatpush1.msra.mxu0 0.0
    %1561 = vmatprep.subr.mxu0 0.0
    %1562 = vmatpush1.msra.mxu0 0.0
    %1563 = vmatprep.subr.mxu0 0.0
    %1564 = vmatpush1.msra.mxu0 0.0
    %1565 = vmatprep.subr.mxu0 0.0
    %1566 = vmatpush1.msra.mxu0 %v1526
    %1567 = vmatprep.subr.mxu0 0.0
    %1568 = vmatpush1.msra.mxu0 %v1524
    %1569 = vmatprep.subr.mxu0 0.0
    %1570 = vmatpush1.msra.mxu0 %v1522
    %1571 = vmatprep.subr.mxu0 0.0
    %1572 = vmatpush2.msra.mxu0 0.0
    %1573 = vmatprep.subr.mxu0 0.0
    %1574 = vmatpush2.msra.mxu0 0.0
    %1575 = vmatprep.subr.mxu0 0.0
    %1576 = vmatpush2.msra.mxu0 0.0
    %1577 = vmatprep.subr.mxu0 0.0
    %1578 = vmatpush2.msra.mxu0 0.0
    %1579 = vmatprep.subr.mxu0 0.0
    %1580 = vmatpush2.msra.mxu0 0.0
    %1581 = vmatprep.subr.mxu0 0.0
    %1582 = vmatpush2.msra.mxu0 0.0
    %1583 = vmatprep.subr.mxu0 0.0
    %1584 = vmatpush2.msra.mxu0 0.0
    %1585 = vmatprep.subr.mxu0 0.0
    %1586 = vmatpush2.msra.mxu0 0.0
    %1587 = vmatprep.subr.mxu0 0.0
    %1588 = vmatpush2.msra.mxu0 0.0
    %1589 = vmatprep.subr.mxu0 0.0
    %1590 = vmatpush2.msra.mxu0 0.0
    %1591 = vmatprep.subr.mxu0 0.0
    %1592 = vmatpush2.msra.mxu0 0.0
    %1593 = vmatprep.subr.mxu0 0.0
    %1594 = vmatpush2.msra.mxu0 0.0
    %1595 = vmatprep.subr.mxu0 0.0
    %1596 = vmatpush2.msra.mxu0 0.0
    %1597 = vmatprep.subr.mxu0 0.0
    %1598 = vmatpush2.msra.mxu0 0.0
    %1599 = vmatprep.subr.mxu0 0.0
    %1600 = vmatpush2.msra.mxu0 0.0
    %1601 = vmatprep.subr.mxu0 0.0
    %1602 = vmatpush2.msra.mxu0 0.0
    %1603 = vmatprep.mubr.f32.mxu0 0.0
    %1604 = vmatmul.mubr.f32.gmra.mxu0 %v1531
    %v1605 = vpop.f32.mrf.mxu0
    %v1606 = vadd.f32 0.0, %v1605
    %v1607 = vpop.f32.mrf.mxu0
    %1608 = vmatprep.mubr.f32.mxu0 0.0
    %1609 = vmatmul.mubr.f32.gmra.mxu0 %v1534
    %v1610 = vpop.f32.mrf.mxu0
    %v1611 = vadd.f32 0.0, %v1610
    %v1612 = vpop.f32.mrf.mxu0
    %1613 = vmatprep.mubr.f32.mxu0 0.0
    %1614 = vmatmul.mubr.f32.gmra.mxu0 %v1537
    %v1615 = vpop.f32.mrf.mxu0
    %v1616 = vadd.f32 0.0, %v1615
    %v1617 = vpop.f32.mrf.mxu0
    %1618 = vdwg.mxu0
    %1622 = vrot.lane.b32.xlu0 %v1136, 8
    %v1623 = vpop.permute.xlu0 %1622
    %1624 = vrot.lane.b32.xlu0 %v1141, 8
    %v1625 = vpop.permute.xlu0 %1624
    %1626 = vrot.lane.b32.xlu0 %v1146, 8
    %v1627 = vpop.permute.xlu0 %1626
    %1634 = vrot.lane.b32.xlu0 %v1371, 16
    %v1635 = vpop.permute.xlu0 %1634
    %1636 = vrot.lane.b32.xlu0 %v1376, 16
    %v1637 = vpop.permute.xlu0 %1636
    %1638 = vrot.lane.b32.xlu0 %v1381, 16
    %v1639 = vpop.permute.xlu0 %1638
    %1646 = vrot.lane.b32.xlu0 %v1606, 24
    %v1647 = vpop.permute.xlu0 %1646
    %1648 = vrot.lane.b32.xlu0 %v1611, 24
    %v1649 = vpop.permute.xlu0 %1648
    %1650 = vrot.lane.b32.xlu0 %v1616, 24
    %v1651 = vpop.permute.xlu0 %1650
    %v1655 = vsel %vm686, %v901, %v1623
    %v1656 = vsel %vm686, %v906, %v1625
    %v1657 = vsel %vm686, %v911, %v1627
    %v1658 = vsel %vm41, %v1655, %v1635
    %v1659 = vsel %vm41, %v1656, %v1637
    %v1660 = vsel %vm41, %v1657, %v1639
    %v1661 = vsel %vm782, %v1658, %v1647
    %v1662 = vsel %vm782, %v1659, %v1649
    %v1663 = vsel %vm782, %v1660, %v1651
    %1668 = vrot.lane.b32.xlu0 %v580, 32
    %v1669 = vpop.permute.xlu0 %1668
    %1670 = vrot.lane.b32.xlu0 %v581, 32
    %v1671 = vpop.permute.xlu0 %1670
    %1672 = vrot.lane.b32.xlu0 %v582, 32
    %v1673 = vpop.permute.xlu0 %1672
    %1674 = vrot.lane.b32.xlu0 %v583, 32
    %v1675 = vpop.permute.xlu0 %1674
    %1681 = vrot.lane.b32.xlu0 %v584, 32
    %v1682 = vpop.permute.xlu0 %1681
    %v1685 = vsel %vm525, %v1661, 0
    %v1688 = vsel %vm525, %v1662, 0
    %v1691 = vsel %vm525, %v1663, 0
    %1693 = vmatprep.subr.mxu0 0.0
    %1694 = vmatpush1.msra.mxu0 0.0
    %1695 = vmatprep.subr.mxu0 0.0
    %1696 = vmatpush1.msra.mxu0 0.0
    %1697 = vmatprep.subr.mxu0 0.0
    %1698 = vmatpush1.msra.mxu0 0.0
    %1699 = vmatprep.subr.mxu0 0.0
    %1700 = vmatpush1.msra.mxu0 0.0
    %1701 = vmatprep.subr.mxu0 0.0
    %1702 = vmatpush1.msra.mxu0 0.0
    %1703 = vmatprep.subr.mxu0 0.0
    %1704 = vmatpush1.msra.mxu0 0.0
    %1705 = vmatprep.subr.mxu0 0.0
    %1706 = vmatpush1.msra.mxu0 0.0
    %1707 = vmatprep.subr.mxu0 0.0
    %1708 = vmatpush1.msra.mxu0 0.0
    %1709 = vmatprep.subr.mxu0 0.0
    %1710 = vmatpush1.msra.mxu0 0.0
    %1711 = vmatprep.subr.mxu0 0.0
    %1712 = vmatpush1.msra.mxu0 0.0
    %1713 = vmatprep.subr.mxu0 0.0
    %1714 = vmatpush1.msra.mxu0 0.0
    %1715 = vmatprep.subr.mxu0 0.0
    %1716 = vmatpush1.msra.mxu0 0.0
    %1717 = vmatprep.subr.mxu0 0.0
    %1718 = vmatpush1.msra.mxu0 %v1675
    %1719 = vmatprep.subr.mxu0 0.0
    %1720 = vmatpush1.msra.mxu0 %v1673
    %1721 = vmatprep.subr.mxu0 0.0
    %1722 = vmatpush1.msra.mxu0 %v1671
    %1723 = vmatprep.subr.mxu0 0.0
    %1724 = vmatpush1.msra.mxu0 %v1669
    %1725 = vmatprep.subr.mxu0 0.0
    %1726 = vmatpush2.msra.mxu0 0.0
    %1727 = vmatprep.subr.mxu0 0.0
    %1728 = vmatpush2.msra.mxu0 0.0
    %1729 = vmatprep.subr.mxu0 0.0
    %1730 = vmatpush2.msra.mxu0 0.0
    %1731 = vmatprep.subr.mxu0 0.0
    %1732 = vmatpush2.msra.mxu0 0.0
    %1733 = vmatprep.subr.mxu0 0.0
    %1734 = vmatpush2.msra.mxu0 0.0
    %1735 = vmatprep.subr.mxu0 0.0
    %1736 = vmatpush2.msra.mxu0 0.0
    %1737 = vmatprep.subr.mxu0 0.0
    %1738 = vmatpush2.msra.mxu0 0.0
    %1739 = vmatprep.subr.mxu0 0.0
    %1740 = vmatpush2.msra.mxu0 0.0
    %1741 = vmatprep.subr.mxu0 0.0
    %1742 = vmatpush2.msra.mxu0 0.0
    %1743 = vmatprep.subr.mxu0 0.0
    %1744 = vmatpush2.msra.mxu0 0.0
    %1745 = vmatprep.subr.mxu0 0.0
    %1746 = vmatpush2.msra.mxu0 0.0
    %1747 = vmatprep.subr.mxu0 0.0
    %1748 = vmatpush2.msra.mxu0 0.0
    %1749 = vmatprep.subr.mxu0 0.0
    %1750 = vmatpush2.msra.mxu0 0.0
    %1751 = vmatprep.subr.mxu0 0.0
    %1752 = vmatpush2.msra.mxu0 0.0
    %1753 = vmatprep.subr.mxu0 0.0
    %1754 = vmatpush2.msra.mxu0 0.0
    %1755 = vmatprep.subr.mxu0 0.0
    %1756 = vmatpush2.msra.mxu0 0.0
    %1757 = vmatprep.mubr.f32.mxu0 0.0
    %1758 = vmatmul.mubr.f32.gmra.mxu0 %v1685
    %v1759 = vpop.f32.mrf.mxu0
    %v1760 = vadd.f32 %v1682, %v1759
    %v1761 = vpop.f32.mrf.mxu0
    %1762 = vmatprep.mubr.f32.mxu0 0.0
    %1763 = vmatmul.mubr.f32.gmra.mxu0 %v1688
    %v1764 = vpop.f32.mrf.mxu0
    %v1765 = vadd.f32 %v1682, %v1764
    %v1766 = vpop.f32.mrf.mxu0
    %1767 = vmatprep.mubr.f32.mxu0 0.0
    %1768 = vmatmul.mubr.f32.gmra.mxu0 %v1691
    %v1769 = vpop.f32.mrf.mxu0
    %v1770 = vadd.f32 %v1682, %v1769
    %v1771 = vpop.f32.mrf.mxu0
    %1772 = vdwg.mxu0
    %v1773 = vadd.f32 %v519, %v1760
    %v1774 = vadd.f32 %v503, %v1765
    %v1775 = vadd.f32 %v504, %v1770
    %v1776 = vld [vmem:[%s5 + $0x2] sm:$0x1]
    %v1777 = vld [vmem:[%s5 + $0x3] sm:$0x1]
    %v1778 = vsel %vm525, %v1773, 0.0
    %1779 = vadd.xlane.f32.xlu0 %v1778
    %v1780 = vpop.xlane.xlu0 %1779
    %v1781 = vsel %vm525, %v1774, 0.0
    %1782 = vadd.xlane.f32.xlu0 %v1781
    %v1783 = vpop.xlane.xlu0 %1782
    %v1784 = vsel %vm525, %v1775, 0.0
    %1785 = vadd.xlane.f32.xlu0 %v1784
    %v1786 = vpop.xlane.xlu0 %1785
    %v1787 = vmul.f32 %v1780, %v535
    %v1788 = vmul.f32 %v1783, %v535
    %v1789 = vmul.f32 %v1786, %v535
    %v1790 = vsub.f32 %v1773, %v1787
    %v1791 = vsub.f32 %v1774, %v1788
    %v1792 = vsub.f32 %v1775, %v1789
    %v1793 = vmul.f32 %v1790, %v1790
    %v1794 = vmul.f32 %v1791, %v1791
    %v1795 = vmul.f32 %v1792, %v1792
    %v1796 = vsel %vm525, %v1793, 0.0
    %1797 = vadd.xlane.f32.xlu0 %v1796
    %v1798 = vpop.xlane.xlu0 %1797
    %v1799 = vsel %vm525, %v1794, 0.0
    %1800 = vadd.xlane.f32.xlu0 %v1799
    %v1801 = vpop.xlane.xlu0 %1800
    %v1802 = vsel %vm525, %v1795, 0.0
    %1803 = vadd.xlane.f32.xlu0 %v1802
    %v1804 = vpop.xlane.xlu0 %1803
    %v1805 = vmul.f32 %v1798, %v535
    %v1806 = vmul.f32 %v1801, %v535
    %v1807 = vmul.f32 %v1804, %v535
    %v1808 = vadd.f32 %v1805, 1e-05
    %v1809 = vadd.f32 %v1806, 1e-05
    %v1810 = vadd.f32 %v1807, 1e-05
    %v1811 = vrsqrt.pop %v1808
    %v1812 = vrsqrt.pop %v1809
    %v1813 = vrsqrt.pop %v1810
    %v1814 = vmul.f32 %v1790, %v1811
    %v1815 = vmul.f32 %v1791, %v1812
    %v1816 = vmul.f32 %v1792, %v1813
    %v1817 = vlaneseq
    %v1818 = vshrl.u32 %v1817, 7
    %v1819 = vsub.s32 0, %v1818
    %v1820 = vrot.slane %v1776, %v1819
    %v1821 = vmul.f32 %v1814, %v1820
    %v1822 = vmul.f32 %v1815, %v1820
    %v1823 = vmul.f32 %v1816, %v1820
    %v1824 = vlaneseq
    %v1825 = vshrl.u32 %v1824, 7
    %v1826 = vsub.s32 0, %v1825
    %v1827 = vrot.slane %v1777, %v1826
    %v1828 = vadd.f32 %v1821, %v1827
    %v1829 = vadd.f32 %v1822, %v1827
    %v1830 = vadd.f32 %v1823, %v1827
    %v1831 = vld [vmem:[%s6 + $0x8] sm:$0xff]
    %v1832 = vld [vmem:[%s6 + $0x18] sm:$0xff]
    %v1833 = vld [vmem:[%s6 + $0x28] sm:$0xff]
    %v1834 = vld [vmem:[%s6 + $0x38] sm:$0xff]
    %v1835 = vld [vmem:[%s6 + $0x48] ss:$0 sm:$0xff]
    %v1837 = vsel %vm525, %v1828, 0
    %v1840 = vsel %vm525, %v1829, 0
    %v1843 = vsel %vm525, %v1830, 0
    %1845 = vmatprep.subr.mxu0 0.0
    %1846 = vmatpush1.msra.mxu0 0.0
    %1847 = vmatprep.subr.mxu0 0.0
    %1848 = vmatpush1.msra.mxu0 0.0
    %1849 = vmatprep.subr.mxu0 0.0
    %1850 = vmatpush1.msra.mxu0 0.0
    %1851 = vmatprep.subr.mxu0 0.0
    %1852 = vmatpush1.msra.mxu0 0.0
    %1853 = vmatprep.subr.mxu0 0.0
    %1854 = vmatpush1.msra.mxu0 0.0
    %1855 = vmatprep.subr.mxu0 0.0
    %1856 = vmatpush1.msra.mxu0 0.0
    %1857 = vmatprep.subr.mxu0 0.0
    %1858 = vmatpush1.msra.mxu0 0.0
    %1859 = vmatprep.subr.mxu0 0.0
    %1860 = vmatpush1.msra.mxu0 0.0
    %1861 = vmatprep.subr.mxu0 0.0
    %1862 = vmatpush1.msra.mxu0 0.0
    %1863 = vmatprep.subr.mxu0 0.0
    %1864 = vmatpush1.msra.mxu0 0.0
    %1865 = vmatprep.subr.mxu0 0.0
    %1866 = vmatpush1.msra.mxu0 0.0
    %1867 = vmatprep.subr.mxu0 0.0
    %1868 = vmatpush1.msra.mxu0 0.0
    %1869 = vmatprep.subr.mxu0 0.0
    %1870 = vmatpush1.msra.mxu0 %v1834
    %1871 = vmatprep.subr.mxu0 0.0
    %1872 = vmatpush1.msra.mxu0 %v1833
    %1873 = vmatprep.subr.mxu0 0.0
    %1874 = vmatpush1.msra.mxu0 %v1832
    %1875 = vmatprep.subr.mxu0 0.0
    %1876 = vmatpush1.msra.mxu0 %v1831
    %1877 = vmatprep.subr.mxu0 0.0
    %1878 = vmatpush2.msra.mxu0 0.0
    %1879 = vmatprep.subr.mxu0 0.0
    %1880 = vmatpush2.msra.mxu0 0.0
    %1881 = vmatprep.subr.mxu0 0.0
    %1882 = vmatpush2.msra.mxu0 0.0
    %1883 = vmatprep.subr.mxu0 0.0
    %1884 = vmatpush2.msra.mxu0 0.0
    %1885 = vmatprep.subr.mxu0 0.0
    %1886 = vmatpush2.msra.mxu0 0.0
    %1887 = vmatprep.subr.mxu0 0.0
    %1888 = vmatpush2.msra.mxu0 0.0
    %1889 = vmatprep.subr.mxu0 0.0
    %1890 = vmatpush2.msra.mxu0 0.0
    %1891 = vmatprep.subr.mxu0 0.0
    %1892 = vmatpush2.msra.mxu0 0.0
    %1893 = vmatprep.subr.mxu0 0.0
    %1894 = vmatpush2.msra.mxu0 0.0
    %1895 = vmatprep.subr.mxu0 0.0
    %1896 = vmatpush2.msra.mxu0 0.0
    %1897 = vmatprep.subr.mxu0 0.0
    %1898 = vmatpush2.msra.mxu0 0.0
    %1899 = vmatprep.subr.mxu0 0.0
    %1900 = vmatpush2.msra.mxu0 0.0
    %1901 = vmatprep.subr.mxu0 0.0
    %1902 = vmatpush2.msra.mxu0 0.0
    %1903 = vmatprep.subr.mxu0 0.0
    %1904 = vmatpush2.msra.mxu0 0.0
    %1905 = vmatprep.subr.mxu0 0.0
    %1906 = vmatpush2.msra.mxu0 0.0
    %1907 = vmatprep.subr.mxu0 0.0
    %1908 = vmatpush2.msra.mxu0 0.0
    %1909 = vmatprep.mubr.f32.mxu0 0.0
    %1910 = vmatmul.mubr.f32.gmra.mxu0 %v1837
    %v1911 = vpop.f32.mrf.mxu0
    %v1912 = vadd.f32 %v1835, %v1911
    %v1913 = vpop.f32.mrf.mxu0
    %1914 = vmatprep.mubr.f32.mxu0 0.0
    %1915 = vmatmul.mubr.f32.gmra.mxu0 %v1840
    %v1916 = vpop.f32.mrf.mxu0
    %v1917 = vadd.f32 %v1835, %v1916
    %v1918 = vpop.f32.mrf.mxu0
    %1919 = vmatprep.mubr.f32.mxu0 0.0
    %1920 = vmatmul.mubr.f32.gmra.mxu0 %v1843
    %v1921 = vpop.f32.mrf.mxu0
    %v1922 = vadd.f32 %v1835, %v1921
    %v1923 = vpop.f32.mrf.mxu0
    %1924 = vdwg.mxu0
    %v1925 = vmul.f32 %v1912, 0.5
    %v1926 = vmul.f32 %v1917, 0.5
    %v1927 = vmul.f32 %v1922, 0.5
    %v1928 = vmul.f32 %v1912, 0.044715
    %v1929 = vmul.f32 %v1917, 0.044715
    %v1930 = vmul.f32 %v1922, 0.044715
    %v1931 = vmul.f32 %v1928, %v1912
    %v1932 = vmul.f32 %v1929, %v1917
    %v1933 = vmul.f32 %v1930, %v1922
    %v1934 = vmul.f32 %v1931, %v1912
    %v1935 = vmul.f32 %v1932, %v1917
    %v1936 = vmul.f32 %v1933, %v1922
    %v1937 = vadd.f32 %v1912, %v1934
    %v1938 = vadd.f32 %v1917, %v1935
    %v1939 = vadd.f32 %v1922, %v1936
    %v1940 = vmul.f32 %v1937, 0.7978846
    %v1941 = vmul.f32 %v1938, 0.7978846
    %v1942 = vmul.f32 %v1939, 0.7978846
    %v1943 = vtanh.pop %v1940
    %v1944 = vtanh.pop %v1941
    %v1945 = vtanh.pop %v1942
    %v1946 = vadd.f32 %v1943, 1.0
    %v1947 = vadd.f32 %v1944, 1.0
    %v1948 = vadd.f32 %v1945, 1.0
    %v1949 = vmul.f32 %v1925, %v1946
    %v1950 = vmul.f32 %v1926, %v1947
    %v1951 = vmul.f32 %v1927, %v1948
    %v1952 = vld [vmem:[%s7] sm:$0xff]
    %v1953 = vld [vmem:[%s7 + $0x8] sm:$0xff]
    %v1954 = vld [vmem:[%s7 + $0x10] sm:$0xff]
    %v1955 = vld [vmem:[%s7 + $0x18] sm:$0xff]
    %v1956 = vld [vmem:[%s7 + $0x20] sm:$0xff]
    %v1957 = vld [vmem:[%s7 + $0x28] sm:$0xff]
    %v1958 = vld [vmem:[%s7 + $0x30] sm:$0xff]
    %v1959 = vld [vmem:[%s7 + $0x38] sm:$0xff]
    %v1960 = vld [vmem:[%s7 + $0x40] sm:$0xff]
    %v1961 = vld [vmem:[%s7 + $0x48] sm:$0xff]
    %v1962 = vld [vmem:[%s7 + $0x50] sm:$0xff]
    %v1963 = vld [vmem:[%s7 + $0x58] sm:$0xff]
    %v1964 = vld [vmem:[%s7 + $0x60] sm:$0xff]
    %v1965 = vld [vmem:[%s7 + $0x68] sm:$0xff]
    %v1966 = vld [vmem:[%s7 + $0x70] sm:$0xff]
    %v1967 = vld [vmem:[%s7 + $0x78] sm:$0xff]
    %v1968 = vld [vmem:[%s7 + $0x80] sm:$0x1]
    %v1969 = vlaneseq
    %v1970 = vshrl.u32 %v1969, 7
    %v1971 = vsub.s32 0, %v1970
    %v1972 = vrot.slane %v1968, %v1971
    %1973 = vmatprep.subr.mxu0 0.0
    %1974 = vmatpush1.msra.mxu0 %v1967
    %1975 = vmatprep.subr.mxu0 0.0
    %1976 = vmatpush1.msra.mxu0 %v1966
    %1977 = vmatprep.subr.mxu0 0.0
    %1978 = vmatpush1.msra.mxu0 %v1965
    %1979 = vmatprep.subr.mxu0 0.0
    %1980 = vmatpush1.msra.mxu0 %v1964
    %1981 = vmatprep.subr.mxu0 0.0
    %1982 = vmatpush1.msra.mxu0 %v1963
    %1983 = vmatprep.subr.mxu0 0.0
    %1984 = vmatpush1.msra.mxu0 %v1962
    %1985 = vmatprep.subr.mxu0 0.0
    %1986 = vmatpush1.msra.mxu0 %v1961
    %1987 = vmatprep.subr.mxu0 0.0
    %1988 = vmatpush1.msra.mxu0 %v1960
    %1989 = vmatprep.subr.mxu0 0.0
    %1990 = vmatpush1.msra.mxu0 %v1959
    %1991 = vmatprep.subr.mxu0 0.0
    %1992 = vmatpush1.msra.mxu0 %v1958
    %1993 = vmatprep.subr.mxu0 0.0
    %1994 = vmatpush1.msra.mxu0 %v1957
    %1995 = vmatprep.subr.mxu0 0.0
    %1996 = vmatpush1.msra.mxu0 %v1956
    %1997 = vmatprep.subr.mxu0 0.0
    %1998 = vmatpush1.msra.mxu0 %v1955
    %1999 = vmatprep.subr.mxu0 0.0
    %2000 = vmatpush1.msra.mxu0 %v1954
    %2001 = vmatprep.subr.mxu0 0.0
    %2002 = vmatpush1.msra.mxu0 %v1953
    %2003 = vmatprep.subr.mxu0 0.0
    %2004 = vmatpush1.msra.mxu0 %v1952
    %2005 = vmatprep.subr.mxu0 0.0
    %2006 = vmatpush2.msra.mxu0 0.0
    %2007 = vmatprep.subr.mxu0 0.0
    %2008 = vmatpush2.msra.mxu0 0.0
    %2009 = vmatprep.subr.mxu0 0.0
    %2010 = vmatpush2.msra.mxu0 0.0
    %2011 = vmatprep.subr.mxu0 0.0
    %2012 = vmatpush2.msra.mxu0 0.0
    %2013 = vmatprep.subr.mxu0 0.0
    %2014 = vmatpush2.msra.mxu0 0.0
    %2015 = vmatprep.subr.mxu0 0.0
    %2016 = vmatpush2.msra.mxu0 0.0
    %2017 = vmatprep.subr.mxu0 0.0
    %2018 = vmatpush2.msra.mxu0 0.0
    %2019 = vmatprep.subr.mxu0 0.0
    %2020 = vmatpush2.msra.mxu0 0.0
    %2021 = vmatprep.subr.mxu0 0.0
    %2022 = vmatpush2.msra.mxu0 0.0
    %2023 = vmatprep.subr.mxu0 0.0
    %2024 = vmatpush2.msra.mxu0 0.0
    %2025 = vmatprep.subr.mxu0 0.0
    %2026 = vmatpush2.msra.mxu0 0.0
    %2027 = vmatprep.subr.mxu0 0.0
    %2028 = vmatpush2.msra.mxu0 0.0
    %2029 = vmatprep.subr.mxu0 0.0
    %2030 = vmatpush2.msra.mxu0 0.0
    %2031 = vmatprep.subr.mxu0 0.0
    %2032 = vmatpush2.msra.mxu0 0.0
    %2033 = vmatprep.subr.mxu0 0.0
    %2034 = vmatpush2.msra.mxu0 0.0
    %2035 = vmatprep.subr.mxu0 0.0
    %2036 = vmatpush2.msra.mxu0 0.0
    %2037 = vmatprep.mubr.f32.mxu0 0.0
    %2038 = vmatmul.mubr.f32.gmra.mxu0 %v1949
    %v2039 = vpop.f32.mrf.mxu0
    %v2040 = vadd.f32 %v1972, %v2039
    %v2041 = vpop.f32.mrf.mxu0
    %2042 = vmatprep.mubr.f32.mxu0 0.0
    %2043 = vmatmul.mubr.f32.gmra.mxu0 %v1950
    %v2044 = vpop.f32.mrf.mxu0
    %v2045 = vadd.f32 %v1972, %v2044
    %v2046 = vpop.f32.mrf.mxu0
    %2047 = vmatprep.mubr.f32.mxu0 0.0
    %2048 = vmatmul.mubr.f32.gmra.mxu0 %v1951
    %v2049 = vpop.f32.mrf.mxu0
    %v2050 = vadd.f32 %v1972, %v2049
    %v2051 = vpop.f32.mrf.mxu0
    %2052 = vdwg.mxu0
    %v2053 = vadd.f32 %v1773, %v2040
    %v2054 = vadd.f32 %v1774, %v2045
    %v2055 = vadd.f32 %v1775, %v2050
    %v2056 = vld [vmem:[%s5 + $0x4] sm:$0x1]
    %v2057 = vld [vmem:[%s5 + $0x5] sm:$0x1]
    %v2058 = vsel %vm525, %v2053, 0.0
    %2059 = vadd.xlane.f32.xlu0 %v2058
    %v2060 = vpop.xlane.xlu0 %2059
    %v2061 = vsel %vm525, %v2054, 0.0
    %2062 = vadd.xlane.f32.xlu0 %v2061
    %v2063 = vpop.xlane.xlu0 %2062
    %v2064 = vsel %vm525, %v2055, 0.0
    %2065 = vadd.xlane.f32.xlu0 %v2064
    %v2066 = vpop.xlane.xlu0 %2065
    %v2067 = vmul.f32 %v2060, %v535
    %v2068 = vmul.f32 %v2063, %v535
    %v2069 = vmul.f32 %v2066, %v535
    %v2070 = vsub.f32 %v2053, %v2067
    %v2071 = vsub.f32 %v2054, %v2068
    %v2072 = vsub.f32 %v2055, %v2069
    %v2073 = vmul.f32 %v2070, %v2070
    %v2074 = vmul.f32 %v2071, %v2071
    %v2075 = vmul.f32 %v2072, %v2072
    %v2076 = vsel %vm525, %v2073, 0.0
    %2077 = vadd.xlane.f32.xlu0 %v2076
    %v2078 = vpop.xlane.xlu0 %2077
    %v2079 = vsel %vm525, %v2074, 0.0
    %2080 = vadd.xlane.f32.xlu0 %v2079
    %v2081 = vpop.xlane.xlu0 %2080
    %v2082 = vsel %vm525, %v2075, 0.0
    %2083 = vadd.xlane.f32.xlu0 %v2082
    %v2084 = vpop.xlane.xlu0 %2083
    %v2085 = vmul.f32 %v2078, %v535
    %v2086 = vmul.f32 %v2081, %v535
    %v2087 = vmul.f32 %v2084, %v535
    %v2088 = vadd.f32 %v2085, 1e-05
    %v2089 = vadd.f32 %v2086, 1e-05
    %v2090 = vadd.f32 %v2087, 1e-05
    %v2091 = vrsqrt.pop %v2088
    %v2092 = vrsqrt.pop %v2089
    %v2093 = vrsqrt.pop %v2090
    %v2094 = vmul.f32 %v2070, %v2091
    %v2095 = vmul.f32 %v2071, %v2092
    %v2096 = vmul.f32 %v2072, %v2093
    %v2097 = vlaneseq
    %v2098 = vshrl.u32 %v2097, 7
    %v2099 = vsub.s32 0, %v2098
    %v2100 = vrot.slane %v2056, %v2099
    %v2101 = vmul.f32 %v2094, %v2100
    %v2102 = vmul.f32 %v2095, %v2100
    %v2103 = vmul.f32 %v2096, %v2100
    %v2104 = vlaneseq
    %v2105 = vshrl.u32 %v2104, 7
    %v2106 = vsub.s32 0, %v2105
    %v2107 = vrot.slane %v2057, %v2106
    %v2108 = vadd.f32 %v2101, %v2107
    %v2109 = vadd.f32 %v2102, %v2107
    %v2110 = vadd.f32 %v2103, %v2107
    %s2111 = scalar_lea.vmem %s6, 80
    %v2112 = vld [vmem:[%s2111] sm:$0xff]
    %v2113 = vld [vmem:[%s2111 + $0x10] sm:$0xff]
    %v2114 = vld [vmem:[%s2111 + $0x20] sm:$0xff]
    %v2115 = vld [vmem:[%s2111 + $0x30] sm:$0xff]
    %v2116 = vld [vmem:[%s2111 + $0x40] ss:$0 sm:$0xff]
    %v2118 = vsel %vm525, %v2108, 0
    %v2121 = vsel %vm525, %v2109, 0
    %v2124 = vsel %vm525, %v2110, 0
    %2126 = vmatprep.subr.mxu0 0.0
    %2127 = vmatpush1.msra.mxu0 0.0
    %2128 = vmatprep.subr.mxu0 0.0
    %2129 = vmatpush1.msra.mxu0 0.0
    %2130 = vmatprep.subr.mxu0 0.0
    %2131 = vmatpush1.msra.mxu0 0.0
    %2132 = vmatprep.subr.mxu0 0.0
    %2133 = vmatpush1.msra.mxu0 0.0
    %2134 = vmatprep.subr.mxu0 0.0
    %2135 = vmatpush1.msra.mxu0 0.0
    %2136 = vmatprep.subr.mxu0 0.0
    %2137 = vmatpush1.msra.mxu0 0.0
    %2138 = vmatprep.subr.mxu0 0.0
    %2139 = vmatpush1.msra.mxu0 0.0
    %2140 = vmatprep.subr.mxu0 0.0
    %2141 = vmatpush1.msra.mxu0 0.0
    %2142 = vmatprep.subr.mxu0 0.0
    %2143 = vmatpush1.msra.mxu0 0.0
    %2144 = vmatprep.subr.mxu0 0.0
    %2145 = vmatpush1.msra.mxu0 0.0
    %2146 = vmatprep.subr.mxu0 0.0
    %2147 = vmatpush1.msra.mxu0 0.0
    %2148 = vmatprep.subr.mxu0 0.0
    %2149 = vmatpush1.msra.mxu0 0.0
    %2150 = vmatprep.subr.mxu0 0.0
    %2151 = vmatpush1.msra.mxu0 %v2115
    %2152 = vmatprep.subr.mxu0 0.0
    %2153 = vmatpush1.msra.mxu0 %v2114
    %2154 = vmatprep.subr.mxu0 0.0
    %2155 = vmatpush1.msra.mxu0 %v2113
    %2156 = vmatprep.subr.mxu0 0.0
    %2157 = vmatpush1.msra.mxu0 %v2112
    %2158 = vmatprep.subr.mxu0 0.0
    %2159 = vmatpush2.msra.mxu0 0.0
    %2160 = vmatprep.subr.mxu0 0.0
    %2161 = vmatpush2.msra.mxu0 0.0
    %2162 = vmatprep.subr.mxu0 0.0
    %2163 = vmatpush2.msra.mxu0 0.0
    %2164 = vmatprep.subr.mxu0 0.0
    %2165 = vmatpush2.msra.mxu0 0.0
    %2166 = vmatprep.subr.mxu0 0.0
    %2167 = vmatpush2.msra.mxu0 0.0
    %2168 = vmatprep.subr.mxu0 0.0
    %2169 = vmatpush2.msra.mxu0 0.0
    %2170 = vmatprep.subr.mxu0 0.0
    %2171 = vmatpush2.msra.mxu0 0.0
    %2172 = vmatprep.subr.mxu0 0.0
    %2173 = vmatpush2.msra.mxu0 0.0
    %2174 = vmatprep.subr.mxu0 0.0
    %2175 = vmatpush2.msra.mxu0 0.0
    %2176 = vmatprep.subr.mxu0 0.0
    %2177 = vmatpush2.msra.mxu0 0.0
    %2178 = vmatprep.subr.mxu0 0.0
    %2179 = vmatpush2.msra.mxu0 0.0
    %2180 = vmatprep.subr.mxu0 0.0
    %2181 = vmatpush2.msra.mxu0 0.0
    %2182 = vmatprep.subr.mxu0 0.0
    %2183 = vmatpush2.msra.mxu0 0.0
    %2184 = vmatprep.subr.mxu0 0.0
    %2185 = vmatpush2.msra.mxu0 0.0
    %2186 = vmatprep.subr.mxu0 0.0
    %2187 = vmatpush2.msra.mxu0 0.0
    %2188 = vmatprep.subr.mxu0 0.0
    %2189 = vmatpush2.msra.mxu0 0.0
    %2190 = vmatprep.mubr.f32.mxu0 0.0
    %2191 = vmatmul.mubr.f32.gmra.mxu0 %v2118
    %v2192 = vpop.f32.mrf.mxu0
    %v2193 = vadd.f32 %v2116, %v2192
    %v2194 = vpop.f32.mrf.mxu0
    %2195 = vmatprep.mubr.f32.mxu0 0.0
    %2196 = vmatmul.mubr.f32.gmra.mxu0 %v2121
    %v2197 = vpop.f32.mrf.mxu0
    %v2198 = vadd.f32 %v2116, %v2197
    %v2199 = vpop.f32.mrf.mxu0
    %2200 = vmatprep.mubr.f32.mxu0 0.0
    %2201 = vmatmul.mubr.f32.gmra.mxu0 %v2124
    %v2202 = vpop.f32.mrf.mxu0
    %v2203 = vadd.f32 %v2116, %v2202
    %v2204 = vpop.f32.mrf.mxu0
    %2205 = vdwg.mxu0
    %v2206 = vmul.f32 %v2193, 0.35355338
    %v2207 = vmul.f32 %v2198, 0.35355338
    %v2208 = vmul.f32 %v2203, 0.35355338
    %2212 = vrot.lane.b32.xlu0 %v2193, 96
    %v2213 = vpop.permute.xlu0 %2212
    %2214 = vrot.lane.b32.xlu0 %v2198, 96
    %v2215 = vpop.permute.xlu0 %2214
    %2216 = vrot.lane.b32.xlu0 %v2203, 96
    %v2217 = vpop.permute.xlu0 %2216
    %v2219 = vsel %vm686, %v2206, 0
    %v2222 = vsel %vm686, %v2207, 0
    %v2225 = vsel %vm686, %v2208, 0
    %v2227 = vsel %vm686, %v2213, 0
    %v2229 = vsel %vm686, %v2215, 0
    %v2231 = vsel %vm686, %v2217, 0
    %2233 = vmatprep.subr.mxu0 0.0
    %2234 = vmatpush1.xpose.msra.mxu0 0.0
    %2235 = vmatprep.subr.mxu0 0.0
    %2236 = vmatpush1.xpose.msra.mxu0 0.0
    %2237 = vmatprep.subr.mxu0 0.0
    %2238 = vmatpush1.xpose.msra.mxu0 0.0
    %2239 = vmatprep.subr.mxu0 0.0
    %2240 = vmatpush1.xpose.msra.mxu0 0.0
    %2241 = vmatprep.subr.mxu0 0.0
    %2242 = vmatpush1.xpose.msra.mxu0 0.0
    %2243 = vmatprep.subr.mxu0 0.0
    %2244 = vmatpush1.xpose.msra.mxu0 0.0
    %2245 = vmatprep.subr.mxu0 0.0
    %2246 = vmatpush1.xpose.msra.mxu0 0.0
    %2247 = vmatprep.subr.mxu0 0.0
    %2248 = vmatpush1.xpose.msra.mxu0 0.0
    %2249 = vmatprep.subr.mxu0 0.0
    %2250 = vmatpush1.xpose.msra.mxu0 0.0
    %2251 = vmatprep.subr.mxu0 0.0
    %2252 = vmatpush1.xpose.msra.mxu0 0.0
    %2253 = vmatprep.subr.mxu0 0.0
    %2254 = vmatpush1.xpose.msra.mxu0 0.0
    %2255 = vmatprep.subr.mxu0 0.0
    %2256 = vmatpush1.xpose.msra.mxu0 0.0
    %2257 = vmatprep.subr.mxu0 0.0
    %2258 = vmatpush1.xpose.msra.mxu0 0.0
    %2259 = vmatprep.subr.mxu0 0.0
    %2260 = vmatpush1.xpose.msra.mxu0 %v2231
    %2261 = vmatprep.subr.mxu0 0.0
    %2262 = vmatpush1.xpose.msra.mxu0 %v2229
    %2263 = vmatprep.subr.mxu0 0.0
    %2264 = vmatpush1.xpose.msra.mxu0 %v2227
    %2265 = vmatprep.subr.mxu0 0.0
    %2266 = vmatpush2.xpose.msra.mxu0 0.0
    %2267 = vmatprep.subr.mxu0 0.0
    %2268 = vmatpush2.xpose.msra.mxu0 0.0
    %2269 = vmatprep.subr.mxu0 0.0
    %2270 = vmatpush2.xpose.msra.mxu0 0.0
    %2271 = vmatprep.subr.mxu0 0.0
    %2272 = vmatpush2.xpose.msra.mxu0 0.0
    %2273 = vmatprep.subr.mxu0 0.0
    %2274 = vmatpush2.xpose.msra.mxu0 0.0
    %2275 = vmatprep.subr.mxu0 0.0
    %2276 = vmatpush2.xpose.msra.mxu0 0.0
    %2277 = vmatprep.subr.mxu0 0.0
    %2278 = vmatpush2.xpose.msra.mxu0 0.0
    %2279 = vmatprep.subr.mxu0 0.0
    %2280 = vmatpush2.xpose.msra.mxu0 0.0
    %2281 = vmatprep.subr.mxu0 0.0
    %2282 = vmatpush2.xpose.msra.mxu0 0.0
    %2283 = vmatprep.subr.mxu0 0.0
    %2284 = vmatpush2.xpose.msra.mxu0 0.0
    %2285 = vmatprep.subr.mxu0 0.0
    %2286 = vmatpush2.xpose.msra.mxu0 0.0
    %2287 = vmatprep.subr.mxu0 0.0
    %2288 = vmatpush2.xpose.msra.mxu0 0.0
    %2289 = vmatprep.subr.mxu0 0.0
    %2290 = vmatpush2.xpose.msra.mxu0 0.0
    %2291 = vmatprep.subr.mxu0 0.0
    %2292 = vmatpush2.xpose.msra.mxu0 0.0
    %2293 = vmatprep.subr.mxu0 0.0
    %2294 = vmatpush2.xpose.msra.mxu0 0.0
    %2295 = vmatprep.subr.mxu0 0.0
    %2296 = vmatpush2.xpose.msra.mxu0 0.0
    %2297 = vmatprep.mubr.f32.mxu0 0.0
    %2298 = vmatmul.mubr.f32.gmra.mxu0 %v2219
    %v2299 = vpop.f32.mrf.mxu0
    %v2300 = vadd.f32 %v520, %v2299
    %v2301 = vpop.f32.mrf.mxu0
    %2302 = vmatprep.mubr.f32.mxu0 0.0
    %2303 = vmatmul.mubr.f32.gmra.mxu0 %v2222
    %v2304 = vpop.f32.mrf.mxu0
    %v2305 = vadd.f32 %v521, %v2304
    %v2306 = vpop.f32.mrf.mxu0
    %2307 = vmatprep.mubr.f32.mxu0 0.0
    %2308 = vmatmul.mubr.f32.gmra.mxu0 %v2225
    %v2309 = vpop.f32.mrf.mxu0
    %v2310 = vadd.f32 %v522, %v2309
    %v2311 = vpop.f32.mrf.mxu0
    %2312 = vdwg.mxu0
    %v2313 = vsel %vm782, %v2300, -inf
    %2314 = vmax.xlane.f32.xlu0 %v2313
    %v2315 = vpop.xlane.xlu0 %2314
    %v2316 = vsel %vm782, %v2305, -inf
    %2317 = vmax.xlane.f32.xlu0 %v2316
    %v2318 = vpop.xlane.xlu0 %2317
    %v2319 = vsel %vm782, %v2310, -inf
    %2320 = vmax.xlane.f32.xlu0 %v2319
    %v2321 = vpop.xlane.xlu0 %2320
    %v2322 = vsub.f32 %v2300, %v2315
    %v2323 = vsub.f32 %v2305, %v2318
    %v2324 = vsub.f32 %v2310, %v2321
    %v2325 = vmul.f32 %v2322, 1.442695
    %v2326 = vpow.pop %v2325
    %v2327 = vmul.f32 %v2323, 1.442695
    %v2328 = vpow.pop %v2327
    %v2329 = vmul.f32 %v2324, 1.442695
    %v2330 = vpow.pop %v2329
    %v2331 = vsel %vm782, %v2326, 0.0
    %2332 = vadd.xlane.f32.xlu0 %v2331
    %v2333 = vpop.xlane.xlu0 %2332
    %v2334 = vsel %vm782, %v2328, 0.0
    %2335 = vadd.xlane.f32.xlu0 %v2334
    %v2336 = vpop.xlane.xlu0 %2335
    %v2337 = vsel %vm782, %v2330, 0.0
    %2338 = vadd.xlane.f32.xlu0 %v2337
    %v2339 = vpop.xlane.xlu0 %2338
    %v2340 = vrcp.pop %v2333
    %v2341 = vrcp.pop %v2336
    %v2342 = vrcp.pop %v2339
    %v2343 = vmul.f32 %v2326, %v2340
    %v2344 = vmul.f32 %v2328, %v2341
    %v2345 = vmul.f32 %v2330, %v2342
    %2346 = vrot.lane.b32.xlu0 %v2193, 64
    %v2347 = vpop.permute.xlu0 %2346
    %2348 = vrot.lane.b32.xlu0 %v2198, 64
    %v2349 = vpop.permute.xlu0 %2348
    %2350 = vrot.lane.b32.xlu0 %v2203, 64
    %v2351 = vpop.permute.xlu0 %2350
    %v2356 = vsel %vm782, %v2343, 0
    %v2359 = vsel %vm782, %v2344, 0
    %v2362 = vsel %vm782, %v2345, 0
    %2364 = vmatprep.subr.mxu0 0.0
    %2365 = vmatpush1.msra.mxu0 0.0
    %2366 = vmatprep.subr.mxu0 0.0
    %2367 = vmatpush1.msra.mxu0 0.0
    %2368 = vmatprep.subr.mxu0 0.0
    %2369 = vmatpush1.msra.mxu0 0.0
    %2370 = vmatprep.subr.mxu0 0.0
    %2371 = vmatpush1.msra.mxu0 0.0
    %2372 = vmatprep.subr.mxu0 0.0
    %2373 = vmatpush1.msra.mxu0 0.0
    %2374 = vmatprep.subr.mxu0 0.0
    %2375 = vmatpush1.msra.mxu0 0.0
    %2376 = vmatprep.subr.mxu0 0.0
    %2377 = vmatpush1.msra.mxu0 0.0
    %2378 = vmatprep.subr.mxu0 0.0
    %2379 = vmatpush1.msra.mxu0 0.0
    %2380 = vmatprep.subr.mxu0 0.0
    %2381 = vmatpush1.msra.mxu0 0.0
    %2382 = vmatprep.subr.mxu0 0.0
    %2383 = vmatpush1.msra.mxu0 0.0
    %2384 = vmatprep.subr.mxu0 0.0
    %2385 = vmatpush1.msra.mxu0 0.0
    %2386 = vmatprep.subr.mxu0 0.0
    %2387 = vmatpush1.msra.mxu0 0.0
    %2388 = vmatprep.subr.mxu0 0.0
    %2389 = vmatpush1.msra.mxu0 0.0
    %2390 = vmatprep.subr.mxu0 0.0
    %2391 = vmatpush1.msra.mxu0 %v2351
    %2392 = vmatprep.subr.mxu0 0.0
    %2393 = vmatpush1.msra.mxu0 %v2349
    %2394 = vmatprep.subr.mxu0 0.0
    %2395 = vmatpush1.msra.mxu0 %v2347
    %2396 = vmatprep.subr.mxu0 0.0
    %2397 = vmatpush2.msra.mxu0 0.0
    %2398 = vmatprep.subr.mxu0 0.0
    %2399 = vmatpush2.msra.mxu0 0.0
    %2400 = vmatprep.subr.mxu0 0.0
    %2401 = vmatpush2.msra.mxu0 0.0
    %2402 = vmatprep.subr.mxu0 0.0
    %2403 = vmatpush2.msra.mxu0 0.0
    %2404 = vmatprep.subr.mxu0 0.0
    %2405 = vmatpush2.msra.mxu0 0.0
    %2406 = vmatprep.subr.mxu0 0.0
    %2407 = vmatpush2.msra.mxu0 0.0
    %2408 = vmatprep.subr.mxu0 0.0
    %2409 = vmatpush2.msra.mxu0 0.0
    %2410 = vmatprep.subr.mxu0 0.0
    %2411 = vmatpush2.msra.mxu0 0.0
    %2412 = vmatprep.subr.mxu0 0.0
    %2413 = vmatpush2.msra.mxu0 0.0
    %2414 = vmatprep.subr.mxu0 0.0
    %2415 = vmatpush2.msra.mxu0 0.0
    %2416 = vmatprep.subr.mxu0 0.0
    %2417 = vmatpush2.msra.mxu0 0.0
    %2418 = vmatprep.subr.mxu0 0.0
    %2419 = vmatpush2.msra.mxu0 0.0
    %2420 = vmatprep.subr.mxu0 0.0
    %2421 = vmatpush2.msra.mxu0 0.0
    %2422 = vmatprep.subr.mxu0 0.0
    %2423 = vmatpush2.msra.mxu0 0.0
    %2424 = vmatprep.subr.mxu0 0.0
    %2425 = vmatpush2.msra.mxu0 0.0
    %2426 = vmatprep.subr.mxu0 0.0
    %2427 = vmatpush2.msra.mxu0 0.0
    %2428 = vmatprep.mubr.f32.mxu0 0.0
    %2429 = vmatmul.mubr.f32.gmra.mxu0 %v2356
    %v2430 = vpop.f32.mrf.mxu0
    %v2431 = vadd.f32 0.0, %v2430
    %v2432 = vpop.f32.mrf.mxu0
    %2433 = vmatprep.mubr.f32.mxu0 0.0
    %2434 = vmatmul.mubr.f32.gmra.mxu0 %v2359
    %v2435 = vpop.f32.mrf.mxu0
    %v2436 = vadd.f32 0.0, %v2435
    %v2437 = vpop.f32.mrf.mxu0
    %2438 = vmatprep.mubr.f32.mxu0 0.0
    %2439 = vmatmul.mubr.f32.gmra.mxu0 %v2362
    %v2440 = vpop.f32.mrf.mxu0
    %v2441 = vadd.f32 0.0, %v2440
    %v2442 = vpop.f32.mrf.mxu0
    %2443 = vdwg.mxu0
    %2444 = vrot.lane.b32.xlu0 %v2206, 120
    %v2445 = vpop.permute.xlu0 %2444
    %2446 = vrot.lane.b32.xlu0 %v2207, 120
    %v2447 = vpop.permute.xlu0 %2446
    %2448 = vrot.lane.b32.xlu0 %v2208, 120
    %v2449 = vpop.permute.xlu0 %2448
    %2450 = vrot.lane.b32.xlu0 %v2193, 88
    %v2451 = vpop.permute.xlu0 %2450
    %2452 = vrot.lane.b32.xlu0 %v2198, 88
    %v2453 = vpop.permute.xlu0 %2452
    %2454 = vrot.lane.b32.xlu0 %v2203, 88
    %v2455 = vpop.permute.xlu0 %2454
    %v2456 = vsel %vm686, %v2445, 0
    %v2458 = vsel %vm686, %v2447, 0
    %v2460 = vsel %vm686, %v2449, 0
    %v2462 = vsel %vm686, %v2451, 0
    %v2464 = vsel %vm686, %v2453, 0
    %v2466 = vsel %vm686, %v2455, 0
    %2468 = vmatprep.subr.mxu0 0.0
    %2469 = vmatpush1.xpose.msra.mxu0 0.0
    %2470 = vmatprep.subr.mxu0 0.0
    %2471 = vmatpush1.xpose.msra.mxu0 0.0
    %2472 = vmatprep.subr.mxu0 0.0
    %2473 = vmatpush1.xpose.msra.mxu0 0.0
    %2474 = vmatprep.subr.mxu0 0.0
    %2475 = vmatpush1.xpose.msra.mxu0 0.0
    %2476 = vmatprep.subr.mxu0 0.0
    %2477 = vmatpush1.xpose.msra.mxu0 0.0
    %2478 = vmatprep.subr.mxu0 0.0
    %2479 = vmatpush1.xpose.msra.mxu0 0.0
    %2480 = vmatprep.subr.mxu0 0.0
    %2481 = vmatpush1.xpose.msra.mxu0 0.0
    %2482 = vmatprep.subr.mxu0 0.0
    %2483 = vmatpush1.xpose.msra.mxu0 0.0
    %2484 = vmatprep.subr.mxu0 0.0
    %2485 = vmatpush1.xpose.msra.mxu0 0.0
    %2486 = vmatprep.subr.mxu0 0.0
    %2487 = vmatpush1.xpose.msra.mxu0 0.0
    %2488 = vmatprep.subr.mxu0 0.0
    %2489 = vmatpush1.xpose.msra.mxu0 0.0
    %2490 = vmatprep.subr.mxu0 0.0
    %2491 = vmatpush1.xpose.msra.mxu0 0.0
    %2492 = vmatprep.subr.mxu0 0.0
    %2493 = vmatpush1.xpose.msra.mxu0 0.0
    %2494 = vmatprep.subr.mxu0 0.0
    %2495 = vmatpush1.xpose.msra.mxu0 %v2466
    %2496 = vmatprep.subr.mxu0 0.0
    %2497 = vmatpush1.xpose.msra.mxu0 %v2464
    %2498 = vmatprep.subr.mxu0 0.0
    %2499 = vmatpush1.xpose.msra.mxu0 %v2462
    %2500 = vmatprep.subr.mxu0 0.0
    %2501 = vmatpush2.xpose.msra.mxu0 0.0
    %2502 = vmatprep.subr.mxu0 0.0
    %2503 = vmatpush2.xpose.msra.mxu0 0.0
    %2504 = vmatprep.subr.mxu0 0.0
    %2505 = vmatpush2.xpose.msra.mxu0 0.0
    %2506 = vmatprep.subr.mxu0 0.0
    %2507 = vmatpush2.xpose.msra.mxu0 0.0
    %2508 = vmatprep.subr.mxu0 0.0
    %2509 = vmatpush2.xpose.msra.mxu0 0.0
    %2510 = vmatprep.subr.mxu0 0.0
    %2511 = vmatpush2.xpose.msra.mxu0 0.0
    %2512 = vmatprep.subr.mxu0 0.0
    %2513 = vmatpush2.xpose.msra.mxu0 0.0
    %2514 = vmatprep.subr.mxu0 0.0
    %2515 = vmatpush2.xpose.msra.mxu0 0.0
    %2516 = vmatprep.subr.mxu0 0.0
    %2517 = vmatpush2.xpose.msra.mxu0 0.0
    %2518 = vmatprep.subr.mxu0 0.0
    %2519 = vmatpush2.xpose.msra.mxu0 0.0
    %2520 = vmatprep.subr.mxu0 0.0
    %2521 = vmatpush2.xpose.msra.mxu0 0.0
    %2522 = vmatprep.subr.mxu0 0.0
    %2523 = vmatpush2.xpose.msra.mxu0 0.0
    %2524 = vmatprep.subr.mxu0 0.0
    %2525 = vmatpush2.xpose.msra.mxu0 0.0
    %2526 = vmatprep.subr.mxu0 0.0
    %2527 = vmatpush2.xpose.msra.mxu0 0.0
    %2528 = vmatprep.subr.mxu0 0.0
    %2529 = vmatpush2.xpose.msra.mxu0 0.0
    %2530 = vmatprep.subr.mxu0 0.0
    %2531 = vmatpush2.xpose.msra.mxu0 0.0
    %2532 = vmatprep.mubr.f32.mxu0 0.0
    %2533 = vmatmul.mubr.f32.gmra.mxu0 %v2456
    %v2534 = vpop.f32.mrf.mxu0
    %v2535 = vadd.f32 %v520, %v2534
    %v2536 = vpop.f32.mrf.mxu0
    %2537 = vmatprep.mubr.f32.mxu0 0.0
    %2538 = vmatmul.mubr.f32.gmra.mxu0 %v2458
    %v2539 = vpop.f32.mrf.mxu0
    %v2540 = vadd.f32 %v521, %v2539
    %v2541 = vpop.f32.mrf.mxu0
    %2542 = vmatprep.mubr.f32.mxu0 0.0
    %2543 = vmatmul.mubr.f32.gmra.mxu0 %v2460
    %v2544 = vpop.f32.mrf.mxu0
    %v2545 = vadd.f32 %v522, %v2544
    %v2546 = vpop.f32.mrf.mxu0
    %2547 = vdwg.mxu0
    %v2548 = vsel %vm782, %v2535, -inf
    %2549 = vmax.xlane.f32.xlu0 %v2548
    %v2550 = vpop.xlane.xlu0 %2549
    %v2551 = vsel %vm782, %v2540, -inf
    %2552 = vmax.xlane.f32.xlu0 %v2551
    %v2553 = vpop.xlane.xlu0 %2552
    %v2554 = vsel %vm782, %v2545, -inf
    %2555 = vmax.xlane.f32.xlu0 %v2554
    %v2556 = vpop.xlane.xlu0 %2555
    %v2557 = vsub.f32 %v2535, %v2550
    %v2558 = vsub.f32 %v2540, %v2553
    %v2559 = vsub.f32 %v2545, %v2556
    %v2560 = vmul.f32 %v2557, 1.442695
    %v2561 = vpow.pop %v2560
    %v2562 = vmul.f32 %v2558, 1.442695
    %v2563 = vpow.pop %v2562
    %v2564 = vmul.f32 %v2559, 1.442695
    %v2565 = vpow.pop %v2564
    %v2566 = vsel %vm782, %v2561, 0.0
    %2567 = vadd.xlane.f32.xlu0 %v2566
    %v2568 = vpop.xlane.xlu0 %2567
    %v2569 = vsel %vm782, %v2563, 0.0
    %2570 = vadd.xlane.f32.xlu0 %v2569
    %v2571 = vpop.xlane.xlu0 %2570
    %v2572 = vsel %vm782, %v2565, 0.0
    %2573 = vadd.xlane.f32.xlu0 %v2572
    %v2574 = vpop.xlane.xlu0 %2573
    %v2575 = vrcp.pop %v2568
    %v2576 = vrcp.pop %v2571
    %v2577 = vrcp.pop %v2574
    %v2578 = vmul.f32 %v2561, %v2575
    %v2579 = vmul.f32 %v2563, %v2576
    %v2580 = vmul.f32 %v2565, %v2577
    %2581 = vrot.lane.b32.xlu0 %v2193, 56
    %v2582 = vpop.permute.xlu0 %2581
    %2583 = vrot.lane.b32.xlu0 %v2198, 56
    %v2584 = vpop.permute.xlu0 %2583
    %2585 = vrot.lane.b32.xlu0 %v2203, 56
    %v2586 = vpop.permute.xlu0 %2585
    %v2591 = vsel %vm782, %v2578, 0
    %v2594 = vsel %vm782, %v2579, 0
    %v2597 = vsel %vm782, %v2580, 0
    %2599 = vmatprep.subr.mxu0 0.0
    %2600 = vmatpush1.msra.mxu0 0.0
    %2601 = vmatprep.subr.mxu0 0.0
    %2602 = vmatpush1.msra.mxu0 0.0
    %2603 = vmatprep.subr.mxu0 0.0
    %2604 = vmatpush1.msra.mxu0 0.0
    %2605 = vmatprep.subr.mxu0 0.0
    %2606 = vmatpush1.msra.mxu0 0.0
    %2607 = vmatprep.subr.mxu0 0.0
    %2608 = vmatpush1.msra.mxu0 0.0
    %2609 = vmatprep.subr.mxu0 0.0
    %2610 = vmatpush1.msra.mxu0 0.0
    %2611 = vmatprep.subr.mxu0 0.0
    %2612 = vmatpush1.msra.mxu0 0.0
    %2613 = vmatprep.subr.mxu0 0.0
    %2614 = vmatpush1.msra.mxu0 0.0
    %2615 = vmatprep.subr.mxu0 0.0
    %2616 = vmatpush1.msra.mxu0 0.0
    %2617 = vmatprep.subr.mxu0 0.0
    %2618 = vmatpush1.msra.mxu0 0.0
    %2619 = vmatprep.subr.mxu0 0.0
    %2620 = vmatpush1.msra.mxu0 0.0
    %2621 = vmatprep.subr.mxu0 0.0
    %2622 = vmatpush1.msra.mxu0 0.0
    %2623 = vmatprep.subr.mxu0 0.0
    %2624 = vmatpush1.msra.mxu0 0.0
    %2625 = vmatprep.subr.mxu0 0.0
    %2626 = vmatpush1.msra.mxu0 %v2586
    %2627 = vmatprep.subr.mxu0 0.0
    %2628 = vmatpush1.msra.mxu0 %v2584
    %2629 = vmatprep.subr.mxu0 0.0
    %2630 = vmatpush1.msra.mxu0 %v2582
    %2631 = vmatprep.subr.mxu0 0.0
    %2632 = vmatpush2.msra.mxu0 0.0
    %2633 = vmatprep.subr.mxu0 0.0
    %2634 = vmatpush2.msra.mxu0 0.0
    %2635 = vmatprep.subr.mxu0 0.0
    %2636 = vmatpush2.msra.mxu0 0.0
    %2637 = vmatprep.subr.mxu0 0.0
    %2638 = vmatpush2.msra.mxu0 0.0
    %2639 = vmatprep.subr.mxu0 0.0
    %2640 = vmatpush2.msra.mxu0 0.0
    %2641 = vmatprep.subr.mxu0 0.0
    %2642 = vmatpush2.msra.mxu0 0.0
    %2643 = vmatprep.subr.mxu0 0.0
    %2644 = vmatpush2.msra.mxu0 0.0
    %2645 = vmatprep.subr.mxu0 0.0
    %2646 = vmatpush2.msra.mxu0 0.0
    %2647 = vmatprep.subr.mxu0 0.0
    %2648 = vmatpush2.msra.mxu0 0.0
    %2649 = vmatprep.subr.mxu0 0.0
    %2650 = vmatpush2.msra.mxu0 0.0
    %2651 = vmatprep.subr.mxu0 0.0
    %2652 = vmatpush2.msra.mxu0 0.0
    %2653 = vmatprep.subr.mxu0 0.0
    %2654 = vmatpush2.msra.mxu0 0.0
    %2655 = vmatprep.subr.mxu0 0.0
    %2656 = vmatpush2.msra.mxu0 0.0
    %2657 = vmatprep.subr.mxu0 0.0
    %2658 = vmatpush2.msra.mxu0 0.0
    %2659 = vmatprep.subr.mxu0 0.0
    %2660 = vmatpush2.msra.mxu0 0.0
    %2661 = vmatprep.subr.mxu0 0.0
    %2662 = vmatpush2.msra.mxu0 0.0
    %2663 = vmatprep.mubr.f32.mxu0 0.0
    %2664 = vmatmul.mubr.f32.gmra.mxu0 %v2591
    %v2665 = vpop.f32.mrf.mxu0
    %v2666 = vadd.f32 0.0, %v2665
    %v2667 = vpop.f32.mrf.mxu0
    %2668 = vmatprep.mubr.f32.mxu0 0.0
    %2669 = vmatmul.mubr.f32.gmra.mxu0 %v2594
    %v2670 = vpop.f32.mrf.mxu0
    %v2671 = vadd.f32 0.0, %v2670
    %v2672 = vpop.f32.mrf.mxu0
    %2673 = vmatprep.mubr.f32.mxu0 0.0
    %2674 = vmatmul.mubr.f32.gmra.mxu0 %v2597
    %v2675 = vpop.f32.mrf.mxu0
    %v2676 = vadd.f32 0.0, %v2675
    %v2677 = vpop.f32.mrf.mxu0
    %2678 = vdwg.mxu0
    %2679 = vrot.lane.b32.xlu0 %v2206, 112
    %v2680 = vpop.permute.xlu0 %2679
    %2681 = vrot.lane.b32.xlu0 %v2207, 112
    %v2682 = vpop.permute.xlu0 %2681
    %2683 = vrot.lane.b32.xlu0 %v2208, 112
    %v2684 = vpop.permute.xlu0 %2683
    %2685 = vrot.lane.b32.xlu0 %v2193, 80
    %v2686 = vpop.permute.xlu0 %2685
    %2687 = vrot.lane.b32.xlu0 %v2198, 80
    %v2688 = vpop.permute.xlu0 %2687
    %2689 = vrot.lane.b32.xlu0 %v2203, 80
    %v2690 = vpop.permute.xlu0 %2689
    %v2691 = vsel %vm686, %v2680, 0
    %v2693 = vsel %vm686, %v2682, 0
    %v2695 = vsel %vm686, %v2684, 0
    %v2697 = vsel %vm686, %v2686, 0
    %v2699 = vsel %vm686, %v2688, 0
    %v2701 = vsel %vm686, %v2690, 0
    %2703 = vmatprep.subr.mxu0 0.0
    %2704 = vmatpush1.xpose.msra.mxu0 0.0
    %2705 = vmatprep.subr.mxu0 0.0
    %2706 = vmatpush1.xpose.msra.mxu0 0.0
    %2707 = vmatprep.subr.mxu0 0.0
    %2708 = vmatpush1.xpose.msra.mxu0 0.0
    %2709 = vmatprep.subr.mxu0 0.0
    %2710 = vmatpush1.xpose.msra.mxu0 0.0
    %2711 = vmatprep.subr.mxu0 0.0
    %2712 = vmatpush1.xpose.msra.mxu0 0.0
    %2713 = vmatprep.subr.mxu0 0.0
    %2714 = vmatpush1.xpose.msra.mxu0 0.0
    %2715 = vmatprep.subr.mxu0 0.0
    %2716 = vmatpush1.xpose.msra.mxu0 0.0
    %2717 = vmatprep.subr.mxu0 0.0
    %2718 = vmatpush1.xpose.msra.mxu0 0.0
    %2719 = vmatprep.subr.mxu0 0.0
    %2720 = vmatpush1.xpose.msra.mxu0 0.0
    %2721 = vmatprep.subr.mxu0 0.0
    %2722 = vmatpush1.xpose.msra.mxu0 0.0
    %2723 = vmatprep.subr.mxu0 0.0
    %2724 = vmatpush1.xpose.msra.mxu0 0.0
    %2725 = vmatprep.subr.mxu0 0.0
    %2726 = vmatpush1.xpose.msra.mxu0 0.0
    %2727 = vmatprep.subr.mxu0 0.0
    %2728 = vmatpush1.xpose.msra.mxu0 0.0
    %2729 = vmatprep.subr.mxu0 0.0
    %2730 = vmatpush1.xpose.msra.mxu0 %v2701
    %2731 = vmatprep.subr.mxu0 0.0
    %2732 = vmatpush1.xpose.msra.mxu0 %v2699
    %2733 = vmatprep.subr.mxu0 0.0
    %2734 = vmatpush1.xpose.msra.mxu0 %v2697
    %2735 = vmatprep.subr.mxu0 0.0
    %2736 = vmatpush2.xpose.msra.mxu0 0.0
    %2737 = vmatprep.subr.mxu0 0.0
    %2738 = vmatpush2.xpose.msra.mxu0 0.0
    %2739 = vmatprep.subr.mxu0 0.0
    %2740 = vmatpush2.xpose.msra.mxu0 0.0
    %2741 = vmatprep.subr.mxu0 0.0
    %2742 = vmatpush2.xpose.msra.mxu0 0.0
    %2743 = vmatprep.subr.mxu0 0.0
    %2744 = vmatpush2.xpose.msra.mxu0 0.0
    %2745 = vmatprep.subr.mxu0 0.0
    %2746 = vmatpush2.xpose.msra.mxu0 0.0
    %2747 = vmatprep.subr.mxu0 0.0
    %2748 = vmatpush2.xpose.msra.mxu0 0.0
    %2749 = vmatprep.subr.mxu0 0.0
    %2750 = vmatpush2.xpose.msra.mxu0 0.0
    %2751 = vmatprep.subr.mxu0 0.0
    %2752 = vmatpush2.xpose.msra.mxu0 0.0
    %2753 = vmatprep.subr.mxu0 0.0
    %2754 = vmatpush2.xpose.msra.mxu0 0.0
    %2755 = vmatprep.subr.mxu0 0.0
    %2756 = vmatpush2.xpose.msra.mxu0 0.0
    %2757 = vmatprep.subr.mxu0 0.0
    %2758 = vmatpush2.xpose.msra.mxu0 0.0
    %2759 = vmatprep.subr.mxu0 0.0
    %2760 = vmatpush2.xpose.msra.mxu0 0.0
    %2761 = vmatprep.subr.mxu0 0.0
    %2762 = vmatpush2.xpose.msra.mxu0 0.0
    %2763 = vmatprep.subr.mxu0 0.0
    %2764 = vmatpush2.xpose.msra.mxu0 0.0
    %2765 = vmatprep.subr.mxu0 0.0
    %2766 = vmatpush2.xpose.msra.mxu0 0.0
    %2767 = vmatprep.mubr.f32.mxu0 0.0
    %2768 = vmatmul.mubr.f32.gmra.mxu0 %v2691
    %v2769 = vpop.f32.mrf.mxu0
    %v2770 = vadd.f32 %v520, %v2769
    %v2771 = vpop.f32.mrf.mxu0
    %2772 = vmatprep.mubr.f32.mxu0 0.0
    %2773 = vmatmul.mubr.f32.gmra.mxu0 %v2693
    %v2774 = vpop.f32.mrf.mxu0
    %v2775 = vadd.f32 %v521, %v2774
    %v2776 = vpop.f32.mrf.mxu0
    %2777 = vmatprep.mubr.f32.mxu0 0.0
    %2778 = vmatmul.mubr.f32.gmra.mxu0 %v2695
    %v2779 = vpop.f32.mrf.mxu0
    %v2780 = vadd.f32 %v522, %v2779
    %v2781 = vpop.f32.mrf.mxu0
    %2782 = vdwg.mxu0
    %v2783 = vsel %vm782, %v2770, -inf
    %2784 = vmax.xlane.f32.xlu0 %v2783
    %v2785 = vpop.xlane.xlu0 %2784
    %v2786 = vsel %vm782, %v2775, -inf
    %2787 = vmax.xlane.f32.xlu0 %v2786
    %v2788 = vpop.xlane.xlu0 %2787
    %v2789 = vsel %vm782, %v2780, -inf
    %2790 = vmax.xlane.f32.xlu0 %v2789
    %v2791 = vpop.xlane.xlu0 %2790
    %v2792 = vsub.f32 %v2770, %v2785
    %v2793 = vsub.f32 %v2775, %v2788
    %v2794 = vsub.f32 %v2780, %v2791
    %v2795 = vmul.f32 %v2792, 1.442695
    %v2796 = vpow.pop %v2795
    %v2797 = vmul.f32 %v2793, 1.442695
    %v2798 = vpow.pop %v2797
    %v2799 = vmul.f32 %v2794, 1.442695
    %v2800 = vpow.pop %v2799
    %v2801 = vsel %vm782, %v2796, 0.0
    %2802 = vadd.xlane.f32.xlu0 %v2801
    %v2803 = vpop.xlane.xlu0 %2802
    %v2804 = vsel %vm782, %v2798, 0.0
    %2805 = vadd.xlane.f32.xlu0 %v2804
    %v2806 = vpop.xlane.xlu0 %2805
    %v2807 = vsel %vm782, %v2800, 0.0
    %2808 = vadd.xlane.f32.xlu0 %v2807
    %v2809 = vpop.xlane.xlu0 %2808
    %v2810 = vrcp.pop %v2803
    %v2811 = vrcp.pop %v2806
    %v2812 = vrcp.pop %v2809
    %v2813 = vmul.f32 %v2796, %v2810
    %v2814 = vmul.f32 %v2798, %v2811
    %v2815 = vmul.f32 %v2800, %v2812
    %2816 = vrot.lane.b32.xlu0 %v2193, 48
    %v2817 = vpop.permute.xlu0 %2816
    %2818 = vrot.lane.b32.xlu0 %v2198, 48
    %v2819 = vpop.permute.xlu0 %2818
    %2820 = vrot.lane.b32.xlu0 %v2203, 48
    %v2821 = vpop.permute.xlu0 %2820
    %v2826 = vsel %vm782, %v2813, 0
    %v2829 = vsel %vm782, %v2814, 0
    %v2832 = vsel %vm782, %v2815, 0
    %2834 = vmatprep.subr.mxu0 0.0
    %2835 = vmatpush1.msra.mxu0 0.0
    %2836 = vmatprep.subr.mxu0 0.0
    %2837 = vmatpush1.msra.mxu0 0.0
    %2838 = vmatprep.subr.mxu0 0.0
    %2839 = vmatpush1.msra.mxu0 0.0
    %2840 = vmatprep.subr.mxu0 0.0
    %2841 = vmatpush1.msra.mxu0 0.0
    %2842 = vmatprep.subr.mxu0 0.0
    %2843 = vmatpush1.msra.mxu0 0.0
    %2844 = vmatprep.subr.mxu0 0.0
    %2845 = vmatpush1.msra.mxu0 0.0
    %2846 = vmatprep.subr.mxu0 0.0
    %2847 = vmatpush1.msra.mxu0 0.0
    %2848 = vmatprep.subr.mxu0 0.0
    %2849 = vmatpush1.msra.mxu0 0.0
    %2850 = vmatprep.subr.mxu0 0.0
    %2851 = vmatpush1.msra.mxu0 0.0
    %2852 = vmatprep.subr.mxu0 0.0
    %2853 = vmatpush1.msra.mxu0 0.0
    %2854 = vmatprep.subr.mxu0 0.0
    %2855 = vmatpush1.msra.mxu0 0.0
    %2856 = vmatprep.subr.mxu0 0.0
    %2857 = vmatpush1.msra.mxu0 0.0
    %2858 = vmatprep.subr.mxu0 0.0
    %2859 = vmatpush1.msra.mxu0 0.0
    %2860 = vmatprep.subr.mxu0 0.0
    %2861 = vmatpush1.msra.mxu0 %v2821
    %2862 = vmatprep.subr.mxu0 0.0
    %2863 = vmatpush1.msra.mxu0 %v2819
    %2864 = vmatprep.subr.mxu0 0.0
    %2865 = vmatpush1.msra.mxu0 %v2817
    %2866 = vmatprep.subr.mxu0 0.0
    %2867 = vmatpush2.msra.mxu0 0.0
    %2868 = vmatprep.subr.mxu0 0.0
    %2869 = vmatpush2.msra.mxu0 0.0
    %2870 = vmatprep.subr.mxu0 0.0
    %2871 = vmatpush2.msra.mxu0 0.0
    %2872 = vmatprep.subr.mxu0 0.0
    %2873 = vmatpush2.msra.mxu0 0.0
    %2874 = vmatprep.subr.mxu0 0.0
    %2875 = vmatpush2.msra.mxu0 0.0
    %2876 = vmatprep.subr.mxu0 0.0
    %2877 = vmatpush2.msra.mxu0 0.0
    %2878 = vmatprep.subr.mxu0 0.0
    %2879 = vmatpush2.msra.mxu0 0.0
    %2880 = vmatprep.subr.mxu0 0.0
    %2881 = vmatpush2.msra.mxu0 0.0
    %2882 = vmatprep.subr.mxu0 0.0
    %2883 = vmatpush2.msra.mxu0 0.0
    %2884 = vmatprep.subr.mxu0 0.0
    %2885 = vmatpush2.msra.mxu0 0.0
    %2886 = vmatprep.subr.mxu0 0.0
    %2887 = vmatpush2.msra.mxu0 0.0
    %2888 = vmatprep.subr.mxu0 0.0
    %2889 = vmatpush2.msra.mxu0 0.0
    %2890 = vmatprep.subr.mxu0 0.0
    %2891 = vmatpush2.msra.mxu0 0.0
    %2892 = vmatprep.subr.mxu0 0.0
    %2893 = vmatpush2.msra.mxu0 0.0
    %2894 = vmatprep.subr.mxu0 0.0
    %2895 = vmatpush2.msra.mxu0 0.0
    %2896 = vmatprep.subr.mxu0 0.0
    %2897 = vmatpush2.msra.mxu0 0.0
    %2898 = vmatprep.mubr.f32.mxu0 0.0
    %2899 = vmatmul.mubr.f32.gmra.mxu0 %v2826
    %v2900 = vpop.f32.mrf.mxu0
    %v2901 = vadd.f32 0.0, %v2900
    %v2902 = vpop.f32.mrf.mxu0
    %2903 = vmatprep.mubr.f32.mxu0 0.0
    %2904 = vmatmul.mubr.f32.gmra.mxu0 %v2829
    %v2905 = vpop.f32.mrf.mxu0
    %v2906 = vadd.f32 0.0, %v2905
    %v2907 = vpop.f32.mrf.mxu0
    %2908 = vmatprep.mubr.f32.mxu0 0.0
    %2909 = vmatmul.mubr.f32.gmra.mxu0 %v2832
    %v2910 = vpop.f32.mrf.mxu0
    %v2911 = vadd.f32 0.0, %v2910
    %v2912 = vpop.f32.mrf.mxu0
    %2913 = vdwg.mxu0
    %2914 = vrot.lane.b32.xlu0 %v2206, 104
    %v2915 = vpop.permute.xlu0 %2914
    %2916 = vrot.lane.b32.xlu0 %v2207, 104
    %v2917 = vpop.permute.xlu0 %2916
    %2918 = vrot.lane.b32.xlu0 %v2208, 104
    %v2919 = vpop.permute.xlu0 %2918
    %2920 = vrot.lane.b32.xlu0 %v2193, 72
    %v2921 = vpop.permute.xlu0 %2920
    %2922 = vrot.lane.b32.xlu0 %v2198, 72
    %v2923 = vpop.permute.xlu0 %2922
    %2924 = vrot.lane.b32.xlu0 %v2203, 72
    %v2925 = vpop.permute.xlu0 %2924
    %v2926 = vsel %vm686, %v2915, 0
    %v2928 = vsel %vm686, %v2917, 0
    %v2930 = vsel %vm686, %v2919, 0
    %v2932 = vsel %vm686, %v2921, 0
    %v2934 = vsel %vm686, %v2923, 0
    %v2936 = vsel %vm686, %v2925, 0
    %2938 = vmatprep.subr.mxu0 0.0
    %2939 = vmatpush1.xpose.msra.mxu0 0.0
    %2940 = vmatprep.subr.mxu0 0.0
    %2941 = vmatpush1.xpose.msra.mxu0 0.0
    %2942 = vmatprep.subr.mxu0 0.0
    %2943 = vmatpush1.xpose.msra.mxu0 0.0
    %2944 = vmatprep.subr.mxu0 0.0
    %2945 = vmatpush1.xpose.msra.mxu0 0.0
    %2946 = vmatprep.subr.mxu0 0.0
    %2947 = vmatpush1.xpose.msra.mxu0 0.0
    %2948 = vmatprep.subr.mxu0 0.0
    %2949 = vmatpush1.xpose.msra.mxu0 0.0
    %2950 = vmatprep.subr.mxu0 0.0
    %2951 = vmatpush1.xpose.msra.mxu0 0.0
    %2952 = vmatprep.subr.mxu0 0.0
    %2953 = vmatpush1.xpose.msra.mxu0 0.0
    %2954 = vmatprep.subr.mxu0 0.0
    %2955 = vmatpush1.xpose.msra.mxu0 0.0
    %2956 = vmatprep.subr.mxu0 0.0
    %2957 = vmatpush1.xpose.msra.mxu0 0.0
    %2958 = vmatprep.subr.mxu0 0.0
    %2959 = vmatpush1.xpose.msra.mxu0 0.0
    %2960 = vmatprep.subr.mxu0 0.0
    %2961 = vmatpush1.xpose.msra.mxu0 0.0
    %2962 = vmatprep.subr.mxu0 0.0
    %2963 = vmatpush1.xpose.msra.mxu0 0.0
    %2964 = vmatprep.subr.mxu0 0.0
    %2965 = vmatpush1.xpose.msra.mxu0 %v2936
    %2966 = vmatprep.subr.mxu0 0.0
    %2967 = vmatpush1.xpose.msra.mxu0 %v2934
    %2968 = vmatprep.subr.mxu0 0.0
    %2969 = vmatpush1.xpose.msra.mxu0 %v2932
    %2970 = vmatprep.subr.mxu0 0.0
    %2971 = vmatpush2.xpose.msra.mxu0 0.0
    %2972 = vmatprep.subr.mxu0 0.0
    %2973 = vmatpush2.xpose.msra.mxu0 0.0
    %2974 = vmatprep.subr.mxu0 0.0
    %2975 = vmatpush2.xpose.msra.mxu0 0.0
    %2976 = vmatprep.subr.mxu0 0.0
    %2977 = vmatpush2.xpose.msra.mxu0 0.0
    %2978 = vmatprep.subr.mxu0 0.0
    %2979 = vmatpush2.xpose.msra.mxu0 0.0
    %2980 = vmatprep.subr.mxu0 0.0
    %2981 = vmatpush2.xpose.msra.mxu0 0.0
    %2982 = vmatprep.subr.mxu0 0.0
    %2983 = vmatpush2.xpose.msra.mxu0 0.0
    %2984 = vmatprep.subr.mxu0 0.0
    %2985 = vmatpush2.xpose.msra.mxu0 0.0
    %2986 = vmatprep.subr.mxu0 0.0
    %2987 = vmatpush2.xpose.msra.mxu0 0.0
    %2988 = vmatprep.subr.mxu0 0.0
    %2989 = vmatpush2.xpose.msra.mxu0 0.0
    %2990 = vmatprep.subr.mxu0 0.0
    %2991 = vmatpush2.xpose.msra.mxu0 0.0
    %2992 = vmatprep.subr.mxu0 0.0
    %2993 = vmatpush2.xpose.msra.mxu0 0.0
    %2994 = vmatprep.subr.mxu0 0.0
    %2995 = vmatpush2.xpose.msra.mxu0 0.0
    %2996 = vmatprep.subr.mxu0 0.0
    %2997 = vmatpush2.xpose.msra.mxu0 0.0
    %2998 = vmatprep.subr.mxu0 0.0
    %2999 = vmatpush2.xpose.msra.mxu0 0.0
    %3000 = vmatprep.subr.mxu0 0.0
    %3001 = vmatpush2.xpose.msra.mxu0 0.0
    %3002 = vmatprep.mubr.f32.mxu0 0.0
    %3003 = vmatmul.mubr.f32.gmra.mxu0 %v2926
    %v3004 = vpop.f32.mrf.mxu0
    %v3005 = vadd.f32 %v520, %v3004
    %v3006 = vpop.f32.mrf.mxu0
    %3007 = vmatprep.mubr.f32.mxu0 0.0
    %3008 = vmatmul.mubr.f32.gmra.mxu0 %v2928
    %v3009 = vpop.f32.mrf.mxu0
    %v3010 = vadd.f32 %v521, %v3009
    %v3011 = vpop.f32.mrf.mxu0
    %3012 = vmatprep.mubr.f32.mxu0 0.0
    %3013 = vmatmul.mubr.f32.gmra.mxu0 %v2930
    %v3014 = vpop.f32.mrf.mxu0
    %v3015 = vadd.f32 %v522, %v3014
    %v3016 = vpop.f32.mrf.mxu0
    %3017 = vdwg.mxu0
    %v3018 = vsel %vm782, %v3005, -inf
    %3019 = vmax.xlane.f32.xlu0 %v3018
    %v3020 = vpop.xlane.xlu0 %3019
    %v3021 = vsel %vm782, %v3010, -inf
    %3022 = vmax.xlane.f32.xlu0 %v3021
    %v3023 = vpop.xlane.xlu0 %3022
    %v3024 = vsel %vm782, %v3015, -inf
    %3025 = vmax.xlane.f32.xlu0 %v3024
    %v3026 = vpop.xlane.xlu0 %3025
    %v3027 = vsub.f32 %v3005, %v3020
    %v3028 = vsub.f32 %v3010, %v3023
    %v3029 = vsub.f32 %v3015, %v3026
    %v3030 = vmul.f32 %v3027, 1.442695
    %v3031 = vpow.pop %v3030
    %v3032 = vmul.f32 %v3028, 1.442695
    %v3033 = vpow.pop %v3032
    %v3034 = vmul.f32 %v3029, 1.442695
    %v3035 = vpow.pop %v3034
    %v3036 = vsel %vm782, %v3031, 0.0
    %3037 = vadd.xlane.f32.xlu0 %v3036
    %v3038 = vpop.xlane.xlu0 %3037
    %v3039 = vsel %vm782, %v3033, 0.0
    %3040 = vadd.xlane.f32.xlu0 %v3039
    %v3041 = vpop.xlane.xlu0 %3040
    %v3042 = vsel %vm782, %v3035, 0.0
    %3043 = vadd.xlane.f32.xlu0 %v3042
    %v3044 = vpop.xlane.xlu0 %3043
    %v3045 = vrcp.pop %v3038
    %v3046 = vrcp.pop %v3041
    %v3047 = vrcp.pop %v3044
    %v3048 = vmul.f32 %v3031, %v3045
    %v3049 = vmul.f32 %v3033, %v3046
    %v3050 = vmul.f32 %v3035, %v3047
    %3051 = vrot.lane.b32.xlu0 %v2193, 40
    %v3052 = vpop.permute.xlu0 %3051
    %3053 = vrot.lane.b32.xlu0 %v2198, 40
    %v3054 = vpop.permute.xlu0 %3053
    %3055 = vrot.lane.b32.xlu0 %v2203, 40
    %v3056 = vpop.permute.xlu0 %3055
    %v3061 = vsel %vm782, %v3048, 0
    %v3064 = vsel %vm782, %v3049, 0
    %v3067 = vsel %vm782, %v3050, 0
    %3069 = vmatprep.subr.mxu0 0.0
    %3070 = vmatpush1.msra.mxu0 0.0
    %3071 = vmatprep.subr.mxu0 0.0
    %3072 = vmatpush1.msra.mxu0 0.0
    %3073 = vmatprep.subr.mxu0 0.0
    %3074 = vmatpush1.msra.mxu0 0.0
    %3075 = vmatprep.subr.mxu0 0.0
    %3076 = vmatpush1.msra.mxu0 0.0
    %3077 = vmatprep.subr.mxu0 0.0
    %3078 = vmatpush1.msra.mxu0 0.0
    %3079 = vmatprep.subr.mxu0 0.0
    %3080 = vmatpush1.msra.mxu0 0.0
    %3081 = vmatprep.subr.mxu0 0.0
    %3082 = vmatpush1.msra.mxu0 0.0
    %3083 = vmatprep.subr.mxu0 0.0
    %3084 = vmatpush1.msra.mxu0 0.0
    %3085 = vmatprep.subr.mxu0 0.0
    %3086 = vmatpush1.msra.mxu0 0.0
    %3087 = vmatprep.subr.mxu0 0.0
    %3088 = vmatpush1.msra.mxu0 0.0
    %3089 = vmatprep.subr.mxu0 0.0
    %3090 = vmatpush1.msra.mxu0 0.0
    %3091 = vmatprep.subr.mxu0 0.0
    %3092 = vmatpush1.msra.mxu0 0.0
    %3093 = vmatprep.subr.mxu0 0.0
    %3094 = vmatpush1.msra.mxu0 0.0
    %3095 = vmatprep.subr.mxu0 0.0
    %3096 = vmatpush1.msra.mxu0 %v3056
    %3097 = vmatprep.subr.mxu0 0.0
    %3098 = vmatpush1.msra.mxu0 %v3054
    %3099 = vmatprep.subr.mxu0 0.0
    %3100 = vmatpush1.msra.mxu0 %v3052
    %3101 = vmatprep.subr.mxu0 0.0
    %3102 = vmatpush2.msra.mxu0 0.0
    %3103 = vmatprep.subr.mxu0 0.0
    %3104 = vmatpush2.msra.mxu0 0.0
    %3105 = vmatprep.subr.mxu0 0.0
    %3106 = vmatpush2.msra.mxu0 0.0
    %3107 = vmatprep.subr.mxu0 0.0
    %3108 = vmatpush2.msra.mxu0 0.0
    %3109 = vmatprep.subr.mxu0 0.0
    %3110 = vmatpush2.msra.mxu0 0.0
    %3111 = vmatprep.subr.mxu0 0.0
    %3112 = vmatpush2.msra.mxu0 0.0
    %3113 = vmatprep.subr.mxu0 0.0
    %3114 = vmatpush2.msra.mxu0 0.0
    %3115 = vmatprep.subr.mxu0 0.0
    %3116 = vmatpush2.msra.mxu0 0.0
    %3117 = vmatprep.subr.mxu0 0.0
    %3118 = vmatpush2.msra.mxu0 0.0
    %3119 = vmatprep.subr.mxu0 0.0
    %3120 = vmatpush2.msra.mxu0 0.0
    %3121 = vmatprep.subr.mxu0 0.0
    %3122 = vmatpush2.msra.mxu0 0.0
    %3123 = vmatprep.subr.mxu0 0.0
    %3124 = vmatpush2.msra.mxu0 0.0
    %3125 = vmatprep.subr.mxu0 0.0
    %3126 = vmatpush2.msra.mxu0 0.0
    %3127 = vmatprep.subr.mxu0 0.0
    %3128 = vmatpush2.msra.mxu0 0.0
    %3129 = vmatprep.subr.mxu0 0.0
    %3130 = vmatpush2.msra.mxu0 0.0
    %3131 = vmatprep.subr.mxu0 0.0
    %3132 = vmatpush2.msra.mxu0 0.0
    %3133 = vmatprep.mubr.f32.mxu0 0.0
    %3134 = vmatmul.mubr.f32.gmra.mxu0 %v3061
    %v3135 = vpop.f32.mrf.mxu0
    %v3136 = vadd.f32 0.0, %v3135
    %v3137 = vpop.f32.mrf.mxu0
    %3138 = vmatprep.mubr.f32.mxu0 0.0
    %3139 = vmatmul.mubr.f32.gmra.mxu0 %v3064
    %v3140 = vpop.f32.mrf.mxu0
    %v3141 = vadd.f32 0.0, %v3140
    %v3142 = vpop.f32.mrf.mxu0
    %3143 = vmatprep.mubr.f32.mxu0 0.0
    %3144 = vmatmul.mubr.f32.gmra.mxu0 %v3067
    %v3145 = vpop.f32.mrf.mxu0
    %v3146 = vadd.f32 0.0, %v3145
    %v3147 = vpop.f32.mrf.mxu0
    %3148 = vdwg.mxu0
    %3152 = vrot.lane.b32.xlu0 %v2666, 8
    %v3153 = vpop.permute.xlu0 %3152
    %3154 = vrot.lane.b32.xlu0 %v2671, 8
    %v3155 = vpop.permute.xlu0 %3154
    %3156 = vrot.lane.b32.xlu0 %v2676, 8
    %v3157 = vpop.permute.xlu0 %3156
    %3164 = vrot.lane.b32.xlu0 %v2901, 16
    %v3165 = vpop.permute.xlu0 %3164
    %3166 = vrot.lane.b32.xlu0 %v2906, 16
    %v3167 = vpop.permute.xlu0 %3166
    %3168 = vrot.lane.b32.xlu0 %v2911, 16
    %v3169 = vpop.permute.xlu0 %3168
    %3176 = vrot.lane.b32.xlu0 %v3136, 24
    %v3177 = vpop.permute.xlu0 %3176
    %3178 = vrot.lane.b32.xlu0 %v3141, 24
    %v3179 = vpop.permute.xlu0 %3178
    %3180 = vrot.lane.b32.xlu0 %v3146, 24
    %v3181 = vpop.permute.xlu0 %3180
    %v3185 = vsel %vm686, %v2431, %v3153
    %v3186 = vsel %vm686, %v2436, %v3155
    %v3187 = vsel %vm686, %v2441, %v3157
    %v3188 = vsel %vm41, %v3185, %v3165
    %v3189 = vsel %vm41, %v3186, %v3167
    %v3190 = vsel %vm41, %v3187, %v3169
    %v3191 = vsel %vm782, %v3188, %v3177
    %v3192 = vsel %vm782, %v3189, %v3179
    %v3193 = vsel %vm782, %v3190, %v3181
    %3198 = vrot.lane.b32.xlu0 %v2112, 32
    %v3199 = vpop.permute.xlu0 %3198
    %3200 = vrot.lane.b32.xlu0 %v2113, 32
    %v3201 = vpop.permute.xlu0 %3200
    %3202 = vrot.lane.b32.xlu0 %v2114, 32
    %v3203 = vpop.permute.xlu0 %3202
    %3204 = vrot.lane.b32.xlu0 %v2115, 32
    %v3205 = vpop.permute.xlu0 %3204
    %3211 = vrot.lane.b32.xlu0 %v2116, 32
    %v3212 = vpop.permute.xlu0 %3211
    %v3215 = vsel %vm525, %v3191, 0
    %v3218 = vsel %vm525, %v3192, 0
    %v3221 = vsel %vm525, %v3193, 0
    %3223 = vmatprep.subr.mxu0 0.0
    %3224 = vmatpush1.msra.mxu0 0.0
    %3225 = vmatprep.subr.mxu0 0.0
    %3226 = vmatpush1.msra.mxu0 0.0
    %3227 = vmatprep.subr.mxu0 0.0
    %3228 = vmatpush1.msra.mxu0 0.0
    %3229 = vmatprep.subr.mxu0 0.0
    %3230 = vmatpush1.msra.mxu0 0.0
    %3231 = vmatprep.subr.mxu0 0.0
    %3232 = vmatpush1.msra.mxu0 0.0
    %3233 = vmatprep.subr.mxu0 0.0
    %3234 = vmatpush1.msra.mxu0 0.0
    %3235 = vmatprep.subr.mxu0 0.0
    %3236 = vmatpush1.msra.mxu0 0.0
    %3237 = vmatprep.subr.mxu0 0.0
    %3238 = vmatpush1.msra.mxu0 0.0
    %3239 = vmatprep.subr.mxu0 0.0
    %3240 = vmatpush1.msra.mxu0 0.0
    %3241 = vmatprep.subr.mxu0 0.0
    %3242 = vmatpush1.msra.mxu0 0.0
    %3243 = vmatprep.subr.mxu0 0.0
    %3244 = vmatpush1.msra.mxu0 0.0
    %3245 = vmatprep.subr.mxu0 0.0
    %3246 = vmatpush1.msra.mxu0 0.0
    %3247 = vmatprep.subr.mxu0 0.0
    %3248 = vmatpush1.msra.mxu0 %v3205
    %3249 = vmatprep.subr.mxu0 0.0
    %3250 = vmatpush1.msra.mxu0 %v3203
    %3251 = vmatprep.subr.mxu0 0.0
    %3252 = vmatpush1.msra.mxu0 %v3201
    %3253 = vmatprep.subr.mxu0 0.0
    %3254 = vmatpush1.msra.mxu0 %v3199
    %3255 = vmatprep.subr.mxu0 0.0
    %3256 = vmatpush2.msra.mxu0 0.0
    %3257 = vmatprep.subr.mxu0 0.0
    %3258 = vmatpush2.msra.mxu0 0.0
    %3259 = vmatprep.subr.mxu0 0.0
    %3260 = vmatpush2.msra.mxu0 0.0
    %3261 = vmatprep.subr.mxu0 0.0
    %3262 = vmatpush2.msra.mxu0 0.0
    %3263 = vmatprep.subr.mxu0 0.0
    %3264 = vmatpush2.msra.mxu0 0.0
    %3265 = vmatprep.subr.mxu0 0.0
    %3266 = vmatpush2.msra.mxu0 0.0
    %3267 = vmatprep.subr.mxu0 0.0
    %3268 = vmatpush2.msra.mxu0 0.0
    %3269 = vmatprep.subr.mxu0 0.0
    %3270 = vmatpush2.msra.mxu0 0.0
    %3271 = vmatprep.subr.mxu0 0.0
    %3272 = vmatpush2.msra.mxu0 0.0
    %3273 = vmatprep.subr.mxu0 0.0
    %3274 = vmatpush2.msra.mxu0 0.0
    %3275 = vmatprep.subr.mxu0 0.0
    %3276 = vmatpush2.msra.mxu0 0.0
    %3277 = vmatprep.subr.mxu0 0.0
    %3278 = vmatpush2.msra.mxu0 0.0
    %3279 = vmatprep.subr.mxu0 0.0
    %3280 = vmatpush2.msra.mxu0 0.0
    %3281 = vmatprep.subr.mxu0 0.0
    %3282 = vmatpush2.msra.mxu0 0.0
    %3283 = vmatprep.subr.mxu0 0.0
    %3284 = vmatpush2.msra.mxu0 0.0
    %3285 = vmatprep.subr.mxu0 0.0
    %3286 = vmatpush2.msra.mxu0 0.0
    %3287 = vmatprep.mubr.f32.mxu0 0.0
    %3288 = vmatmul.mubr.f32.gmra.mxu0 %v3215
    %v3289 = vpop.f32.mrf.mxu0
    %v3290 = vadd.f32 %v3212, %v3289
    %v3291 = vpop.f32.mrf.mxu0
    %3292 = vmatprep.mubr.f32.mxu0 0.0
    %3293 = vmatmul.mubr.f32.gmra.mxu0 %v3218
    %v3294 = vpop.f32.mrf.mxu0
    %v3295 = vadd.f32 %v3212, %v3294
    %v3296 = vpop.f32.mrf.mxu0
    %3297 = vmatprep.mubr.f32.mxu0 0.0
    %3298 = vmatmul.mubr.f32.gmra.mxu0 %v3221
    %v3299 = vpop.f32.mrf.mxu0
    %v3300 = vadd.f32 %v3212, %v3299
    %v3301 = vpop.f32.mrf.mxu0
    %3302 = vdwg.mxu0
    %v3303 = vadd.f32 %v2053, %v3290
    %v3304 = vadd.f32 %v2054, %v3295
    %v3305 = vadd.f32 %v2055, %v3300
    %v3306 = vld [vmem:[%s5 + $0x6] sm:$0x1]
    %v3307 = vld [vmem:[%s5 + $0x7] sm:$0x1]
    %v3308 = vsel %vm525, %v3303, 0.0
    %3309 = vadd.xlane.f32.xlu0 %v3308
    %v3310 = vpop.xlane.xlu0 %3309
    %v3311 = vsel %vm525, %v3304, 0.0
    %3312 = vadd.xlane.f32.xlu0 %v3311
    %v3313 = vpop.xlane.xlu0 %3312
    %v3314 = vsel %vm525, %v3305, 0.0
    %3315 = vadd.xlane.f32.xlu0 %v3314
    %v3316 = vpop.xlane.xlu0 %3315
    %v3317 = vmul.f32 %v3310, %v535
    %v3318 = vmul.f32 %v3313, %v535
    %v3319 = vmul.f32 %v3316, %v535
    %v3320 = vsub.f32 %v3303, %v3317
    %v3321 = vsub.f32 %v3304, %v3318
    %v3322 = vsub.f32 %v3305, %v3319
    %v3323 = vmul.f32 %v3320, %v3320
    %v3324 = vmul.f32 %v3321, %v3321
    %v3325 = vmul.f32 %v3322, %v3322
    %v3326 = vsel %vm525, %v3323, 0.0
    %3327 = vadd.xlane.f32.xlu0 %v3326
    %v3328 = vpop.xlane.xlu0 %3327
    %v3329 = vsel %vm525, %v3324, 0.0
    %3330 = vadd.xlane.f32.xlu0 %v3329
    %v3331 = vpop.xlane.xlu0 %3330
    %v3332 = vsel %vm525, %v3325, 0.0
    %3333 = vadd.xlane.f32.xlu0 %v3332
    %v3334 = vpop.xlane.xlu0 %3333
    %v3335 = vmul.f32 %v3328, %v535
    %v3336 = vmul.f32 %v3331, %v535
    %v3337 = vmul.f32 %v3334, %v535
    %v3338 = vadd.f32 %v3335, 1e-05
    %v3339 = vadd.f32 %v3336, 1e-05
    %v3340 = vadd.f32 %v3337, 1e-05
    %v3341 = vrsqrt.pop %v3338
    %v3342 = vrsqrt.pop %v3339
    %v3343 = vrsqrt.pop %v3340
    %v3344 = vmul.f32 %v3320, %v3341
    %v3345 = vmul.f32 %v3321, %v3342
    %v3346 = vmul.f32 %v3322, %v3343
    %v3347 = vlaneseq
    %v3348 = vshrl.u32 %v3347, 7
    %v3349 = vsub.s32 0, %v3348
    %v3350 = vrot.slane %v3306, %v3349
    %v3351 = vmul.f32 %v3344, %v3350
    %v3352 = vmul.f32 %v3345, %v3350
    %v3353 = vmul.f32 %v3346, %v3350
    %v3354 = vlaneseq
    %v3355 = vshrl.u32 %v3354, 7
    %v3356 = vsub.s32 0, %v3355
    %v3357 = vrot.slane %v3307, %v3356
    %v3358 = vadd.f32 %v3351, %v3357
    %v3359 = vadd.f32 %v3352, %v3357
    %v3360 = vadd.f32 %v3353, %v3357
    %v3361 = vld [vmem:[%s2111 + $0x8] sm:$0xff]
    %v3362 = vld [vmem:[%s2111 + $0x18] sm:$0xff]
    %v3363 = vld [vmem:[%s2111 + $0x28] sm:$0xff]
    %v3364 = vld [vmem:[%s2111 + $0x38] sm:$0xff]
    %v3365 = vld [vmem:[%s2111 + $0x48] ss:$0 sm:$0xff]
    %v3367 = vsel %vm525, %v3358, 0
    %v3370 = vsel %vm525, %v3359, 0
    %v3373 = vsel %vm525, %v3360, 0
    %3375 = vmatprep.subr.mxu0 0.0
    %3376 = vmatpush1.msra.mxu0 0.0
    %3377 = vmatprep.subr.mxu0 0.0
    %3378 = vmatpush1.msra.mxu0 0.0
    %3379 = vmatprep.subr.mxu0 0.0
    %3380 = vmatpush1.msra.mxu0 0.0
    %3381 = vmatprep.subr.mxu0 0.0
    %3382 = vmatpush1.msra.mxu0 0.0
    %3383 = vmatprep.subr.mxu0 0.0
    %3384 = vmatpush1.msra.mxu0 0.0
    %3385 = vmatprep.subr.mxu0 0.0
    %3386 = vmatpush1.msra.mxu0 0.0
    %3387 = vmatprep.subr.mxu0 0.0
    %3388 = vmatpush1.msra.mxu0 0.0
    %3389 = vmatprep.subr.mxu0 0.0
    %3390 = vmatpush1.msra.mxu0 0.0
    %3391 = vmatprep.subr.mxu0 0.0
    %3392 = vmatpush1.msra.mxu0 0.0
    %3393 = vmatprep.subr.mxu0 0.0
    %3394 = vmatpush1.msra.mxu0 0.0
    %3395 = vmatprep.subr.mxu0 0.0
    %3396 = vmatpush1.msra.mxu0 0.0
    %3397 = vmatprep.subr.mxu0 0.0
    %3398 = vmatpush1.msra.mxu0 0.0
    %3399 = vmatprep.subr.mxu0 0.0
    %3400 = vmatpush1.msra.mxu0 %v3364
    %3401 = vmatprep.subr.mxu0 0.0
    %3402 = vmatpush1.msra.mxu0 %v3363
    %3403 = vmatprep.subr.mxu0 0.0
    %3404 = vmatpush1.msra.mxu0 %v3362
    %3405 = vmatprep.subr.mxu0 0.0
    %3406 = vmatpush1.msra.mxu0 %v3361
    %3407 = vmatprep.subr.mxu0 0.0
    %3408 = vmatpush2.msra.mxu0 0.0
    %3409 = vmatprep.subr.mxu0 0.0
    %3410 = vmatpush2.msra.mxu0 0.0
    %3411 = vmatprep.subr.mxu0 0.0
    %3412 = vmatpush2.msra.mxu0 0.0
    %3413 = vmatprep.subr.mxu0 0.0
    %3414 = vmatpush2.msra.mxu0 0.0
    %3415 = vmatprep.subr.mxu0 0.0
    %3416 = vmatpush2.msra.mxu0 0.0
    %3417 = vmatprep.subr.mxu0 0.0
    %3418 = vmatpush2.msra.mxu0 0.0
    %3419 = vmatprep.subr.mxu0 0.0
    %3420 = vmatpush2.msra.mxu0 0.0
    %3421 = vmatprep.subr.mxu0 0.0
    %3422 = vmatpush2.msra.mxu0 0.0
    %3423 = vmatprep.subr.mxu0 0.0
    %3424 = vmatpush2.msra.mxu0 0.0
    %3425 = vmatprep.subr.mxu0 0.0
    %3426 = vmatpush2.msra.mxu0 0.0
    %3427 = vmatprep.subr.mxu0 0.0
    %3428 = vmatpush2.msra.mxu0 0.0
    %3429 = vmatprep.subr.mxu0 0.0
    %3430 = vmatpush2.msra.mxu0 0.0
    %3431 = vmatprep.subr.mxu0 0.0
    %3432 = vmatpush2.msra.mxu0 0.0
    %3433 = vmatprep.subr.mxu0 0.0
    %3434 = vmatpush2.msra.mxu0 0.0
    %3435 = vmatprep.subr.mxu0 0.0
    %3436 = vmatpush2.msra.mxu0 0.0
    %3437 = vmatprep.subr.mxu0 0.0
    %3438 = vmatpush2.msra.mxu0 0.0
    %3439 = vmatprep.mubr.f32.mxu0 0.0
    %3440 = vmatmul.mubr.f32.gmra.mxu0 %v3367
    %v3441 = vpop.f32.mrf.mxu0
    %v3442 = vadd.f32 %v3365, %v3441
    %v3443 = vpop.f32.mrf.mxu0
    %3444 = vmatprep.mubr.f32.mxu0 0.0
    %3445 = vmatmul.mubr.f32.gmra.mxu0 %v3370
    %v3446 = vpop.f32.mrf.mxu0
    %v3447 = vadd.f32 %v3365, %v3446
    %v3448 = vpop.f32.mrf.mxu0
    %3449 = vmatprep.mubr.f32.mxu0 0.0
    %3450 = vmatmul.mubr.f32.gmra.mxu0 %v3373
    %v3451 = vpop.f32.mrf.mxu0
    %v3452 = vadd.f32 %v3365, %v3451
    %v3453 = vpop.f32.mrf.mxu0
    %3454 = vdwg.mxu0
    %v3455 = vmul.f32 %v3442, 0.5
    %v3456 = vmul.f32 %v3447, 0.5
    %v3457 = vmul.f32 %v3452, 0.5
    %v3458 = vmul.f32 %v3442, 0.044715
    %v3459 = vmul.f32 %v3447, 0.044715
    %v3460 = vmul.f32 %v3452, 0.044715
    %v3461 = vmul.f32 %v3458, %v3442
    %v3462 = vmul.f32 %v3459, %v3447
    %v3463 = vmul.f32 %v3460, %v3452
    %v3464 = vmul.f32 %v3461, %v3442
    %v3465 = vmul.f32 %v3462, %v3447
    %v3466 = vmul.f32 %v3463, %v3452
    %v3467 = vadd.f32 %v3442, %v3464
    %v3468 = vadd.f32 %v3447, %v3465
    %v3469 = vadd.f32 %v3452, %v3466
    %v3470 = vmul.f32 %v3467, 0.7978846
    %v3471 = vmul.f32 %v3468, 0.7978846
    %v3472 = vmul.f32 %v3469, 0.7978846
    %v3473 = vtanh.pop %v3470
    %v3474 = vtanh.pop %v3471
    %v3475 = vtanh.pop %v3472
    %v3476 = vadd.f32 %v3473, 1.0
    %v3477 = vadd.f32 %v3474, 1.0
    %v3478 = vadd.f32 %v3475, 1.0
    %v3479 = vmul.f32 %v3455, %v3476
    %v3480 = vmul.f32 %v3456, %v3477
    %v3481 = vmul.f32 %v3457, %v3478
    %s3482 = scalar_lea.vmem %s7, 136
    %v3483 = vld [vmem:[%s3482] sm:$0xff]
    %v3484 = vld [vmem:[%s3482 + $0x8] sm:$0xff]
    %v3485 = vld [vmem:[%s3482 + $0x10] sm:$0xff]
    %v3486 = vld [vmem:[%s3482 + $0x18] sm:$0xff]
    %v3487 = vld [vmem:[%s3482 + $0x20] sm:$0xff]
    %v3488 = vld [vmem:[%s3482 + $0x28] sm:$0xff]
    %v3489 = vld [vmem:[%s3482 + $0x30] sm:$0xff]
    %v3490 = vld [vmem:[%s3482 + $0x38] sm:$0xff]
    %v3491 = vld [vmem:[%s3482 + $0x40] sm:$0xff]
    %v3492 = vld [vmem:[%s3482 + $0x48] sm:$0xff]
    %v3493 = vld [vmem:[%s3482 + $0x50] sm:$0xff]
    %v3494 = vld [vmem:[%s3482 + $0x58] sm:$0xff]
    %v3495 = vld [vmem:[%s3482 + $0x60] sm:$0xff]
    %v3496 = vld [vmem:[%s3482 + $0x68] sm:$0xff]
    %v3497 = vld [vmem:[%s3482 + $0x70] sm:$0xff]
    %v3498 = vld [vmem:[%s3482 + $0x78] sm:$0xff]
    %v3499 = vld [vmem:[%s3482 + $0x80] sm:$0x1]
    %v3500 = vlaneseq
    %v3501 = vshrl.u32 %v3500, 7
    %v3502 = vsub.s32 0, %v3501
    %v3503 = vrot.slane %v3499, %v3502
    %3504 = vmatprep.subr.mxu0 0.0
    %3505 = vmatpush1.msra.mxu0 %v3498
    %3506 = vmatprep.subr.mxu0 0.0
    %3507 = vmatpush1.msra.mxu0 %v3497
    %3508 = vmatprep.subr.mxu0 0.0
    %3509 = vmatpush1.msra.mxu0 %v3496
    %3510 = vmatprep.subr.mxu0 0.0
    %3511 = vmatpush1.msra.mxu0 %v3495
    %3512 = vmatprep.subr.mxu0 0.0
    %3513 = vmatpush1.msra.mxu0 %v3494
    %3514 = vmatprep.subr.mxu0 0.0
    %3515 = vmatpush1.msra.mxu0 %v3493
    %3516 = vmatprep.subr.mxu0 0.0
    %3517 = vmatpush1.msra.mxu0 %v3492
    %3518 = vmatprep.subr.mxu0 0.0
    %3519 = vmatpush1.msra.mxu0 %v3491
    %3520 = vmatprep.subr.mxu0 0.0
    %3521 = vmatpush1.msra.mxu0 %v3490
    %3522 = vmatprep.subr.mxu0 0.0
    %3523 = vmatpush1.msra.mxu0 %v3489
    %3524 = vmatprep.subr.mxu0 0.0
    %3525 = vmatpush1.msra.mxu0 %v3488
    %3526 = vmatprep.subr.mxu0 0.0
    %3527 = vmatpush1.msra.mxu0 %v3487
    %3528 = vmatprep.subr.mxu0 0.0
    %3529 = vmatpush1.msra.mxu0 %v3486
    %3530 = vmatprep.subr.mxu0 0.0
    %3531 = vmatpush1.msra.mxu0 %v3485
    %3532 = vmatprep.subr.mxu0 0.0
    %3533 = vmatpush1.msra.mxu0 %v3484
    %3534 = vmatprep.subr.mxu0 0.0
    %3535 = vmatpush1.msra.mxu0 %v3483
    %3536 = vmatprep.subr.mxu0 0.0
    %3537 = vmatpush2.msra.mxu0 0.0
    %3538 = vmatprep.subr.mxu0 0.0
    %3539 = vmatpush2.msra.mxu0 0.0
    %3540 = vmatprep.subr.mxu0 0.0
    %3541 = vmatpush2.msra.mxu0 0.0
    %3542 = vmatprep.subr.mxu0 0.0
    %3543 = vmatpush2.msra.mxu0 0.0
    %3544 = vmatprep.subr.mxu0 0.0
    %3545 = vmatpush2.msra.mxu0 0.0
    %3546 = vmatprep.subr.mxu0 0.0
    %3547 = vmatpush2.msra.mxu0 0.0
    %3548 = vmatprep.subr.mxu0 0.0
    %3549 = vmatpush2.msra.mxu0 0.0
    %3550 = vmatprep.subr.mxu0 0.0
    %3551 = vmatpush2.msra.mxu0 0.0
    %3552 = vmatprep.subr.mxu0 0.0
    %3553 = vmatpush2.msra.mxu0 0.0
    %3554 = vmatprep.subr.mxu0 0.0
    %3555 = vmatpush2.msra.mxu0 0.0
    %3556 = vmatprep.subr.mxu0 0.0
    %3557 = vmatpush2.msra.mxu0 0.0
    %3558 = vmatprep.subr.mxu0 0.0
    %3559 = vmatpush2.msra.mxu0 0.0
    %3560 = vmatprep.subr.mxu0 0.0
    %3561 = vmatpush2.msra.mxu0 0.0
    %3562 = vmatprep.subr.mxu0 0.0
    %3563 = vmatpush2.msra.mxu0 0.0
    %3564 = vmatprep.subr.mxu0 0.0
    %3565 = vmatpush2.msra.mxu0 0.0
    %3566 = vmatprep.subr.mxu0 0.0
    %3567 = vmatpush2.msra.mxu0 0.0
    %3568 = vmatprep.mubr.f32.mxu0 0.0
    %3569 = vmatmul.mubr.f32.gmra.mxu0 %v3479
    %v3570 = vpop.f32.mrf.mxu0
    %v3571 = vadd.f32 %v3503, %v3570
    %v3572 = vpop.f32.mrf.mxu0
    %3573 = vmatprep.mubr.f32.mxu0 0.0
    %3574 = vmatmul.mubr.f32.gmra.mxu0 %v3480
    %v3575 = vpop.f32.mrf.mxu0
    %v3576 = vadd.f32 %v3503, %v3575
    %v3577 = vpop.f32.mrf.mxu0
    %3578 = vmatprep.mubr.f32.mxu0 0.0
    %3579 = vmatmul.mubr.f32.gmra.mxu0 %v3481
    %v3580 = vpop.f32.mrf.mxu0
    %v3581 = vadd.f32 %v3503, %v3580
    %v3582 = vpop.f32.mrf.mxu0
    %3583 = vdwg.mxu0
    %v3584 = vadd.f32 %v3303, %v3571
    %v3585 = vadd.f32 %v3304, %v3576
    %v3586 = vadd.f32 %v3305, %v3581
    %v3587 = vld [vmem:[%s5 + $0x8] sm:$0x1]
    %v3588 = vld [vmem:[%s5 + $0x9] sm:$0x1]
    %v3589 = vsel %vm525, %v3584, 0.0
    %3590 = vadd.xlane.f32.xlu0 %v3589
    %v3591 = vpop.xlane.xlu0 %3590
    %v3592 = vsel %vm525, %v3585, 0.0
    %3593 = vadd.xlane.f32.xlu0 %v3592
    %v3594 = vpop.xlane.xlu0 %3593
    %v3595 = vsel %vm525, %v3586, 0.0
    %3596 = vadd.xlane.f32.xlu0 %v3595
    %v3597 = vpop.xlane.xlu0 %3596
    %v3598 = vmul.f32 %v3591, %v535
    %v3599 = vmul.f32 %v3594, %v535
    %v3600 = vmul.f32 %v3597, %v535
    %v3601 = vsub.f32 %v3584, %v3598
    %v3602 = vsub.f32 %v3585, %v3599
    %v3603 = vsub.f32 %v3586, %v3600
    %v3604 = vmul.f32 %v3601, %v3601
    %v3605 = vmul.f32 %v3602, %v3602
    %v3606 = vmul.f32 %v3603, %v3603
    %v3607 = vsel %vm525, %v3604, 0.0
    %3608 = vadd.xlane.f32.xlu0 %v3607
    %v3609 = vpop.xlane.xlu0 %3608
    %v3610 = vsel %vm525, %v3605, 0.0
    %3611 = vadd.xlane.f32.xlu0 %v3610
    %v3612 = vpop.xlane.xlu0 %3611
    %v3613 = vsel %vm525, %v3606, 0.0
    %3614 = vadd.xlane.f32.xlu0 %v3613
    %v3615 = vpop.xlane.xlu0 %3614
    %v3616 = vmul.f32 %v3609, %v535
    %v3617 = vmul.f32 %v3612, %v535
    %v3618 = vmul.f32 %v3615, %v535
    %v3619 = vadd.f32 %v3616, 1e-05
    %v3620 = vadd.f32 %v3617, 1e-05
    %v3621 = vadd.f32 %v3618, 1e-05
    %v3622 = vrsqrt.pop %v3619
    %v3623 = vrsqrt.pop %v3620
    %v3624 = vrsqrt.pop %v3621
    %v3625 = vmul.f32 %v3601, %v3622
    %v3626 = vmul.f32 %v3602, %v3623
    %v3627 = vmul.f32 %v3603, %v3624
    %v3628 = vlaneseq
    %v3629 = vshrl.u32 %v3628, 7
    %v3630 = vsub.s32 0, %v3629
    %v3631 = vrot.slane %v3587, %v3630
    %v3632 = vmul.f32 %v3625, %v3631
    %v3633 = vmul.f32 %v3626, %v3631
    %v3634 = vmul.f32 %v3627, %v3631
    %v3635 = vlaneseq
    %v3636 = vshrl.u32 %v3635, 7
    %v3637 = vsub.s32 0, %v3636
    %v3638 = vrot.slane %v3588, %v3637
    %v3639 = vadd.f32 %v3632, %v3638
    %v3640 = vadd.f32 %v3633, %v3638
    %v3641 = vadd.f32 %v3634, %v3638
    %v3642 = vld [vmem:[%s8] sm:$0xff]
    %v3643 = vld [vmem:[%s8 + $0x8] sm:$0xff]
    %v3644 = vld [vmem:[%s8 + $0x10] sm:$0xff]
    %v3645 = vld [vmem:[%s8 + $0x18] sm:$0xff]
    %v3646 = vld [vmem:[%s8 + $0x20] sm:$0xff]
    %v3647 = vld [vmem:[%s8 + $0x28] sm:$0xff]
    %v3648 = vld [vmem:[%s8 + $0x30] sm:$0xff]
    %v3649 = vld [vmem:[%s8 + $0x38] sm:$0xff]
    %v3650 = vld [vmem:[%s8 + $0x40] sm:$0xff]
    %v3651 = vld [vmem:[%s8 + $0x48] sm:$0xff]
    %v3652 = vld [vmem:[%s8 + $0x50] sm:$0xff]
    %v3653 = vld [vmem:[%s8 + $0x58] sm:$0xff]
    %v3654 = vld [vmem:[%s8 + $0x60] sm:$0xff]
    %v3655 = vld [vmem:[%s8 + $0x68] sm:$0xff]
    %v3656 = vld [vmem:[%s8 + $0x70] sm:$0xff]
    %v3657 = vld [vmem:[%s8 + $0x78] sm:$0xff]
    %v3659 = vsel %vm525, %v3639, 0
    %v3662 = vsel %vm525, %v3640, 0
    %v3665 = vsel %vm525, %v3641, 0
    %v3668 = vsel %vm525, %v3642, 0
    %v3671 = vsel %vm525, %v3643, 0
    %v3674 = vsel %vm525, %v3644, 0
    %v3677 = vsel %vm525, %v3645, 0
    %v3680 = vsel %vm525, %v3646, 0
    %v3683 = vsel %vm525, %v3647, 0
    %v3686 = vsel %vm525, %v3648, 0
    %v3689 = vsel %vm525, %v3649, 0
    %v3692 = vsel %vm525, %v3650, 0
    %v3695 = vsel %vm525, %v3651, 0
    %v3698 = vsel %vm525, %v3652, 0
    %v3701 = vsel %vm525, %v3653, 0
    %v3704 = vsel %vm525, %v3654, 0
    %v3707 = vsel %vm525, %v3655, 0
    %v3710 = vsel %vm525, %v3656, 0
    %v3713 = vsel %vm525, %v3657, 0
    %3715 = vmatprep.subr.mxu0 0.0
    %3716 = vmatpush1.xpose.msra.mxu0 %v3713
    %3717 = vmatprep.subr.mxu0 0.0
    %3718 = vmatpush1.xpose.msra.mxu0 %v3710
    %3719 = vmatprep.subr.mxu0 0.0
    %3720 = vmatpush1.xpose.msra.mxu0 %v3707
    %3721 = vmatprep.subr.mxu0 0.0
    %3722 = vmatpush1.xpose.msra.mxu0 %v3704
    %3723 = vmatprep.subr.mxu0 0.0
    %3724 = vmatpush1.xpose.msra.mxu0 %v3701
    %3725 = vmatprep.subr.mxu0 0.0
    %3726 = vmatpush1.xpose.msra.mxu0 %v3698
    %3727 = vmatprep.subr.mxu0 0.0
    %3728 = vmatpush1.xpose.msra.mxu0 %v3695
    %3729 = vmatprep.subr.mxu0 0.0
    %3730 = vmatpush1.xpose.msra.mxu0 %v3692
    %3731 = vmatprep.subr.mxu0 0.0
    %3732 = vmatpush1.xpose.msra.mxu0 %v3689
    %3733 = vmatprep.subr.mxu0 0.0
    %3734 = vmatpush1.xpose.msra.mxu0 %v3686
    %3735 = vmatprep.subr.mxu0 0.0
    %3736 = vmatpush1.xpose.msra.mxu0 %v3683
    %3737 = vmatprep.subr.mxu0 0.0
    %3738 = vmatpush1.xpose.msra.mxu0 %v3680
    %3739 = vmatprep.subr.mxu0 0.0
    %3740 = vmatpush1.xpose.msra.mxu0 %v3677
    %3741 = vmatprep.subr.mxu0 0.0
    %3742 = vmatpush1.xpose.msra.mxu0 %v3674
    %3743 = vmatprep.subr.mxu0 0.0
    %3744 = vmatpush1.xpose.msra.mxu0 %v3671
    %3745 = vmatprep.subr.mxu0 0.0
    %3746 = vmatpush1.xpose.msra.mxu0 %v3668
    %3747 = vmatprep.subr.mxu0 0.0
    %3748 = vmatpush2.xpose.msra.mxu0 0.0
    %3749 = vmatprep.subr.mxu0 0.0
    %3750 = vmatpush2.xpose.msra.mxu0 0.0
    %3751 = vmatprep.subr.mxu0 0.0
    %3752 = vmatpush2.xpose.msra.mxu0 0.0
    %3753 = vmatprep.subr.mxu0 0.0
    %3754 = vmatpush2.xpose.msra.mxu0 0.0
    %3755 = vmatprep.subr.mxu0 0.0
    %3756 = vmatpush2.xpose.msra.mxu0 0.0
    %3757 = vmatprep.subr.mxu0 0.0
    %3758 = vmatpush2.xpose.msra.mxu0 0.0
    %3759 = vmatprep.subr.mxu0 0.0
    %3760 = vmatpush2.xpose.msra.mxu0 0.0
    %3761 = vmatprep.subr.mxu0 0.0
    %3762 = vmatpush2.xpose.msra.mxu0 0.0
    %3763 = vmatprep.subr.mxu0 0.0
    %3764 = vmatpush2.xpose.msra.mxu0 0.0
    %3765 = vmatprep.subr.mxu0 0.0
    %3766 = vmatpush2.xpose.msra.mxu0 0.0
    %3767 = vmatprep.subr.mxu0 0.0
    %3768 = vmatpush2.xpose.msra.mxu0 0.0
    %3769 = vmatprep.subr.mxu0 0.0
    %3770 = vmatpush2.xpose.msra.mxu0 0.0
    %3771 = vmatprep.subr.mxu0 0.0
    %3772 = vmatpush2.xpose.msra.mxu0 0.0
    %3773 = vmatprep.subr.mxu0 0.0
    %3774 = vmatpush2.xpose.msra.mxu0 0.0
    %3775 = vmatprep.subr.mxu0 0.0
    %3776 = vmatpush2.xpose.msra.mxu0 0.0
    %3777 = vmatprep.subr.mxu0 0.0
    %3778 = vmatpush2.xpose.msra.mxu0 0.0
    %3779 = vmatprep.mubr.f32.mxu0 0.0
    %3780 = vmatmul.mubr.f32.gmra.mxu0 %v3659
    %v3781 = vpop.f32.mrf.mxu0
    %v3782 = vadd.f32 0.0, %v3781
    %v3783 = vpop.f32.mrf.mxu0
    %3784 = vmatprep.mubr.f32.mxu0 0.0
    %3785 = vmatmul.mubr.f32.gmra.mxu0 %v3662
    %v3786 = vpop.f32.mrf.mxu0
    %v3787 = vadd.f32 0.0, %v3786
    %v3788 = vpop.f32.mrf.mxu0
    %3789 = vmatprep.mubr.f32.mxu0 0.0
    %3790 = vmatmul.mubr.f32.gmra.mxu0 %v3665
    %v3791 = vpop.f32.mrf.mxu0
    %v3792 = vadd.f32 0.0, %v3791
    %v3793 = vpop.f32.mrf.mxu0
    %3794 = vdwg.mxu0
    %3795 = vst [vmem:[#allocation2] sm:$0xff] %v3782
    %3796 = vst [vmem:[#allocation2 + $0x8] sm:$0xff] %v3787
    %3797 = vst [vmem:[#allocation2 + $0x10] sm:$0xff] %v3792
    // Predicated region
    $region38: #{gpt2_decoder_forward.1} parent=1 // pred_check
      _
    $region39: #{gpt2_decoder_forward.1} parent=1 // pred_check_branch
      %3799 = sbr.rel (0) target = $region41
    $region40: #{gpt2_decoder_forward.1} parent=1 // pred_region
      %s3801 = ssub.s32 384, 384
      %3802 = vsyncadd [#allocation3], %s3801
      %s3803 = sshll.u32 [#allocation2], 4
      %s3804 = int_to_ptr.vmem [resolvable:$true] %s3803
      %3809 = dma.vmem_to_hbm [thread:$0]  %s3804, 384, %s9, [#allocation3], 128, 128, 8
    $region41: #{gpt2_decoder_forward.1} parent=1 // pred_fallthru
      _
    // Predicated region
    $region42: #{gpt2_decoder_forward.1} parent=1 // pred_check
      _
    $region43: #{gpt2_decoder_forward.1} parent=1 // pred_check_branch
      %3811 = sbr.rel (0) target = $region45
    $region44: #{gpt2_decoder_forward.1} parent=1 // pred_region
      %3812 = dma.done [#allocation3], 384
    $region45: #{gpt2_decoder_forward.1} parent=1 // pred_fallthru
      _
    %3813 = vsyncpa [#allocation3], 1

</llo_original>
